<compile_context>
chip_gen: v5e
topology: v5e:2x2
jax: 0.10.0
libtpu: 0.0.40
codegen_flags: <defaults>
</compile_context>

<pallas_src>
import functools

import jax
import jax.numpy as jnp
from jax.experimental import pallas as pl
from jax.experimental.pallas import tpu as pltpu

PAD = 18          # max dilation -> spatial halo on each side
LANE = 128


def _round_up(v, m):
    return (v + m - 1) // m * m


def _pick_row_block(H, W, max_block_m):
    """Largest divisor TH of H with TH * W <= max_block_m (at least 1)."""
    best = 1
    for t in range(1, H + 1):
        if H % t == 0 and t * W <= max_block_m:
            best = t
    return best


def _aspp_kernel(x_ref, w_ref, cb_ref, o_ref, *, TH, W, C1p, C2p, offsets):
    """One (batch, row-block) tile per grid step.

    x_ref : (Hp, Wp, C1p) bf16  full padded input of this batch element (resident across r)
    w_ref : (T, C1p, C2p) bf16  folded tap weights (output 1x1 conv pre-applied)
    cb_ref: (1, C2p)      f32   per-batch constant (pool branch + all biases)
    o_ref : (TH, W, C2p)  f32   output row block
    """
    r = pl.program_id(1)
    row0 = pl.multiple_of(r * TH, TH)

    acc = jnp.zeros((TH * W, C2p), jnp.float32)
    for t, (dy, dx) in enumerate(offsets):            # 25 static, merged taps
        patch = x_ref[pl.ds(row0 + dy, TH), pl.ds(dx, W), :].reshape(TH * W, C1p)
        acc = acc + jnp.dot(patch, w_ref[t], preferred_element_type=jnp.float32)

    y = acc + cb_ref[...]                             # f32 bias, broadcast over rows
    o_ref[...] = y.reshape(TH, W, C2p).astype(o_ref.dtype)


def aspp_forward(x_nchw, p, *, max_block_m=512):
    """x_nchw: (N, Cin, H, W) f32.  p: dict of ASPP parameters in PyTorch layouts."""
    N, Cin, H, W = x_nchw.shape
    Cout = p["w1"].shape[0]
    f32 = jnp.float32

    # ---- fold the trailing 1x1 output conv into every branch (all folding in f32) ----
    wout = p["wout"][:, :, 0, 0].astype(f32)                     # (Cout, 5*Cout)
    chunks = [wout[:, k * Cout:(k + 1) * Cout] for k in range(5)]

    taps = {}                                                    # (dy, dx) -> (Cin, Cout)

    def add_tap(dy, dx, m):
        taps[(dy, dx)] = taps.get((dy, dx), 0.0) + m

    add_tap(PAD, PAD, (chunks[1] @ p["w1"][:, :, 0, 0].astype(f32)).T)
    for dil, (wk, ck) in ((6, ("w6", 2)), (12, ("w12", 3)), (18, ("w18", 4))):
        wb = p[wk].astype(f32)                                   # (Cout, Cin, 3, 3)
        for ky in range(3):
            for kx in range(3):
                add_tap(PAD + dil * (ky - 1), PAD + dil * (kx - 1),
                        (chunks[ck] @ wb[:, :, ky, kx]).T)

    offsets = tuple(sorted(taps.keys()))                         # 25 merged taps
    T = len(offsets)
    w_taps = jnp.stack([taps[o] for o in offsets], axis=0)       # (T, Cin, Cout) f32

    # Global-average-pool branch (bilinear upsample of a 1x1 map == broadcast) and all
    # biases collapse into one per-batch constant vector in output-channel space.
    mean_x = jnp.mean(x_nchw.astype(f32), axis=(2, 3))           # (N, Cin)
    img = mean_x @ p["wc"][:, :, 0, 0].astype(f32).T + p["bc"]
    cbias = (img @ chunks[0].T
             + p["b1"] @ chunks[1].T + p["b6"] @ chunks[2].T
             + p["b12"] @ chunks[3].T + p["b18"] @ chunks[4].T
             + p["bout"])                                        # (N, Cout)

    # ---- lane-dense channel padding + bf16 casts --------------------------------------
    C1p = _round_up(Cin, LANE)
    C2p = _round_up(Cout, LANE)
    w_bf16 = (jnp.zeros((T, C1p, C2p), f32).at[:, :Cin, :Cout].set(w_taps)
              ).astype(jnp.bfloat16)
    cb_pad = jnp.zeros((N, 1, C2p), f32).at[:, 0, :Cout].set(cbias)

    # NHWC + 18-px spatial halo + channel pad, bf16 activations.
    # TODO(synk): the halo/channel pad and NCHW<->NHWC transposes are extra HBM round
    # trips; fold them into the producer if the surrounding model is JAX/NHWC-native.
    Hp = H + 2 * PAD
    Wp = _round_up(W + 2 * PAD, 8)
    x_nhwc = jnp.transpose(x_nchw, (0, 2, 3, 1)).astype(jnp.bfloat16)
    x_pad = (jnp.zeros((N, Hp, Wp, C1p), jnp.bfloat16)
             .at[:, PAD:PAD + H, PAD:PAD + W, :Cin].set(x_nhwc))

    # ---- grid: (batch, output-row blocks) ----------------------------------------------
    # TODO(synk): for very large H*W*Cin the per-batch padded input may not fit VMEM twice;
    # a manual halo-DMA variant would be needed there.
    TH = _pick_row_block(H, W, max_block_m)
    R = H // TH

    kernel = functools.partial(_aspp_kernel, TH=TH, W=W, C1p=C1p, C2p=C2p,
                               offsets=offsets)

    out = pl.pallas_call(
        kernel,
        out_shape=jax.ShapeDtypeStruct((N, H, W, C2p), jnp.float32),
        grid_spec=pltpu.PrefetchScalarGridSpec(
            num_scalar_prefetch=0,
            grid=(N, R),
            in_specs=[
                # Full padded input of batch n: block index depends only on n, so the tile is
                # fetched once per batch and stays resident across all R row blocks.
                pl.BlockSpec((None, Hp, Wp, C1p), lambda n, r: (n, 0, 0, 0)),
                pl.BlockSpec((T, C1p, C2p), lambda n, r: (0, 0, 0)),       # folded tap weights
                pl.BlockSpec((None, 1, C2p), lambda n, r: (n, 0, 0)),      # per-batch constant
            ],
            out_specs=pl.BlockSpec((None, TH, W, C2p), lambda n, r: (n, r, 0, 0)),
        ),
        compiler_params=pltpu.CompilerParams(
            dimension_semantics=("parallel", "arbitrary"),
            vmem_limit_bytes=48 * 1024 * 1024),
    )(x_pad, w_bf16, cb_pad)

    return jnp.transpose(out[..., :Cout], (0, 3, 1, 2))              # back to NCHW


def aspp_reference(x, p):
    """Pure-JAX reference (NCHW), mirrors the PyTorch forward."""
    dn = ("NCHW", "OIHW", "NCHW")

    def conv(v, w, b, pad, dil):
        y = jax.lax.conv_general_dilated(
            v, w, window_strides=(1, 1),
            padding=((pad, pad), (pad, pad)),
            rhs_dilation=(dil, dil), dimension_numbers=dn)
        return y + b[None, :, None, None]

    N, _, H, W = x.shape
    img = conv(jnp.mean(x, axis=(2, 3), keepdims=True), p["wc"], p["bc"], 0, 1)
    img = jnp.broadcast_to(img, (N, img.shape[1], H, W))   # bilinear 1x1 -> HxW
    a1 = conv(x, p["w1"], p["b1"], 0, 1)
    a6 = conv(x, p["w6"], p["b6"], 6, 6)
    a12 = conv(x, p["w12"], p["b12"], 12, 12)
    a18 = conv(x, p["w18"], p["b18"], 18, 18)
    cat = jnp.concatenate([img, a1, a6, a12, a18], axis=1)
    return conv(cat, p["wout"], p["bout"], 0, 1)


if __name__ == "__main__":
    N, Cin, Cout, H, W = 2, 4, 8, 16, 16
    key = jax.random.PRNGKey(0)
    ks = jax.random.split(key, 13)

    def rnd(k, shape, scale=0.1):
        return scale * jax.random.normal(k, shape, jnp.float32)

    x = jax.random.normal(ks[0], (N, Cin, H, W), jnp.float32)
    p = dict(
        wc=rnd(ks[1], (Cout, Cin, 1, 1)),   bc=rnd(ks[2], (Cout,)),
        w1=rnd(ks[3], (Cout, Cin, 1, 1)),   b1=rnd(ks[4], (Cout,)),
        w6=rnd(ks[5], (Cout, Cin, 3, 3)),   b6=rnd(ks[6], (Cout,)),
        w12=rnd(ks[7], (Cout, Cin, 3, 3)),  b12=rnd(ks[8], (Cout,)),
        w18=rnd(ks[9], (Cout, Cin, 3, 3)),  b18=rnd(ks[10], (Cout,)),
        wout=rnd(ks[11], (Cout, 5 * Cout, 1, 1)), bout=rnd(ks[12], (Cout,)),
    )

    out = aspp_forward(x, p, max_block_m=128)   # TH=8 -> 2 row blocks per image
    jax.block_until_ready(out)

    ref = aspp_reference(x, p)
    assert out.shape == (N, Cout, H, W), out.shape
    err = float(jnp.max(jnp.abs(out - ref)))
    assert err < 3e-2, err
    print("KERNEL_OK")
</pallas_src>

<mosaic_0001>
module attributes {stable_mosaic.version = 11 : i64} {
  func.func @_aspp_kernel(%arg0: i32, %arg1: i32, %arg2: memref<1x52x56x128xbf16, #tpu.memory_space<vmem>>, %arg3: memref<25x128x128xbf16, #tpu.memory_space<vmem>>, %arg4: memref<1x1x128xf32, #tpu.memory_space<vmem>>, %arg5: memref<1x8x16x128xf32, #tpu.memory_space<vmem>>) attributes {dimension_semantics = [#tpu.dimension_semantics<parallel>, #tpu.dimension_semantics<arbitrary>], iteration_bounds = array<i64: 2, 2>, scalar_prefetch = 0 : i64, scratch_operands = 0 : i64, tpu.core_type = #tpu.core_type<tc>, window_params = [{transform_indices = @transform_0, window_bounds = array<i64: 1, 52, 56, 128>}, {pipeline_mode = #tpu.pipeline_mode<synchronous>, transform_indices = @transform_1, window_bounds = array<i64: 25, 128, 128>}, {transform_indices = @transform_2, window_bounds = array<i64: 1, 1, 128>}, {transform_indices = @transform_3, window_bounds = array<i64: 1, 8, 16, 128>}]} {
    %c8_i32 = arith.constant 8 : i32
    %0 = arith.muli %arg1, %c8_i32 : i32
    %1 = tpu.assume_multiple %0, 8 : i32
    %cst = arith.constant 0.000000e+00 : f32
    %2 = vector.broadcast %cst : f32 to vector<128x128xf32>
    %c0_i32 = arith.constant 0 : i32
    %3 = arith.addi %1, %c0_i32 : i32
    %c0 = arith.constant 0 : index
    %4 = arith.index_cast %3 : i32 to index
    %c0_0 = arith.constant 0 : index
    %c0_1 = arith.constant 0 : index
    %5 = vector.load %arg2[%c0, %4, %c0_0, %c0_1] : memref<1x52x56x128xbf16, #tpu.memory_space<vmem>>, vector<1x8x16x128xbf16>
    %6 = vector.shape_cast %5 : vector<1x8x16x128xbf16> to vector<8x16x128xbf16>
    %7 = vector.shape_cast %6 : vector<8x16x128xbf16> to vector<128x128xbf16>
    %c0_2 = arith.constant 0 : index
    %c0_3 = arith.constant 0 : index
    %c0_4 = arith.constant 0 : index
    %8 = vector.load %arg3[%c0_2, %c0_3, %c0_4] : memref<25x128x128xbf16, #tpu.memory_space<vmem>>, vector<1x128x128xbf16>
    %9 = vector.shape_cast %8 : vector<1x128x128xbf16> to vector<128x128xbf16>
    %cst_5 = arith.constant dense<0.000000e+00> : vector<128x128xf32>
    %10 = tpu.matmul %7, %9, %cst_5 {dimension_numbers = #tpu.dot_dimension_numbers<[1], [0], [0], [1], [0, 0, 1, 1], [], []>} : vector<128x128xbf16>, vector<128x128xbf16>, vector<128x128xf32> -> vector<128x128xf32>
    %11 = arith.addf %2, %10 : vector<128x128xf32>
    %c0_i32_6 = arith.constant 0 : i32
    %12 = arith.addi %1, %c0_i32_6 : i32
    %c0_7 = arith.constant 0 : index
    %13 = arith.index_cast %12 : i32 to index
    %c18 = arith.constant 18 : index
    %c0_8 = arith.constant 0 : index
    %14 = vector.load %arg2[%c0_7, %13, %c18, %c0_8] : memref<1x52x56x128xbf16, #tpu.memory_space<vmem>>, vector<1x8x16x128xbf16>
    %15 = vector.shape_cast %14 : vector<1x8x16x128xbf16> to vector<8x16x128xbf16>
    %16 = vector.shape_cast %15 : vector<8x16x128xbf16> to vector<128x128xbf16>
    %c1 = arith.constant 1 : index
    %c0_9 = arith.constant 0 : index
    %c0_10 = arith.constant 0 : index
    %17 = vector.load %arg3[%c1, %c0_9, %c0_10] : memref<25x128x128xbf16, #tpu.memory_space<vmem>>, vector<1x128x128xbf16>
    %18 = vector.shape_cast %17 : vector<1x128x128xbf16> to vector<128x128xbf16>
    %cst_11 = arith.constant dense<0.000000e+00> : vector<128x128xf32>
    %19 = tpu.matmul %16, %18, %cst_11 {dimension_numbers = #tpu.dot_dimension_numbers<[1], [0], [0], [1], [0, 0, 1, 1], [], []>} : vector<128x128xbf16>, vector<128x128xbf16>, vector<128x128xf32> -> vector<128x128xf32>
    %20 = arith.addf %11, %19 : vector<128x128xf32>
    %c0_i32_12 = arith.constant 0 : i32
    %21 = arith.addi %1, %c0_i32_12 : i32
    %c0_13 = arith.constant 0 : index
    %22 = arith.index_cast %21 : i32 to index
    %c36 = arith.constant 36 : index
    %c0_14 = arith.constant 0 : index
    %23 = vector.load %arg2[%c0_13, %22, %c36, %c0_14] : memref<1x52x56x128xbf16, #tpu.memory_space<vmem>>, vector<1x8x16x128xbf16>
    %24 = vector.shape_cast %23 : vector<1x8x16x128xbf16> to vector<8x16x128xbf16>
    %25 = vector.shape_cast %24 : vector<8x16x128xbf16> to vector<128x128xbf16>
    %c2 = arith.constant 2 : index
    %c0_15 = arith.constant 0 : index
    %c0_16 = arith.constant 0 : index
    %26 = vector.load %arg3[%c2, %c0_15, %c0_16] : memref<25x128x128xbf16, #tpu.memory_space<vmem>>, vector<1x128x128xbf16>
    %27 = vector.shape_cast %26 : vector<1x128x128xbf16> to vector<128x128xbf16>
    %cst_17 = arith.constant dense<0.000000e+00> : vector<128x128xf32>
    %28 = tpu.matmul %25, %27, %cst_17 {dimension_numbers = #tpu.dot_dimension_numbers<[1], [0], [0], [1], [0, 0, 1, 1], [], []>} : vector<128x128xbf16>, vector<128x128xbf16>, vector<128x128xf32> -> vector<128x128xf32>
    %29 = arith.addf %20, %28 : vector<128x128xf32>
    %c6_i32 = arith.constant 6 : i32
    %30 = arith.addi %1, %c6_i32 : i32
    %c0_18 = arith.constant 0 : index
    %31 = arith.index_cast %30 : i32 to index
    %c6 = arith.constant 6 : index
    %c0_19 = arith.constant 0 : index
    %32 = vector.load %arg2[%c0_18, %31, %c6, %c0_19] : memref<1x52x56x128xbf16, #tpu.memory_space<vmem>>, vector<1x8x16x128xbf16>
    %33 = vector.shape_cast %32 : vector<1x8x16x128xbf16> to vector<8x16x128xbf16>
    %34 = vector.shape_cast %33 : vector<8x16x128xbf16> to vector<128x128xbf16>
    %c3 = arith.constant 3 : index
    %c0_20 = arith.constant 0 : index
    %c0_21 = arith.constant 0 : index
    %35 = vector.load %arg3[%c3, %c0_20, %c0_21] : memref<25x128x128xbf16, #tpu.memory_space<vmem>>, vector<1x128x128xbf16>
    %36 = vector.shape_cast %35 : vector<1x128x128xbf16> to vector<128x128xbf16>
    %cst_22 = arith.constant dense<0.000000e+00> : vector<128x128xf32>
    %37 = tpu.matmul %34, %36, %cst_22 {dimension_numbers = #tpu.dot_dimension_numbers<[1], [0], [0], [1], [0, 0, 1, 1], [], []>} : vector<128x128xbf16>, vector<128x128xbf16>, vector<128x128xf32> -> vector<128x128xf32>
    %38 = arith.addf %29, %37 : vector<128x128xf32>
    %c6_i32_23 = arith.constant 6 : i32
    %39 = arith.addi %1, %c6_i32_23 : i32
    %c0_24 = arith.constant 0 : index
    %40 = arith.index_cast %39 : i32 to index
    %c18_25 = arith.constant 18 : index
    %c0_26 = arith.constant 0 : index
    %41 = vector.load %arg2[%c0_24, %40, %c18_25, %c0_26] : memref<1x52x56x128xbf16, #tpu.memory_space<vmem>>, vector<1x8x16x128xbf16>
    %42 = vector.shape_cast %41 : vector<1x8x16x128xbf16> to vector<8x16x128xbf16>
    %43 = vector.shape_cast %42 : vector<8x16x128xbf16> to vector<128x128xbf16>
    %c4 = arith.constant 4 : index
    %c0_27 = arith.constant 0 : index
    %c0_28 = arith.constant 0 : index
    %44 = vector.load %arg3[%c4, %c0_27, %c0_28] : memref<25x128x128xbf16, #tpu.memory_space<vmem>>, vector<1x128x128xbf16>
    %45 = vector.shape_cast %44 : vector<1x128x128xbf16> to vector<128x128xbf16>
    %cst_29 = arith.constant dense<0.000000e+00> : vector<128x128xf32>
    %46 = tpu.matmul %43, %45, %cst_29 {dimension_numbers = #tpu.dot_dimension_numbers<[1], [0], [0], [1], [0, 0, 1, 1], [], []>} : vector<128x128xbf16>, vector<128x128xbf16>, vector<128x128xf32> -> vector<128x128xf32>
    %47 = arith.addf %38, %46 : vector<128x128xf32>
    %c6_i32_30 = arith.constant 6 : i32
    %48 = arith.addi %1, %c6_i32_30 : i32
    %c0_31 = arith.constant 0 : index
    %49 = arith.index_cast %48 : i32 to index
    %c30 = arith.constant 30 : index
    %c0_32 = arith.constant 0 : index
    %50 = vector.load %arg2[%c0_31, %49, %c30, %c0_32] : memref<1x52x56x128xbf16, #tpu.memory_space<vmem>>, vector<1x8x16x128xbf16>
    %51 = vector.shape_cast %50 : vector<1x8x16x128xbf16> to vector<8x16x128xbf16>
    %52 = vector.shape_cast %51 : vector<8x16x128xbf16> to vector<128x128xbf16>
    %c5 = arith.constant 5 : index
    %c0_33 = arith.constant 0 : index
    %c0_34 = arith.constant 0 : index
    %53 = vector.load %arg3[%c5, %c0_33, %c0_34] : memref<25x128x128xbf16, #tpu.memory_space<vmem>>, vector<1x128x128xbf16>
    %54 = vector.shape_cast %53 : vector<1x128x128xbf16> to vector<128x128xbf16>
    %cst_35 = arith.constant dense<0.000000e+00> : vector<128x128xf32>
    %55 = tpu.matmul %52, %54, %cst_35 {dimension_numbers = #tpu.dot_dimension_numbers<[1], [0], [0], [1], [0, 0, 1, 1], [], []>} : vector<128x128xbf16>, vector<128x128xbf16>, vector<128x128xf32> -> vector<128x128xf32>
    %56 = arith.addf %47, %55 : vector<128x128xf32>
    %c12_i32 = arith.constant 12 : i32
    %57 = arith.addi %1, %c12_i32 : i32
    %c0_36 = arith.constant 0 : index
    %58 = arith.index_cast %57 : i32 to index
    %c12 = arith.constant 12 : index
    %c0_37 = arith.constant 0 : index
    %59 = vector.load %arg2[%c0_36, %58, %c12, %c0_37] : memref<1x52x56x128xbf16, #tpu.memory_space<vmem>>, vector<1x8x16x128xbf16>
    %60 = vector.shape_cast %59 : vector<1x8x16x128xbf16> to vector<8x16x128xbf16>
    %61 = vector.shape_cast %60 : vector<8x16x128xbf16> to vector<128x128xbf16>
    %c6_38 = arith.constant 6 : index
    %c0_39 = arith.constant 0 : index
    %c0_40 = arith.constant 0 : index
    %62 = vector.load %arg3[%c6_38, %c0_39, %c0_40] : memref<25x128x128xbf16, #tpu.memory_space<vmem>>, vector<1x128x128xbf16>
    %63 = vector.shape_cast %62 : vector<1x128x128xbf16> to vector<128x128xbf16>
    %cst_41 = arith.constant dense<0.000000e+00> : vector<128x128xf32>
    %64 = tpu.matmul %61, %63, %cst_41 {dimension_numbers = #tpu.dot_dimension_numbers<[1], [0], [0], [1], [0, 0, 1, 1], [], []>} : vector<128x128xbf16>, vector<128x128xbf16>, vector<128x128xf32> -> vector<128x128xf32>
    %65 = arith.addf %56, %64 : vector<128x128xf32>
    %c12_i32_42 = arith.constant 12 : i32
    %66 = arith.addi %1, %c12_i32_42 : i32
    %c0_43 = arith.constant 0 : index
    %67 = arith.index_cast %66 : i32 to index
    %c18_44 = arith.constant 18 : index
    %c0_45 = arith.constant 0 : index
    %68 = vector.load %arg2[%c0_43, %67, %c18_44, %c0_45] : memref<1x52x56x128xbf16, #tpu.memory_space<vmem>>, vector<1x8x16x128xbf16>
    %69 = vector.shape_cast %68 : vector<1x8x16x128xbf16> to vector<8x16x128xbf16>
    %70 = vector.shape_cast %69 : vector<8x16x128xbf16> to vector<128x128xbf16>
    %c7 = arith.constant 7 : index
    %c0_46 = arith.constant 0 : index
    %c0_47 = arith.constant 0 : index
    %71 = vector.load %arg3[%c7, %c0_46, %c0_47] : memref<25x128x128xbf16, #tpu.memory_space<vmem>>, vector<1x128x128xbf16>
    %72 = vector.shape_cast %71 : vector<1x128x128xbf16> to vector<128x128xbf16>
    %cst_48 = arith.constant dense<0.000000e+00> : vector<128x128xf32>
    %73 = tpu.matmul %70, %72, %cst_48 {dimension_numbers = #tpu.dot_dimension_numbers<[1], [0], [0], [1], [0, 0, 1, 1], [], []>} : vector<128x128xbf16>, vector<128x128xbf16>, vector<128x128xf32> -> vector<128x128xf32>
    %74 = arith.addf %65, %73 : vector<128x128xf32>
    %c12_i32_49 = arith.constant 12 : i32
    %75 = arith.addi %1, %c12_i32_49 : i32
    %c0_50 = arith.constant 0 : index
    %76 = arith.index_cast %75 : i32 to index
    %c24 = arith.constant 24 : index
    %c0_51 = arith.constant 0 : index
    %77 = vector.load %arg2[%c0_50, %76, %c24, %c0_51] : memref<1x52x56x128xbf16, #tpu.memory_space<vmem>>, vector<1x8x16x128xbf16>
    %78 = vector.shape_cast %77 : vector<1x8x16x128xbf16> to vector<8x16x128xbf16>
    %79 = vector.shape_cast %78 : vector<8x16x128xbf16> to vector<128x128xbf16>
    %c8 = arith.constant 8 : index
    %c0_52 = arith.constant 0 : index
    %c0_53 = arith.constant 0 : index
    %80 = vector.load %arg3[%c8, %c0_52, %c0_53] : memref<25x128x128xbf16, #tpu.memory_space<vmem>>, vector<1x128x128xbf16>
    %81 = vector.shape_cast %80 : vector<1x128x128xbf16> to vector<128x128xbf16>
    %cst_54 = arith.constant dense<0.000000e+00> : vector<128x128xf32>
    %82 = tpu.matmul %79, %81, %cst_54 {dimension_numbers = #tpu.dot_dimension_numbers<[1], [0], [0], [1], [0, 0, 1, 1], [], []>} : vector<128x128xbf16>, vector<128x128xbf16>, vector<128x128xf32> -> vector<128x128xf32>
    %83 = arith.addf %74, %82 : vector<128x128xf32>
    %c18_i32 = arith.constant 18 : i32
    %84 = arith.addi %1, %c18_i32 : i32
    %c0_55 = arith.constant 0 : index
    %85 = arith.index_cast %84 : i32 to index
    %c0_56 = arith.constant 0 : index
    %c0_57 = arith.constant 0 : index
    %86 = vector.load %arg2[%c0_55, %85, %c0_56, %c0_57] : memref<1x52x56x128xbf16, #tpu.memory_space<vmem>>, vector<1x8x16x128xbf16>
    %87 = vector.shape_cast %86 : vector<1x8x16x128xbf16> to vector<8x16x128xbf16>
    %88 = vector.shape_cast %87 : vector<8x16x128xbf16> to vector<128x128xbf16>
    %c9 = arith.constant 9 : index
    %c0_58 = arith.constant 0 : index
    %c0_59 = arith.constant 0 : index
    %89 = vector.load %arg3[%c9, %c0_58, %c0_59] : memref<25x128x128xbf16, #tpu.memory_space<vmem>>, vector<1x128x128xbf16>
    %90 = vector.shape_cast %89 : vector<1x128x128xbf16> to vector<128x128xbf16>
    %cst_60 = arith.constant dense<0.000000e+00> : vector<128x128xf32>
    %91 = tpu.matmul %88, %90, %cst_60 {dimension_numbers = #tpu.dot_dimension_numbers<[1], [0], [0], [1], [0, 0, 1, 1], [], []>} : vector<128x128xbf16>, vector<128x128xbf16>, vector<128x128xf32> -> vector<128x128xf32>
    %92 = arith.addf %83, %91 : vector<128x128xf32>
    %c18_i32_61 = arith.constant 18 : i32
    %93 = arith.addi %1, %c18_i32_61 : i32
    %c0_62 = arith.constant 0 : index
    %94 = arith.index_cast %93 : i32 to index
    %c6_63 = arith.constant 6 : index
    %c0_64 = arith.constant 0 : index
    %95 = vector.load %arg2[%c0_62, %94, %c6_63, %c0_64] : memref<1x52x56x128xbf16, #tpu.memory_space<vmem>>, vector<1x8x16x128xbf16>
    %96 = vector.shape_cast %95 : vector<1x8x16x128xbf16> to vector<8x16x128xbf16>
    %97 = vector.shape_cast %96 : vector<8x16x128xbf16> to vector<128x128xbf16>
    %c10 = arith.constant 10 : index
    %c0_65 = arith.constant 0 : index
    %c0_66 = arith.constant 0 : index
    %98 = vector.load %arg3[%c10, %c0_65, %c0_66] : memref<25x128x128xbf16, #tpu.memory_space<vmem>>, vector<1x128x128xbf16>
    %99 = vector.shape_cast %98 : vector<1x128x128xbf16> to vector<128x128xbf16>
    %cst_67 = arith.constant dense<0.000000e+00> : vector<128x128xf32>
    %100 = tpu.matmul %97, %99, %cst_67 {dimension_numbers = #tpu.dot_dimension_numbers<[1], [0], [0], [1], [0, 0, 1, 1], [], []>} : vector<128x128xbf16>, vector<128x128xbf16>, vector<128x128xf32> -> vector<128x128xf32>
    %101 = arith.addf %92, %100 : vector<128x128xf32>
    %c18_i32_68 = arith.constant 18 : i32
    %102 = arith.addi %1, %c18_i32_68 : i32
    %c0_69 = arith.constant 0 : index
    %103 = arith.index_cast %102 : i32 to index
    %c12_70 = arith.constant 12 : index
    %c0_71 = arith.constant 0 : index
    %104 = vector.load %arg2[%c0_69, %103, %c12_70, %c0_71] : memref<1x52x56x128xbf16, #tpu.memory_space<vmem>>, vector<1x8x16x128xbf16>
    %105 = vector.shape_cast %104 : vector<1x8x16x128xbf16> to vector<8x16x128xbf16>
    %106 = vector.shape_cast %105 : vector<8x16x128xbf16> to vector<128x128xbf16>
    %c11 = arith.constant 11 : index
    %c0_72 = arith.constant 0 : index
    %c0_73 = arith.constant 0 : index
    %107 = vector.load %arg3[%c11, %c0_72, %c0_73] : memref<25x128x128xbf16, #tpu.memory_space<vmem>>, vector<1x128x128xbf16>
    %108 = vector.shape_cast %107 : vector<1x128x128xbf16> to vector<128x128xbf16>
    %cst_74 = arith.constant dense<0.000000e+00> : vector<128x128xf32>
    %109 = tpu.matmul %106, %108, %cst_74 {dimension_numbers = #tpu.dot_dimension_numbers<[1], [0], [0], [1], [0, 0, 1, 1], [], []>} : vector<128x128xbf16>, vector<128x128xbf16>, vector<128x128xf32> -> vector<128x128xf32>
    %110 = arith.addf %101, %109 : vector<128x128xf32>
    %c18_i32_75 = arith.constant 18 : i32
    %111 = arith.addi %1, %c18_i32_75 : i32
    %c0_76 = arith.constant 0 : index
    %112 = arith.index_cast %111 : i32 to index
    %c18_77 = arith.constant 18 : index
    %c0_78 = arith.constant 0 : index
    %113 = vector.load %arg2[%c0_76, %112, %c18_77, %c0_78] : memref<1x52x56x128xbf16, #tpu.memory_space<vmem>>, vector<1x8x16x128xbf16>
    %114 = vector.shape_cast %113 : vector<1x8x16x128xbf16> to vector<8x16x128xbf16>
    %115 = vector.shape_cast %114 : vector<8x16x128xbf16> to vector<128x128xbf16>
    %c12_79 = arith.constant 12 : index
    %c0_80 = arith.constant 0 : index
    %c0_81 = arith.constant 0 : index
    %116 = vector.load %arg3[%c12_79, %c0_80, %c0_81] : memref<25x128x128xbf16, #tpu.memory_space<vmem>>, vector<1x128x128xbf16>
    %117 = vector.shape_cast %116 : vector<1x128x128xbf16> to vector<128x128xbf16>
    %cst_82 = arith.constant dense<0.000000e+00> : vector<128x128xf32>
    %118 = tpu.matmul %115, %117, %cst_82 {dimension_numbers = #tpu.dot_dimension_numbers<[1], [0], [0], [1], [0, 0, 1, 1], [], []>} : vector<128x128xbf16>, vector<128x128xbf16>, vector<128x128xf32> -> vector<128x128xf32>
    %119 = arith.addf %110, %118 : vector<128x128xf32>
    %c18_i32_83 = arith.constant 18 : i32
    %120 = arith.addi %1, %c18_i32_83 : i32
    %c0_84 = arith.constant 0 : index
    %121 = arith.index_cast %120 : i32 to index
    %c24_85 = arith.constant 24 : index
    %c0_86 = arith.constant 0 : index
    %122 = vector.load %arg2[%c0_84, %121, %c24_85, %c0_86] : memref<1x52x56x128xbf16, #tpu.memory_space<vmem>>, vector<1x8x16x128xbf16>
    %123 = vector.shape_cast %122 : vector<1x8x16x128xbf16> to vector<8x16x128xbf16>
    %124 = vector.shape_cast %123 : vector<8x16x128xbf16> to vector<128x128xbf16>
    %c13 = arith.constant 13 : index
    %c0_87 = arith.constant 0 : index
    %c0_88 = arith.constant 0 : index
    %125 = vector.load %arg3[%c13, %c0_87, %c0_88] : memref<25x128x128xbf16, #tpu.memory_space<vmem>>, vector<1x128x128xbf16>
    %126 = vector.shape_cast %125 : vector<1x128x128xbf16> to vector<128x128xbf16>
    %cst_89 = arith.constant dense<0.000000e+00> : vector<128x128xf32>
    %127 = tpu.matmul %124, %126, %cst_89 {dimension_numbers = #tpu.dot_dimension_numbers<[1], [0], [0], [1], [0, 0, 1, 1], [], []>} : vector<128x128xbf16>, vector<128x128xbf16>, vector<128x128xf32> -> vector<128x128xf32>
    %128 = arith.addf %119, %127 : vector<128x128xf32>
    %c18_i32_90 = arith.constant 18 : i32
    %129 = arith.addi %1, %c18_i32_90 : i32
    %c0_91 = arith.constant 0 : index
    %130 = arith.index_cast %129 : i32 to index
    %c30_92 = arith.constant 30 : index
    %c0_93 = arith.constant 0 : index
    %131 = vector.load %arg2[%c0_91, %130, %c30_92, %c0_93] : memref<1x52x56x128xbf16, #tpu.memory_space<vmem>>, vector<1x8x16x128xbf16>
    %132 = vector.shape_cast %131 : vector<1x8x16x128xbf16> to vector<8x16x128xbf16>
    %133 = vector.shape_cast %132 : vector<8x16x128xbf16> to vector<128x128xbf16>
    %c14 = arith.constant 14 : index
    %c0_94 = arith.constant 0 : index
    %c0_95 = arith.constant 0 : index
    %134 = vector.load %arg3[%c14, %c0_94, %c0_95] : memref<25x128x128xbf16, #tpu.memory_space<vmem>>, vector<1x128x128xbf16>
    %135 = vector.shape_cast %134 : vector<1x128x128xbf16> to vector<128x128xbf16>
    %cst_96 = arith.constant dense<0.000000e+00> : vector<128x128xf32>
    %136 = tpu.matmul %133, %135, %cst_96 {dimension_numbers = #tpu.dot_dimension_numbers<[1], [0], [0], [1], [0, 0, 1, 1], [], []>} : vector<128x128xbf16>, vector<128x128xbf16>, vector<128x128xf32> -> vector<128x128xf32>
    %137 = arith.addf %128, %136 : vector<128x128xf32>
    %c18_i32_97 = arith.constant 18 : i32
    %138 = arith.addi %1, %c18_i32_97 : i32
    %c0_98 = arith.constant 0 : index
    %139 = arith.index_cast %138 : i32 to index
    %c36_99 = arith.constant 36 : index
    %c0_100 = arith.constant 0 : index
    %140 = vector.load %arg2[%c0_98, %139, %c36_99, %c0_100] : memref<1x52x56x128xbf16, #tpu.memory_space<vmem>>, vector<1x8x16x128xbf16>
    %141 = vector.shape_cast %140 : vector<1x8x16x128xbf16> to vector<8x16x128xbf16>
    %142 = vector.shape_cast %141 : vector<8x16x128xbf16> to vector<128x128xbf16>
    %c15 = arith.constant 15 : index
    %c0_101 = arith.constant 0 : index
    %c0_102 = arith.constant 0 : index
    %143 = vector.load %arg3[%c15, %c0_101, %c0_102] : memref<25x128x128xbf16, #tpu.memory_space<vmem>>, vector<1x128x128xbf16>
    %144 = vector.shape_cast %143 : vector<1x128x128xbf16> to vector<128x128xbf16>
    %cst_103 = arith.constant dense<0.000000e+00> : vector<128x128xf32>
    %145 = tpu.matmul %142, %144, %cst_103 {dimension_numbers = #tpu.dot_dimension_numbers<[1], [0], [0], [1], [0, 0, 1, 1], [], []>} : vector<128x128xbf16>, vector<128x128xbf16>, vector<128x128xf32> -> vector<128x128xf32>
    %146 = arith.addf %137, %145 : vector<128x128xf32>
    %c24_i32 = arith.constant 24 : i32
    %147 = arith.addi %1, %c24_i32 : i32
    %c0_104 = arith.constant 0 : index
    %148 = arith.index_cast %147 : i32 to index
    %c12_105 = arith.constant 12 : index
    %c0_106 = arith.constant 0 : index
    %149 = vector.load %arg2[%c0_104, %148, %c12_105, %c0_106] : memref<1x52x56x128xbf16, #tpu.memory_space<vmem>>, vector<1x8x16x128xbf16>
    %150 = vector.shape_cast %149 : vector<1x8x16x128xbf16> to vector<8x16x128xbf16>
    %151 = vector.shape_cast %150 : vector<8x16x128xbf16> to vector<128x128xbf16>
    %c16 = arith.constant 16 : index
    %c0_107 = arith.constant 0 : index
    %c0_108 = arith.constant 0 : index
    %152 = vector.load %arg3[%c16, %c0_107, %c0_108] : memref<25x128x128xbf16, #tpu.memory_space<vmem>>, vector<1x128x128xbf16>
    %153 = vector.shape_cast %152 : vector<1x128x128xbf16> to vector<128x128xbf16>
    %cst_109 = arith.constant dense<0.000000e+00> : vector<128x128xf32>
    %154 = tpu.matmul %151, %153, %cst_109 {dimension_numbers = #tpu.dot_dimension_numbers<[1], [0], [0], [1], [0, 0, 1, 1], [], []>} : vector<128x128xbf16>, vector<128x128xbf16>, vector<128x128xf32> -> vector<128x128xf32>
    %155 = arith.addf %146, %154 : vector<128x128xf32>
    %c24_i32_110 = arith.constant 24 : i32
    %156 = arith.addi %1, %c24_i32_110 : i32
    %c0_111 = arith.constant 0 : index
    %157 = arith.index_cast %156 : i32 to index
    %c18_112 = arith.constant 18 : index
    %c0_113 = arith.constant 0 : index
    %158 = vector.load %arg2[%c0_111, %157, %c18_112, %c0_113] : memref<1x52x56x128xbf16, #tpu.memory_space<vmem>>, vector<1x8x16x128xbf16>
    %159 = vector.shape_cast %158 : vector<1x8x16x128xbf16> to vector<8x16x128xbf16>
    %160 = vector.shape_cast %159 : vector<8x16x128xbf16> to vector<128x128xbf16>
    %c17 = arith.constant 17 : index
    %c0_114 = arith.constant 0 : index
    %c0_115 = arith.constant 0 : index
    %161 = vector.load %arg3[%c17, %c0_114, %c0_115] : memref<25x128x128xbf16, #tpu.memory_space<vmem>>, vector<1x128x128xbf16>
    %162 = vector.shape_cast %161 : vector<1x128x128xbf16> to vector<128x128xbf16>
    %cst_116 = arith.constant dense<0.000000e+00> : vector<128x128xf32>
    %163 = tpu.matmul %160, %162, %cst_116 {dimension_numbers = #tpu.dot_dimension_numbers<[1], [0], [0], [1], [0, 0, 1, 1], [], []>} : vector<128x128xbf16>, vector<128x128xbf16>, vector<128x128xf32> -> vector<128x128xf32>
    %164 = arith.addf %155, %163 : vector<128x128xf32>
    %c24_i32_117 = arith.constant 24 : i32
    %165 = arith.addi %1, %c24_i32_117 : i32
    %c0_118 = arith.constant 0 : index
    %166 = arith.index_cast %165 : i32 to index
    %c24_119 = arith.constant 24 : index
    %c0_120 = arith.constant 0 : index
    %167 = vector.load %arg2[%c0_118, %166, %c24_119, %c0_120] : memref<1x52x56x128xbf16, #tpu.memory_space<vmem>>, vector<1x8x16x128xbf16>
    %168 = vector.shape_cast %167 : vector<1x8x16x128xbf16> to vector<8x16x128xbf16>
    %169 = vector.shape_cast %168 : vector<8x16x128xbf16> to vector<128x128xbf16>
    %c18_121 = arith.constant 18 : index
    %c0_122 = arith.constant 0 : index
    %c0_123 = arith.constant 0 : index
    %170 = vector.load %arg3[%c18_121, %c0_122, %c0_123] : memref<25x128x128xbf16, #tpu.memory_space<vmem>>, vector<1x128x128xbf16>
    %171 = vector.shape_cast %170 : vector<1x128x128xbf16> to vector<128x128xbf16>
    %cst_124 = arith.constant dense<0.000000e+00> : vector<128x128xf32>
    %172 = tpu.matmul %169, %171, %cst_124 {dimension_numbers = #tpu.dot_dimension_numbers<[1], [0], [0], [1], [0, 0, 1, 1], [], []>} : vector<128x128xbf16>, vector<128x128xbf16>, vector<128x128xf32> -> vector<128x128xf32>
    %173 = arith.addf %164, %172 : vector<128x128xf32>
    %c30_i32 = arith.constant 30 : i32
    %174 = arith.addi %1, %c30_i32 : i32
    %c0_125 = arith.constant 0 : index
    %175 = arith.index_cast %174 : i32 to index
    %c6_126 = arith.constant 6 : index
    %c0_127 = arith.constant 0 : index
    %176 = vector.load %arg2[%c0_125, %175, %c6_126, %c0_127] : memref<1x52x56x128xbf16, #tpu.memory_space<vmem>>, vector<1x8x16x128xbf16>
    %177 = vector.shape_cast %176 : vector<1x8x16x128xbf16> to vector<8x16x128xbf16>
    %178 = vector.shape_cast %177 : vector<8x16x128xbf16> to vector<128x128xbf16>
    %c19 = arith.constant 19 : index
    %c0_128 = arith.constant 0 : index
    %c0_129 = arith.constant 0 : index
    %179 = vector.load %arg3[%c19, %c0_128, %c0_129] : memref<25x128x128xbf16, #tpu.memory_space<vmem>>, vector<1x128x128xbf16>
    %180 = vector.shape_cast %179 : vector<1x128x128xbf16> to vector<128x128xbf16>
    %cst_130 = arith.constant dense<0.000000e+00> : vector<128x128xf32>
    %181 = tpu.matmul %178, %180, %cst_130 {dimension_numbers = #tpu.dot_dimension_numbers<[1], [0], [0], [1], [0, 0, 1, 1], [], []>} : vector<128x128xbf16>, vector<128x128xbf16>, vector<128x128xf32> -> vector<128x128xf32>
    %182 = arith.addf %173, %181 : vector<128x128xf32>
    %c30_i32_131 = arith.constant 30 : i32
    %183 = arith.addi %1, %c30_i32_131 : i32
    %c0_132 = arith.constant 0 : index
    %184 = arith.index_cast %183 : i32 to index
    %c18_133 = arith.constant 18 : index
    %c0_134 = arith.constant 0 : index
    %185 = vector.load %arg2[%c0_132, %184, %c18_133, %c0_134] : memref<1x52x56x128xbf16, #tpu.memory_space<vmem>>, vector<1x8x16x128xbf16>
    %186 = vector.shape_cast %185 : vector<1x8x16x128xbf16> to vector<8x16x128xbf16>
    %187 = vector.shape_cast %186 : vector<8x16x128xbf16> to vector<128x128xbf16>
    %c20 = arith.constant 20 : index
    %c0_135 = arith.constant 0 : index
    %c0_136 = arith.constant 0 : index
    %188 = vector.load %arg3[%c20, %c0_135, %c0_136] : memref<25x128x128xbf16, #tpu.memory_space<vmem>>, vector<1x128x128xbf16>
    %189 = vector.shape_cast %188 : vector<1x128x128xbf16> to vector<128x128xbf16>
    %cst_137 = arith.constant dense<0.000000e+00> : vector<128x128xf32>
    %190 = tpu.matmul %187, %189, %cst_137 {dimension_numbers = #tpu.dot_dimension_numbers<[1], [0], [0], [1], [0, 0, 1, 1], [], []>} : vector<128x128xbf16>, vector<128x128xbf16>, vector<128x128xf32> -> vector<128x128xf32>
    %191 = arith.addf %182, %190 : vector<128x128xf32>
    %c30_i32_138 = arith.constant 30 : i32
    %192 = arith.addi %1, %c30_i32_138 : i32
    %c0_139 = arith.constant 0 : index
    %193 = arith.index_cast %192 : i32 to index
    %c30_140 = arith.constant 30 : index
    %c0_141 = arith.constant 0 : index
    %194 = vector.load %arg2[%c0_139, %193, %c30_140, %c0_141] : memref<1x52x56x128xbf16, #tpu.memory_space<vmem>>, vector<1x8x16x128xbf16>
    %195 = vector.shape_cast %194 : vector<1x8x16x128xbf16> to vector<8x16x128xbf16>
    %196 = vector.shape_cast %195 : vector<8x16x128xbf16> to vector<128x128xbf16>
    %c21 = arith.constant 21 : index
    %c0_142 = arith.constant 0 : index
    %c0_143 = arith.constant 0 : index
    %197 = vector.load %arg3[%c21, %c0_142, %c0_143] : memref<25x128x128xbf16, #tpu.memory_space<vmem>>, vector<1x128x128xbf16>
    %198 = vector.shape_cast %197 : vector<1x128x128xbf16> to vector<128x128xbf16>
    %cst_144 = arith.constant dense<0.000000e+00> : vector<128x128xf32>
    %199 = tpu.matmul %196, %198, %cst_144 {dimension_numbers = #tpu.dot_dimension_numbers<[1], [0], [0], [1], [0, 0, 1, 1], [], []>} : vector<128x128xbf16>, vector<128x128xbf16>, vector<128x128xf32> -> vector<128x128xf32>
    %200 = arith.addf %191, %199 : vector<128x128xf32>
    %c36_i32 = arith.constant 36 : i32
    %201 = arith.addi %1, %c36_i32 : i32
    %c0_145 = arith.constant 0 : index
    %202 = arith.index_cast %201 : i32 to index
    %c0_146 = arith.constant 0 : index
    %c0_147 = arith.constant 0 : index
    %203 = vector.load %arg2[%c0_145, %202, %c0_146, %c0_147] : memref<1x52x56x128xbf16, #tpu.memory_space<vmem>>, vector<1x8x16x128xbf16>
    %204 = vector.shape_cast %203 : vector<1x8x16x128xbf16> to vector<8x16x128xbf16>
    %205 = vector.shape_cast %204 : vector<8x16x128xbf16> to vector<128x128xbf16>
    %c22 = arith.constant 22 : index
    %c0_148 = arith.constant 0 : index
    %c0_149 = arith.constant 0 : index
    %206 = vector.load %arg3[%c22, %c0_148, %c0_149] : memref<25x128x128xbf16, #tpu.memory_space<vmem>>, vector<1x128x128xbf16>
    %207 = vector.shape_cast %206 : vector<1x128x128xbf16> to vector<128x128xbf16>
    %cst_150 = arith.constant dense<0.000000e+00> : vector<128x128xf32>
    %208 = tpu.matmul %205, %207, %cst_150 {dimension_numbers = #tpu.dot_dimension_numbers<[1], [0], [0], [1], [0, 0, 1, 1], [], []>} : vector<128x128xbf16>, vector<128x128xbf16>, vector<128x128xf32> -> vector<128x128xf32>
    %209 = arith.addf %200, %208 : vector<128x128xf32>
    %c36_i32_151 = arith.constant 36 : i32
    %210 = arith.addi %1, %c36_i32_151 : i32
    %c0_152 = arith.constant 0 : index
    %211 = arith.index_cast %210 : i32 to index
    %c18_153 = arith.constant 18 : index
    %c0_154 = arith.constant 0 : index
    %212 = vector.load %arg2[%c0_152, %211, %c18_153, %c0_154] : memref<1x52x56x128xbf16, #tpu.memory_space<vmem>>, vector<1x8x16x128xbf16>
    %213 = vector.shape_cast %212 : vector<1x8x16x128xbf16> to vector<8x16x128xbf16>
    %214 = vector.shape_cast %213 : vector<8x16x128xbf16> to vector<128x128xbf16>
    %c23 = arith.constant 23 : index
    %c0_155 = arith.constant 0 : index
    %c0_156 = arith.constant 0 : index
    %215 = vector.load %arg3[%c23, %c0_155, %c0_156] : memref<25x128x128xbf16, #tpu.memory_space<vmem>>, vector<1x128x128xbf16>
    %216 = vector.shape_cast %215 : vector<1x128x128xbf16> to vector<128x128xbf16>
    %cst_157 = arith.constant dense<0.000000e+00> : vector<128x128xf32>
    %217 = tpu.matmul %214, %216, %cst_157 {dimension_numbers = #tpu.dot_dimension_numbers<[1], [0], [0], [1], [0, 0, 1, 1], [], []>} : vector<128x128xbf16>, vector<128x128xbf16>, vector<128x128xf32> -> vector<128x128xf32>
    %218 = arith.addf %209, %217 : vector<128x128xf32>
    %c36_i32_158 = arith.constant 36 : i32
    %219 = arith.addi %1, %c36_i32_158 : i32
    %c0_159 = arith.constant 0 : index
    %220 = arith.index_cast %219 : i32 to index
    %c36_160 = arith.constant 36 : index
    %c0_161 = arith.constant 0 : index
    %221 = vector.load %arg2[%c0_159, %220, %c36_160, %c0_161] : memref<1x52x56x128xbf16, #tpu.memory_space<vmem>>, vector<1x8x16x128xbf16>
    %222 = vector.shape_cast %221 : vector<1x8x16x128xbf16> to vector<8x16x128xbf16>
    %223 = vector.shape_cast %222 : vector<8x16x128xbf16> to vector<128x128xbf16>
    %c24_162 = arith.constant 24 : index
    %c0_163 = arith.constant 0 : index
    %c0_164 = arith.constant 0 : index
    %224 = vector.load %arg3[%c24_162, %c0_163, %c0_164] : memref<25x128x128xbf16, #tpu.memory_space<vmem>>, vector<1x128x128xbf16>
    %225 = vector.shape_cast %224 : vector<1x128x128xbf16> to vector<128x128xbf16>
    %cst_165 = arith.constant dense<0.000000e+00> : vector<128x128xf32>
    %226 = tpu.matmul %223, %225, %cst_165 {dimension_numbers = #tpu.dot_dimension_numbers<[1], [0], [0], [1], [0, 0, 1, 1], [], []>} : vector<128x128xbf16>, vector<128x128xbf16>, vector<128x128xf32> -> vector<128x128xf32>
    %227 = arith.addf %218, %226 : vector<128x128xf32>
    %c0_166 = arith.constant 0 : index
    %c0_167 = arith.constant 0 : index
    %c0_168 = arith.constant 0 : index
    %228 = vector.load %arg4[%c0_166, %c0_167, %c0_168] : memref<1x1x128xf32, #tpu.memory_space<vmem>>, vector<1x1x128xf32>
    %229 = vector.shape_cast %228 : vector<1x1x128xf32> to vector<1x128xf32>
    %230 = vector.broadcast %229 : vector<1x128xf32> to vector<128x128xf32>
    %231 = arith.addf %227, %230 : vector<128x128xf32>
    %232 = vector.shape_cast %231 : vector<128x128xf32> to vector<8x16x128xf32>
    %c0_169 = arith.constant 0 : index
    %c0_170 = arith.constant 0 : index
    %c0_171 = arith.constant 0 : index
    %c0_172 = arith.constant 0 : index
    %233 = vector.load %arg5[%c0_169, %c0_170, %c0_171, %c0_172] : memref<1x8x16x128xf32, #tpu.memory_space<vmem>>, vector<1x8x16x128xf32>
    %234 = vector.shape_cast %233 : vector<1x8x16x128xf32> to vector<8x16x128xf32>
    %235 = vector.shape_cast %232 : vector<8x16x128xf32> to vector<1x8x16x128xf32>
    tpu.vector_store %arg5[%c0_169, %c0_170, %c0_171, %c0_172], %235 {strides = array<i32>} : memref<1x8x16x128xf32, #tpu.memory_space<vmem>>, vector<1x8x16x128xf32>,
    return
  }
  func.func @transform_0(%arg0: i32, %arg1: i32) -> (i32, i32, i32, i32) {
    %c0_i32 = arith.constant 0 : i32
    %c0_i32_0 = arith.constant 0 : i32
    %c0_i32_1 = arith.constant 0 : i32
    %c0_i32_2 = arith.constant 0 : i32
    return %arg0, %c0_i32, %c0_i32_0, %c0_i32_1 : i32, i32, i32, i32
  }
  func.func @transform_1(%arg0: i32, %arg1: i32) -> (i32, i32, i32) {
    %c0_i32 = arith.constant 0 : i32
    %c0_i32_0 = arith.constant 0 : i32
    %c0_i32_1 = arith.constant 0 : i32
    %c0_i32_2 = arith.constant 0 : i32
    return %c0_i32, %c0_i32_0, %c0_i32_1 : i32, i32, i32
  }
  func.func @transform_2(%arg0: i32, %arg1: i32) -> (i32, i32, i32) {
    %c0_i32 = arith.constant 0 : i32
    %c0_i32_0 = arith.constant 0 : i32
    %c0_i32_1 = arith.constant 0 : i32
    return %arg0, %c0_i32, %c0_i32_0 : i32, i32, i32
  }
  func.func @transform_3(%arg0: i32, %arg1: i32) -> (i32, i32, i32, i32) {
    %c0_i32 = arith.constant 0 : i32
    %c0_i32_0 = arith.constant 0 : i32
    %c0_i32_1 = arith.constant 0 : i32
    return %arg0, %arg1, %c0_i32, %c0_i32_0 : i32, i32, i32, i32
  }
}

</mosaic_0001>

<llo_original>
// kernel: tpu_custom_call.1
$region0: #{tpu_custom_call.1}
  #allocation0 [shape = 'u32[]', space=smem, size = 0x4, offset = 0x4, fixed_abs, tag = 'smem constant byte address 0x4 - core index']
  #allocation1 [shape = 'u32[72,128]{1,0:T(1,128)}', space=vmem, size = 0x9000, scoped, tag = 'internal scratch']
  %s0 = inlined_call_operand.hbm [shape: bf16[2,52,56,128], index: 0, kind: input, shape index: {}]
  %s1 = inlined_call_operand.hbm [shape: bf16[25,128,128], index: 1, kind: input, shape index: {}]
  %s2 = inlined_call_operand.hbm [shape: f32[2,1,128], index: 2, kind: input, shape index: {}]
  %s3 = inlined_call_operand.hbm [shape: f32[2,16,16,128], index: 3, kind: output, shape index: {}]
  %s4 = sld [smem:[#allocation0]]
  $region57: #{tpu_custom_call.1} parent=0
    _
  %s6 = ssub.s32 1, %s4
  %s7 = scalar_select 0, %s6, %s4
  $region1: #{tpu_custom_call.1} parent=0
    #allocation2 [shape = 'u8[1490944]{0}', space=vmem, size = 0x16c000, scoped, tag = 'input window, operand 0']
    #allocation3 [shape = 's32[2]{0}', space=sflag, size = 0x8, scoped, tag = 'scoped memory for tpu_custom_call.1']
    #allocation4 [shape = 's32[2]{0}', space=sflag, size = 0x8, scoped, tag = 'scoped memory for tpu_custom_call.1']
    #allocation5 [shape = 'u8[819200]{0}', space=vmem, size = 0xc8000, scoped, tag = 'input window, operand 1, single buffered']
    #allocation6 [shape = 's32[1]{0}', space=sflag, size = 0x4, scoped, tag = 'scoped memory for tpu_custom_call.1']
    #allocation7 [shape = 'u8[1024]{0}', space=vmem, size = 0x400, scoped, tag = 'input window, operand 2']
    #allocation8 [shape = 'u8[131072]{0}', space=vmem, size = 0x20000, scoped, tag = 'output window, operand 0']
    %8 = vsyncpa [#allocation3], 0
    %s9 = scalar_lea.sflag [#allocation3], 1
    %10 = vsyncpa %s9, 0
    %11 = vsyncpa [#allocation6], 0
    %12 = vsyncpa [#allocation4], 0
    %s13 = scalar_lea.sflag [#allocation4], 1
    %14 = vsyncpa %s13, 0
    loop: start=0, step=1, limit=6
    $region2: #{tpu_custom_call.1} parent=1 // loop_pre_header
      _
    $region3: #{tpu_custom_call.1} parent=1 // loop_header
      %s16 = sphi 0, %s20
      %p17 = scmp.ge.s32.totalorder %s16, 6
      %s23 = sphi 0, %s35
      %s24 = sphi 0, %s31
      %s25 = sphi 0, %s23
      %s26 = sphi 0, %s24
      %s27 = sphi 0, %s25
      %s28 = sphi 0, %s26
      %s38 = sphi 0, %s40
      %s41 = sphi 0, %s38
      %s42 = sphi 0, %s41
      %s58 = sphi 0, %s42
      %s62 = sphi 0, %s62
      %s64 = sphi 0, %s62
      %s65 = sphi 0, %s64
      %s79 = sphi 0, %s65
      %s85 = sphi 0, %s87
      %s88 = sphi 0, %s85
      %s89 = sphi 0, %s88
      %s105 = sphi 0, %s89
      %s113 = sphi 0, %s115
      %s116 = sphi 0, %s113
      %s117 = sphi 0, %s116
      %s133 = sphi 0, %s117
    $region4: #{tpu_custom_call.1} parent=1 // loop_header_branch
      %19 = sbr.rel (%p17) target = $region8
    $region5: #{tpu_custom_call.1} parent=1 // loop_body
      %s21 = ssub.s32 %s16, 1
      %s22 = ssub.s32 %s16, 2
      %s29 = sadd.s32 1, %s24
      %p30 = scmp.ge.s32.totalorder %s29, 2
      %s31 = scalar_select %p30, 0, %s29
      %s32 = sadd.s32 1, %s23
      %s33 = scalar_select %p30, %s32, %s23
      %p34 = scmp.ge.s32.totalorder %s33, 2
      %s35 = scalar_select %p34, 0, %s33
      %s36 = ssub.s32 %s23, %s35
      %p37 = scmp.eq.s32.totalorder %s36, 0
      %s39 = sadd.s32 %s38, 1
      %s40 = scalar_select %p37, %s38, %s39
      %p43 = pneg %p37
      %p44 = scmp.eq.s32.totalorder %s16, 3
      %p45 = por %p43, %p44
      %p46 = scmp.ne.s32.totalorder %s38, %s41
      %p47 = scmp.eq.s32.totalorder %s16, 0
      %p48 = por %p46, %p47
      %p49 = scmp.ne.s32.totalorder %s38, %s41
      %p50 = scmp.eq.s32.totalorder %s21, 3
      %p51 = por %p49, %p50
      %p52 = scmp.ne.s32.totalorder %s41, %s42
      %p53 = scmp.eq.s32.totalorder %s21, 0
      %p54 = por %p52, %p53
      %p55 = scmp.ne.s32.totalorder %s41, %s42
      %p56 = scmp.eq.s32.totalorder %s22, 3
      %p57 = por %p55, %p56
      %p59 = scmp.ne.s32.totalorder %s42, %s58
      %p60 = scmp.eq.s32.totalorder %s22, 0
      %p61 = por %p59, %p60
      %s63 = sadd.s32 %s62, 1
      %p66 = scmp.eq.s32.totalorder %s16, 3
      %p67 = scmp.ne.s32.totalorder %s62, %s64
      %p68 = scmp.eq.s32.totalorder %s16, 0
      %p69 = por %p67, %p68
      %p70 = scmp.ne.s32.totalorder %s62, %s64
      %p71 = scmp.eq.s32.totalorder %s21, 3
      %p72 = por %p70, %p71
      %p73 = scmp.ne.s32.totalorder %s64, %s65
      %p74 = scmp.eq.s32.totalorder %s21, 0
      %p75 = por %p73, %p74
      %p76 = scmp.ne.s32.totalorder %s64, %s65
      %p77 = scmp.eq.s32.totalorder %s22, 3
      %p78 = por %p76, %p77
      %p80 = scmp.ne.s32.totalorder %s65, %s79
      %p81 = scmp.eq.s32.totalorder %s22, 0
      %p82 = por %p80, %p81
      %s83 = ssub.s32 %s23, %s35
      %p84 = scmp.eq.s32.totalorder %s83, 0
      %s86 = sadd.s32 %s85, 1
      %s87 = scalar_select %p84, %s85, %s86
      %p90 = pneg %p84
      %p91 = scmp.eq.s32.totalorder %s16, 3
      %p92 = por %p90, %p91
      %p93 = scmp.ne.s32.totalorder %s85, %s88
      %p94 = scmp.eq.s32.totalorder %s16, 0
      %p95 = por %p93, %p94
      %p96 = scmp.ne.s32.totalorder %s85, %s88
      %p97 = scmp.eq.s32.totalorder %s21, 3
      %p98 = por %p96, %p97
      %p99 = scmp.ne.s32.totalorder %s88, %s89
      %p100 = scmp.eq.s32.totalorder %s21, 0
      %p101 = por %p99, %p100
      %p102 = scmp.ne.s32.totalorder %s88, %s89
      %p103 = scmp.eq.s32.totalorder %s22, 3
      %p104 = por %p102, %p103
      %p106 = scmp.ne.s32.totalorder %s89, %s105
      %p107 = scmp.eq.s32.totalorder %s22, 0
      %p108 = por %p106, %p107
      %s109 = ssub.s32 %s23, %s35
      %s110 = ssub.s32 %s24, %s31
      %s111 = sor.u32 %s109, %s110
      %p112 = scmp.eq.s32.totalorder %s111, 0
      %s114 = sadd.s32 %s113, 1
      %s115 = scalar_select %p112, %s113, %s114
      %p118 = pneg %p112
      %p119 = scmp.eq.s32.totalorder %s16, 3
      %p120 = por %p118, %p119
      %p121 = scmp.ne.s32.totalorder %s113, %s116
      %p122 = scmp.eq.s32.totalorder %s16, 0
      %p123 = por %p121, %p122
      %p124 = scmp.ne.s32.totalorder %s113, %s116
      %p125 = scmp.eq.s32.totalorder %s21, 3
      %p126 = por %p124, %p125
      %p127 = scmp.ne.s32.totalorder %s116, %s117
      %p128 = scmp.eq.s32.totalorder %s21, 0
      %p129 = por %p127, %p128
      %p130 = scmp.ne.s32.totalorder %s116, %s117
      %p131 = scmp.eq.s32.totalorder %s22, 3
      %p132 = por %p130, %p131
      %p134 = scmp.ne.s32.totalorder %s117, %s133
      %p135 = scmp.eq.s32.totalorder %s22, 0
      %p136 = por %p134, %p135
      %p137 = scmp.le.s32.totalorder 1, %s16
      %p138 = scmp.lt.s32.totalorder %s16, 5
      %p139 = pnand %p137, %p138
      %p140 = pneg %p139
      // Predicated region
      $region9: #{tpu_custom_call.1} parent=5 // pred_check
        _
      $region10: #{tpu_custom_call.1} parent=5 // pred_check_branch
        %142 = sbr.rel (%p139) target = $region12
      $region11: #{tpu_custom_call.1} parent=5 // pred_region
        %s143 = ssub.s32 %s16, 1
        // Predicated region
        $region13: #{tpu_custom_call.1} parent=11 // pred_check
          %p144 = pneg %p75
        $region14: #{tpu_custom_call.1} parent=11 // pred_check_branch
          %146 = sbr.rel (%p144) target = $region16
        $region15: #{tpu_custom_call.1} parent=11 // pred_region
          %148 = vsyncadd [#allocation6], 0
          %s149 = sshll.u32 %s1, 4
          %s150 = int_to_ptr.hbm [resolvable:$true] %s149
          %s151 = sshll.u32 [#allocation5], 4
          %s152 = int_to_ptr.vmem [resolvable:$true] %s151
          %157 = dma.hbm_to_vmem [thread:$0]  %s150, 25600, %s152, [#allocation6], 64, 64, 4
        $region16: #{tpu_custom_call.1} parent=11 // pred_fallthru
          _
      $region12: #{tpu_custom_call.1} parent=5 // pred_fallthru
        _
      %p158 = scmp.lt.s32.totalorder %s16, 4
      // Predicated region
      $region17: #{tpu_custom_call.1} parent=5 // pred_check
        %p159 = pneg %p158
      $region18: #{tpu_custom_call.1} parent=5 // pred_check_branch
        %161 = sbr.rel (%p159) target = $region20
      $region19: #{tpu_custom_call.1} parent=5 // pred_region
        // Predicated region
        $region21: #{tpu_custom_call.1} parent=19 // pred_check
          %p162 = pneg %p48
        $region22: #{tpu_custom_call.1} parent=19 // pred_check_branch
          %164 = sbr.rel (%p162) target = $region24
        $region23: #{tpu_custom_call.1} parent=19 // pred_region
          %s165 = sand.u32 %s16, 1
          %s166 = scalar_lea.sflag [#allocation3], %s165
          %s167 = sand.u32 %s38, 1
          %s168 = smul.addr %s167, 1456
          %s169 = scalar_lea.vmem [#allocation2], %s168
          %171 = vsyncadd %s166, 0
          %s172 = smul.addr %s23, 364
          %s173 = smul.addr %s172, 4
          %s174 = scalar_lea.hbm %s0, %s173
          %s175 = sshll.u32 %s174, 4
          %s176 = int_to_ptr.hbm [resolvable:$true] %s175
          %s177 = sshll.u32 %s169, 4
          %s178 = int_to_ptr.vmem [resolvable:$true] %s177
          %183 = dma.hbm_to_vmem [thread:$0]  %s176, 23296, %s178, %s166, 64, 64, 4
        $region24: #{tpu_custom_call.1} parent=19 // pred_fallthru
          _
        // Predicated region
        $region25: #{tpu_custom_call.1} parent=19 // pred_check
          %p184 = pneg %p95
        $region26: #{tpu_custom_call.1} parent=19 // pred_check_branch
          %186 = sbr.rel (%p184) target = $region28
        $region27: #{tpu_custom_call.1} parent=19 // pred_region
          %s187 = sand.u32 %s16, 1
          %s188 = scalar_lea.sflag [#allocation3], %s187
          %s189 = sand.u32 %s85, 1
          %s190 = scalar_lea.vmem [#allocation7], %s189
          %192 = vsyncadd %s188, 0
          %s193 = scalar_lea.hbm %s2, %s23
          %s195 = sshll.u32 %s193, 4
          %s196 = int_to_ptr.hbm [resolvable:$true] %s195
          %s197 = sshll.u32 %s190, 4
          %s198 = int_to_ptr.vmem [resolvable:$true] %s197
          %200 = dma.hbm_to_vmem [thread:$0]  %s196, 16, %s198, %s188
        $region28: #{tpu_custom_call.1} parent=19 // pred_fallthru
          _
      $region20: #{tpu_custom_call.1} parent=5 // pred_fallthru
        _
      %p201 = scmp.le.s32.totalorder 1, %s16
      %p202 = scmp.lt.s32.totalorder %s16, 5
      %p203 = pnand %p201, %p202
      %p204 = pneg %p203
      // Predicated region
      $region29: #{tpu_custom_call.1} parent=5 // pred_check
        _
      $region30: #{tpu_custom_call.1} parent=5 // pred_check_branch
        %206 = sbr.rel (%p203) target = $region32
      $region31: #{tpu_custom_call.1} parent=5 // pred_region
        %s207 = ssub.s32 %s16, 1
        %s208 = sand.u32 %s21, 1
        %s209 = scalar_lea.sflag [#allocation3], %s208
        %s210 = sand.u32 %s41, 1
        %s211 = smul.addr %s210, 1456
        %s212 = scalar_lea.vmem [#allocation2], %s211
        // Predicated region
        $region33: #{tpu_custom_call.1} parent=31 // pred_check
          %p213 = pneg %p54
        $region34: #{tpu_custom_call.1} parent=31 // pred_check_branch
          %215 = sbr.rel (%p213) target = $region36
        $region35: #{tpu_custom_call.1} parent=31 // pred_region
          %217 = dma.done %s209, 23296
        $region36: #{tpu_custom_call.1} parent=31 // pred_fallthru
          _
        // Predicated region
        $region37: #{tpu_custom_call.1} parent=31 // pred_check
          %p218 = pneg %p75
        $region38: #{tpu_custom_call.1} parent=31 // pred_check_branch
          %220 = sbr.rel (%p218) target = $region40
        $region39: #{tpu_custom_call.1} parent=31 // pred_region
          %222 = dma.done [#allocation6], 25600
        $region40: #{tpu_custom_call.1} parent=31 // pred_fallthru
          _
        %s223 = sand.u32 %s21, 1
        %s224 = scalar_lea.sflag [#allocation3], %s223
        %s225 = sand.u32 %s88, 1
        %s226 = scalar_lea.vmem [#allocation7], %s225
        // Predicated region
        $region41: #{tpu_custom_call.1} parent=31 // pred_check
          %p227 = pneg %p101
        $region42: #{tpu_custom_call.1} parent=31 // pred_check_branch
          %229 = sbr.rel (%p227) target = $region44
        $region43: #{tpu_custom_call.1} parent=31 // pred_region
          %231 = dma.done %s224, 16
        $region44: #{tpu_custom_call.1} parent=31 // pred_fallthru
          _
        %s232 = sand.u32 %s21, 1
        %s233 = scalar_lea.sflag [#allocation3], %s232
        %s234 = sand.u32 %s41, 1
        %s235 = smul.addr %s234, 1456
        %s236 = scalar_lea.vmem [#allocation2], %s235
        %p237 = pneg %p54
        %p238 = pneg %p51
        %p239 = pneg %p75
        %p240 = pneg %p72
        %s241 = sand.u32 %s21, 1
        %s242 = scalar_lea.sflag [#allocation3], %s241
        %s243 = sand.u32 %s88, 1
        %s244 = scalar_lea.vmem [#allocation7], %s243
        %p245 = pneg %p101
        %p246 = pneg %p98
        %p247 = pneg %p129
        %p248 = pneg %p126
        %s249 = sand.u32 %s116, 1
        %s250 = scalar_lea.sflag [#allocation4], %s249
        %s251 = sand.u32 %s116, 1
        %s252 = smul.addr %s251, 128
        %s253 = scalar_lea.vmem [#allocation8], %s252
        %s254 = smul.u32 8, %s26
        %s255 = smul.u32 %s26, 8
        %s256 = smul.u32 %s255, 7
        %s257 = smul.addr %s256, 4
        %s258 = scalar_lea.vmem %s212, %s257 [#allocation2]
        %v259 = vld [vmem:[%s258] sm:$0xf]
        %v260 = vld [vmem:[%s258 + $0x4] sm:$0xf]
        %v261 = vld [vmem:[%s258 + $0x1c] sm:$0xf]
        %v262 = vld [vmem:[%s258 + $0x20] sm:$0xf]
        %v263 = vld [vmem:[%s258 + $0x38] sm:$0xf]
        %v264 = vld [vmem:[%s258 + $0x3c] sm:$0xf]
        %v265 = vld [vmem:[%s258 + $0x54] sm:$0xf]
        %v266 = vld [vmem:[%s258 + $0x58] sm:$0xf]
        %v267 = vld [vmem:[%s258 + $0x70] sm:$0xf]
        %v268 = vld [vmem:[%s258 + $0x74] sm:$0xf]
        %v269 = vld [vmem:[%s258 + $0x8c] sm:$0xf]
        %v270 = vld [vmem:[%s258 + $0x90] sm:$0xf]
        %v271 = vld [vmem:[%s258 + $0xa8] sm:$0xf]
        %v272 = vld [vmem:[%s258 + $0xac] sm:$0xf]
        %v273 = vld [vmem:[%s258 + $0xc4] sm:$0xf]
        %v274 = vld [vmem:[%s258 + $0xc8] sm:$0xf]
        %v275 = vld [vmem:[#allocation5] sm:$0xf]
        %v276 = vld [vmem:[#allocation5 + $0x4] sm:$0xf]
        %v277 = vld [vmem:[#allocation5 + $0x8] sm:$0xf]
        %v278 = vld [vmem:[#allocation5 + $0xc] sm:$0xf]
        %v279 = vld [vmem:[#allocation5 + $0x10] sm:$0xf]
        %v280 = vld [vmem:[#allocation5 + $0x14] sm:$0xf]
        %v281 = vld [vmem:[#allocation5 + $0x18] sm:$0xf]
        %v282 = vld [vmem:[#allocation5 + $0x1c] sm:$0xf]
        %v283 = vld [vmem:[#allocation5 + $0x20] sm:$0xf]
        %v284 = vld [vmem:[#allocation5 + $0x24] sm:$0xf]
        %v285 = vld [vmem:[#allocation5 + $0x28] sm:$0xf]
        %v286 = vld [vmem:[#allocation5 + $0x2c] sm:$0xf]
        %v287 = vld [vmem:[#allocation5 + $0x30] sm:$0xf]
        %v288 = vld [vmem:[#allocation5 + $0x34] sm:$0xf]
        %v289 = vld [vmem:[#allocation5 + $0x38] sm:$0xf]
        %v290 = vld [vmem:[#allocation5 + $0x3c] sm:$0xf]
        %v291 = vld [vmem:[%s258 + $0x8] sm:$0xe]
        %v292 = vld [vmem:[%s258 + $0xc] sm:$0xf]
        %v293 = vld [vmem:[%s258 + $0x10] sm:$0x1]
        %v294 = vld [vmem:[%s258 + $0x24] sm:$0xe]
        %v295 = vld [vmem:[%s258 + $0x28] sm:$0xf]
        %v296 = vld [vmem:[%s258 + $0x2c] sm:$0x1]
        %v297 = vld [vmem:[%s258 + $0x40] sm:$0xe]
        %v298 = vld [vmem:[%s258 + $0x44] sm:$0xf]
        %v299 = vld [vmem:[%s258 + $0x48] sm:$0x1]
        %v300 = vld [vmem:[%s258 + $0x5c] sm:$0xe]
        %v301 = vld [vmem:[%s258 + $0x60] sm:$0xf]
        %v302 = vld [vmem:[%s258 + $0x64] sm:$0x1]
        %v303 = vld [vmem:[%s258 + $0x78] sm:$0xe]
        %v304 = vld [vmem:[%s258 + $0x7c] sm:$0xf]
        %v305 = vld [vmem:[%s258 + $0x80] sm:$0x1]
        %v306 = vld [vmem:[%s258 + $0x94] sm:$0xe]
        %v307 = vld [vmem:[%s258 + $0x98] sm:$0xf]
        %v308 = vld [vmem:[%s258 + $0x9c] sm:$0x1]
        %v309 = vld [vmem:[%s258 + $0xb0] sm:$0xe]
        %v310 = vld [vmem:[%s258 + $0xb4] sm:$0xf]
        %v311 = vld [vmem:[%s258 + $0xb8] sm:$0x1]
        %v312 = vld [vmem:[%s258 + $0xcc] sm:$0xe]
        %v313 = vld [vmem:[%s258 + $0xd0] sm:$0xf]
        %v314 = vld [vmem:[%s258 + $0xd4] sm:$0x1]
        %vm339 = vcmask 1042432
        %vm340 = vcmask 1046532
        %vm341 = vmor %vm339, %vm340
        %v342 = vrot.slane %v291, 5
        %v343 = vrot.slane %v342, 4
        %v344 = vrot.slane %v292, 5
        %v345 = vsel %vm341, %v343, %v344
        %v346 = vrot.slane %v344, 4
        %v347 = vrot.slane %v293, 5
        %v348 = vsel %vm341, %v346, %v347
        %v349 = vrot.slane %v294, 5
        %v350 = vrot.slane %v349, 4
        %v351 = vrot.slane %v295, 5
        %v352 = vsel %vm341, %v350, %v351
        %v353 = vrot.slane %v351, 4
        %v354 = vrot.slane %v296, 5
        %v355 = vsel %vm341, %v353, %v354
        %v356 = vrot.slane %v297, 5
        %v357 = vrot.slane %v356, 4
        %v358 = vrot.slane %v298, 5
        %v359 = vsel %vm341, %v357, %v358
        %v360 = vrot.slane %v358, 4
        %v361 = vrot.slane %v299, 5
        %v362 = vsel %vm341, %v360, %v361
        %v363 = vrot.slane %v300, 5
        %v364 = vrot.slane %v363, 4
        %v365 = vrot.slane %v301, 5
        %v366 = vsel %vm341, %v364, %v365
        %v367 = vrot.slane %v365, 4
        %v368 = vrot.slane %v302, 5
        %v369 = vsel %vm341, %v367, %v368
        %v370 = vrot.slane %v303, 5
        %v371 = vrot.slane %v370, 4
        %v372 = vrot.slane %v304, 5
        %v373 = vsel %vm341, %v371, %v372
        %v374 = vrot.slane %v372, 4
        %v375 = vrot.slane %v305, 5
        %v376 = vsel %vm341, %v374, %v375
        %v377 = vrot.slane %v306, 5
        %v378 = vrot.slane %v377, 4
        %v379 = vrot.slane %v307, 5
        %v380 = vsel %vm341, %v378, %v379
        %v381 = vrot.slane %v379, 4
        %v382 = vrot.slane %v308, 5
        %v383 = vsel %vm341, %v381, %v382
        %v384 = vrot.slane %v309, 5
        %v385 = vrot.slane %v384, 4
        %v386 = vrot.slane %v310, 5
        %v387 = vsel %vm341, %v385, %v386
        %v388 = vrot.slane %v386, 4
        %v389 = vrot.slane %v311, 5
        %v390 = vsel %vm341, %v388, %v389
        %v391 = vrot.slane %v312, 5
        %v392 = vrot.slane %v391, 4
        %v393 = vrot.slane %v313, 5
        %v394 = vsel %vm341, %v392, %v393
        %v395 = vrot.slane %v393, 4
        %v396 = vrot.slane %v314, 5
        %v397 = vsel %vm341, %v395, %v396
        %s398 = scalar_lea.vmem [#allocation5], 64
        %v399 = vld [vmem:[%s398] sm:$0xf]
        %v400 = vld [vmem:[%s398 + $0x4] sm:$0xf]
        %v401 = vld [vmem:[%s398 + $0x8] sm:$0xf]
        %v402 = vld [vmem:[%s398 + $0xc] sm:$0xf]
        %v403 = vld [vmem:[%s398 + $0x10] sm:$0xf]
        %v404 = vld [vmem:[%s398 + $0x14] sm:$0xf]
        %v405 = vld [vmem:[%s398 + $0x18] sm:$0xf]
        %v406 = vld [vmem:[%s398 + $0x1c] sm:$0xf]
        %v407 = vld [vmem:[%s398 + $0x20] sm:$0xf]
        %v408 = vld [vmem:[%s398 + $0x24] sm:$0xf]
        %v409 = vld [vmem:[%s398 + $0x28] sm:$0xf]
        %v410 = vld [vmem:[%s398 + $0x2c] sm:$0xf]
        %v411 = vld [vmem:[%s398 + $0x30] sm:$0xf]
        %v412 = vld [vmem:[%s398 + $0x34] sm:$0xf]
        %v413 = vld [vmem:[%s398 + $0x38] sm:$0xf]
        %v414 = vld [vmem:[%s398 + $0x3c] sm:$0xf]
        %v415 = vunpack.c.l.b16 %v345
        %v416 = vunpack.c.l.b16 %v348
        %v417 = vunpack.c.l.b16 %v352
        %v418 = vunpack.c.l.b16 %v355
        %v419 = vunpack.c.l.b16 %v359
        %v420 = vunpack.c.l.b16 %v362
        %v421 = vunpack.c.l.b16 %v366
        %v422 = vunpack.c.l.b16 %v369
        %v423 = vunpack.c.l.b16 %v373
        %v424 = vunpack.c.l.b16 %v376
        %v425 = vunpack.c.l.b16 %v380
        %v426 = vunpack.c.l.b16 %v383
        %v427 = vunpack.c.l.b16 %v387
        %v428 = vunpack.c.l.b16 %v390
        %v429 = vunpack.c.l.b16 %v394
        %v430 = vunpack.c.l.b16 %v397
        %v431 = vpack.c.b16 %v416, %v415
        %v432 = vpack.c.b16 %v418, %v417
        %v433 = vpack.c.b16 %v420, %v419
        %v434 = vpack.c.b16 %v422, %v421
        %v435 = vpack.c.b16 %v424, %v423
        %v436 = vpack.c.b16 %v426, %v425
        %v437 = vpack.c.b16 %v428, %v427
        %v438 = vpack.c.b16 %v430, %v429
        %v463 = vunpack.c.l.b16 %v399
        %v464 = vunpack.c.l.b16 %v400
        %v465 = vunpack.c.l.b16 %v401
        %v466 = vunpack.c.l.b16 %v402
        %v467 = vunpack.c.l.b16 %v403
        %v468 = vunpack.c.l.b16 %v404
        %v469 = vunpack.c.l.b16 %v405
        %v470 = vunpack.c.l.b16 %v406
        %v471 = vunpack.c.l.b16 %v407
        %v472 = vunpack.c.l.b16 %v408
        %v473 = vunpack.c.l.b16 %v409
        %v474 = vunpack.c.l.b16 %v410
        %v475 = vunpack.c.l.b16 %v411
        %v476 = vunpack.c.l.b16 %v412
        %v477 = vunpack.c.l.b16 %v413
        %v478 = vunpack.c.l.b16 %v414
        %v479 = vpack.c.b16 %v464, %v463
        %v480 = vpack.c.b16 %v466, %v465
        %v481 = vpack.c.b16 %v468, %v467
        %v482 = vpack.c.b16 %v470, %v469
        %v483 = vpack.c.b16 %v472, %v471
        %v484 = vpack.c.b16 %v474, %v473
        %v485 = vpack.c.b16 %v476, %v475
        %v486 = vpack.c.b16 %v478, %v477
        %495 = vmatpush.bf16.msra.mxu0 %v486
        %496 = vmatpush.bf16.msra.mxu0 %v485
        %497 = vmatpush.bf16.msra.mxu0 %v484
        %498 = vmatpush.bf16.msra.mxu0 %v483
        %499 = vmatpush.bf16.msra.mxu0 %v482
        %500 = vmatpush.bf16.msra.mxu0 %v481
        %501 = vmatpush.bf16.msra.mxu0 %v480
        %502 = vmatpush.bf16.msra.mxu0 %v479
        %503 = vmatmul.bf16.gmra.mxu0 %v431
        %v504 = vpop.f32.mrf.mxu0
        %v505 = vadd.f32 0.0, %v504
        %v506 = vpop.f32.mrf.mxu0
        %v507 = vadd.f32 0.0, %v506
        %508 = vmatmul.bf16.gmra.mxu0 %v432
        %v509 = vpop.f32.mrf.mxu0
        %v510 = vadd.f32 0.0, %v509
        %v511 = vpop.f32.mrf.mxu0
        %v512 = vadd.f32 0.0, %v511
        %513 = vmatmul.bf16.gmra.mxu0 %v433
        %v514 = vpop.f32.mrf.mxu0
        %v515 = vadd.f32 0.0, %v514
        %v516 = vpop.f32.mrf.mxu0
        %v517 = vadd.f32 0.0, %v516
        %518 = vmatmul.bf16.gmra.mxu0 %v434
        %v519 = vpop.f32.mrf.mxu0
        %v520 = vadd.f32 0.0, %v519
        %v521 = vpop.f32.mrf.mxu0
        %v522 = vadd.f32 0.0, %v521
        %523 = vmatmul.bf16.gmra.mxu0 %v435
        %v524 = vpop.f32.mrf.mxu0
        %v525 = vadd.f32 0.0, %v524
        %v526 = vpop.f32.mrf.mxu0
        %v527 = vadd.f32 0.0, %v526
        %528 = vmatmul.bf16.gmra.mxu0 %v436
        %v529 = vpop.f32.mrf.mxu0
        %v530 = vadd.f32 0.0, %v529
        %v531 = vpop.f32.mrf.mxu0
        %v532 = vadd.f32 0.0, %v531
        %533 = vmatmul.bf16.gmra.mxu0 %v437
        %v534 = vpop.f32.mrf.mxu0
        %v535 = vadd.f32 0.0, %v534
        %v536 = vpop.f32.mrf.mxu0
        %v537 = vadd.f32 0.0, %v536
        %538 = vmatmul.bf16.gmra.mxu0 %v438
        %v539 = vpop.f32.mrf.mxu0
        %v540 = vadd.f32 0.0, %v539
        %v541 = vpop.f32.mrf.mxu0
        %v542 = vadd.f32 0.0, %v541
        %543 = vdwg.mxu0
        %v560 = vunpack.c.l.b16 %v259
        %v561 = vunpack.c.l.b16 %v260
        %v562 = vunpack.c.l.b16 %v261
        %v563 = vunpack.c.l.b16 %v262
        %v564 = vunpack.c.l.b16 %v263
        %v565 = vunpack.c.l.b16 %v264
        %v566 = vunpack.c.l.b16 %v265
        %v567 = vunpack.c.l.b16 %v266
        %v568 = vunpack.c.l.b16 %v267
        %v569 = vunpack.c.l.b16 %v268
        %v570 = vunpack.c.l.b16 %v269
        %v571 = vunpack.c.l.b16 %v270
        %v572 = vunpack.c.l.b16 %v271
        %v573 = vunpack.c.l.b16 %v272
        %v574 = vunpack.c.l.b16 %v273
        %v575 = vunpack.c.l.b16 %v274
        %v576 = vpack.c.b16 %v561, %v560
        %v577 = vpack.c.b16 %v563, %v562
        %v578 = vpack.c.b16 %v565, %v564
        %v579 = vpack.c.b16 %v567, %v566
        %v580 = vpack.c.b16 %v569, %v568
        %v581 = vpack.c.b16 %v571, %v570
        %v582 = vpack.c.b16 %v573, %v572
        %v583 = vpack.c.b16 %v575, %v574
        %v608 = vunpack.c.l.b16 %v275
        %v609 = vunpack.c.l.b16 %v276
        %v610 = vunpack.c.l.b16 %v277
        %v611 = vunpack.c.l.b16 %v278
        %v612 = vunpack.c.l.b16 %v279
        %v613 = vunpack.c.l.b16 %v280
        %v614 = vunpack.c.l.b16 %v281
        %v615 = vunpack.c.l.b16 %v282
        %v616 = vunpack.c.l.b16 %v283
        %v617 = vunpack.c.l.b16 %v284
        %v618 = vunpack.c.l.b16 %v285
        %v619 = vunpack.c.l.b16 %v286
        %v620 = vunpack.c.l.b16 %v287
        %v621 = vunpack.c.l.b16 %v288
        %v622 = vunpack.c.l.b16 %v289
        %v623 = vunpack.c.l.b16 %v290
        %v624 = vpack.c.b16 %v609, %v608
        %v625 = vpack.c.b16 %v611, %v610
        %v626 = vpack.c.b16 %v613, %v612
        %v627 = vpack.c.b16 %v615, %v614
        %v628 = vpack.c.b16 %v617, %v616
        %v629 = vpack.c.b16 %v619, %v618
        %v630 = vpack.c.b16 %v621, %v620
        %v631 = vpack.c.b16 %v623, %v622
        %640 = vmatpush.bf16.msra.mxu0 %v631
        %641 = vmatpush.bf16.msra.mxu0 %v630
        %642 = vmatpush.bf16.msra.mxu0 %v629
        %643 = vmatpush.bf16.msra.mxu0 %v628
        %644 = vmatpush.bf16.msra.mxu0 %v627
        %645 = vmatpush.bf16.msra.mxu0 %v626
        %646 = vmatpush.bf16.msra.mxu0 %v625
        %647 = vmatpush.bf16.msra.mxu0 %v624
        %648 = vmatmul.bf16.gmra.mxu0 %v576
        %v649 = vpop.f32.mrf.mxu0
        %v650 = vadd.f32 %v505, %v649
        %v651 = vpop.f32.mrf.mxu0
        %v652 = vadd.f32 %v507, %v651
        %653 = vmatmul.bf16.gmra.mxu0 %v577
        %v654 = vpop.f32.mrf.mxu0
        %v655 = vadd.f32 %v510, %v654
        %v656 = vpop.f32.mrf.mxu0
        %v657 = vadd.f32 %v512, %v656
        %658 = vmatmul.bf16.gmra.mxu0 %v578
        %v659 = vpop.f32.mrf.mxu0
        %v660 = vadd.f32 %v515, %v659
        %v661 = vpop.f32.mrf.mxu0
        %v662 = vadd.f32 %v517, %v661
        %663 = vmatmul.bf16.gmra.mxu0 %v579
        %v664 = vpop.f32.mrf.mxu0
        %v665 = vadd.f32 %v520, %v664
        %v666 = vpop.f32.mrf.mxu0
        %v667 = vadd.f32 %v522, %v666
        %668 = vmatmul.bf16.gmra.mxu0 %v580
        %v669 = vpop.f32.mrf.mxu0
        %v670 = vadd.f32 %v525, %v669
        %v671 = vpop.f32.mrf.mxu0
        %v672 = vadd.f32 %v527, %v671
        %673 = vmatmul.bf16.gmra.mxu0 %v581
        %v674 = vpop.f32.mrf.mxu0
        %v675 = vadd.f32 %v530, %v674
        %v676 = vpop.f32.mrf.mxu0
        %v677 = vadd.f32 %v532, %v676
        %678 = vmatmul.bf16.gmra.mxu0 %v582
        %v679 = vpop.f32.mrf.mxu0
        %v680 = vadd.f32 %v535, %v679
        %v681 = vpop.f32.mrf.mxu0
        %v682 = vadd.f32 %v537, %v681
        %683 = vmatmul.bf16.gmra.mxu0 %v583
        %v684 = vpop.f32.mrf.mxu0
        %v685 = vadd.f32 %v540, %v684
        %v686 = vpop.f32.mrf.mxu0
        %v687 = vadd.f32 %v542, %v686
        %688 = vdwg.mxu0
        %v689 = vld [vmem:[%s258 + $0x10] sm:$0xc]
        %v690 = vld [vmem:[%s258 + $0x14] sm:$0xf]
        %v691 = vld [vmem:[%s258 + $0x18] sm:$0x3]
        %v692 = vld [vmem:[%s258 + $0x2c] sm:$0xc]
        %v693 = vld [vmem:[%s258 + $0x30] sm:$0xf]
        %v694 = vld [vmem:[%s258 + $0x34] sm:$0x3]
        %v695 = vld [vmem:[%s258 + $0x48] sm:$0xc]
        %v696 = vld [vmem:[%s258 + $0x4c] sm:$0xf]
        %v697 = vld [vmem:[%s258 + $0x50] sm:$0x3]
        %v698 = vld [vmem:[%s258 + $0x64] sm:$0xc]
        %v699 = vld [vmem:[%s258 + $0x68] sm:$0xf]
        %v700 = vld [vmem:[%s258 + $0x6c] sm:$0x3]
        %v701 = vld [vmem:[%s258 + $0x80] sm:$0xc]
        %v702 = vld [vmem:[%s258 + $0x84] sm:$0xf]
        %v703 = vld [vmem:[%s258 + $0x88] sm:$0x3]
        %v704 = vld [vmem:[%s258 + $0x9c] sm:$0xc]
        %v705 = vld [vmem:[%s258 + $0xa0] sm:$0xf]
        %v706 = vld [vmem:[%s258 + $0xa4] sm:$0x3]
        %v707 = vld [vmem:[%s258 + $0xb8] sm:$0xc]
        %v708 = vld [vmem:[%s258 + $0xbc] sm:$0xf]
        %v709 = vld [vmem:[%s258 + $0xc0] sm:$0x3]
        %v710 = vld [vmem:[%s258 + $0xd4] sm:$0xc]
        %v711 = vld [vmem:[%s258 + $0xd8] sm:$0xf]
        %v712 = vld [vmem:[%s258 + $0xdc] sm:$0x3]
        %vm737 = vcmask 1041408
        %vm738 = vcmask 1045508
        %vm739 = vmor %vm737, %vm738
        %v740 = vrot.slane %v689, 6
        %v741 = vrot.slane %v740, 4
        %v742 = vrot.slane %v690, 6
        %v743 = vsel %vm739, %v741, %v742
        %v744 = vrot.slane %v742, 4
        %v745 = vrot.slane %v691, 6
        %v746 = vsel %vm739, %v744, %v745
        %v747 = vrot.slane %v692, 6
        %v748 = vrot.slane %v747, 4
        %v749 = vrot.slane %v693, 6
        %v750 = vsel %vm739, %v748, %v749
        %v751 = vrot.slane %v749, 4
        %v752 = vrot.slane %v694, 6
        %v753 = vsel %vm739, %v751, %v752
        %v754 = vrot.slane %v695, 6
        %v755 = vrot.slane %v754, 4
        %v756 = vrot.slane %v696, 6
        %v757 = vsel %vm739, %v755, %v756
        %v758 = vrot.slane %v756, 4
        %v759 = vrot.slane %v697, 6
        %v760 = vsel %vm739, %v758, %v759
        %v761 = vrot.slane %v698, 6
        %v762 = vrot.slane %v761, 4
        %v763 = vrot.slane %v699, 6
        %v764 = vsel %vm739, %v762, %v763
        %v765 = vrot.slane %v763, 4
        %v766 = vrot.slane %v700, 6
        %v767 = vsel %vm739, %v765, %v766
        %v768 = vrot.slane %v701, 6
        %v769 = vrot.slane %v768, 4
        %v770 = vrot.slane %v702, 6
        %v771 = vsel %vm739, %v769, %v770
        %v772 = vrot.slane %v770, 4
        %v773 = vrot.slane %v703, 6
        %v774 = vsel %vm739, %v772, %v773
        %v775 = vrot.slane %v704, 6
        %v776 = vrot.slane %v775, 4
        %v777 = vrot.slane %v705, 6
        %v778 = vsel %vm739, %v776, %v777
        %v779 = vrot.slane %v777, 4
        %v780 = vrot.slane %v706, 6
        %v781 = vsel %vm739, %v779, %v780
        %v782 = vrot.slane %v707, 6
        %v783 = vrot.slane %v782, 4
        %v784 = vrot.slane %v708, 6
        %v785 = vsel %vm739, %v783, %v784
        %v786 = vrot.slane %v784, 4
        %v787 = vrot.slane %v709, 6
        %v788 = vsel %vm739, %v786, %v787
        %v789 = vrot.slane %v710, 6
        %v790 = vrot.slane %v789, 4
        %v791 = vrot.slane %v711, 6
        %v792 = vsel %vm739, %v790, %v791
        %v793 = vrot.slane %v791, 4
        %v794 = vrot.slane %v712, 6
        %v795 = vsel %vm739, %v793, %v794
        %s796 = scalar_lea.vmem [#allocation5], 128
        %v797 = vld [vmem:[%s796] sm:$0xf]
        %v798 = vld [vmem:[%s796 + $0x4] sm:$0xf]
        %v799 = vld [vmem:[%s796 + $0x8] sm:$0xf]
        %v800 = vld [vmem:[%s796 + $0xc] sm:$0xf]
        %v801 = vld [vmem:[%s796 + $0x10] sm:$0xf]
        %v802 = vld [vmem:[%s796 + $0x14] sm:$0xf]
        %v803 = vld [vmem:[%s796 + $0x18] sm:$0xf]
        %v804 = vld [vmem:[%s796 + $0x1c] sm:$0xf]
        %v805 = vld [vmem:[%s796 + $0x20] sm:$0xf]
        %v806 = vld [vmem:[%s796 + $0x24] sm:$0xf]
        %v807 = vld [vmem:[%s796 + $0x28] sm:$0xf]
        %v808 = vld [vmem:[%s796 + $0x2c] sm:$0xf]
        %v809 = vld [vmem:[%s796 + $0x30] sm:$0xf]
        %v810 = vld [vmem:[%s796 + $0x34] sm:$0xf]
        %v811 = vld [vmem:[%s796 + $0x38] sm:$0xf]
        %v812 = vld [vmem:[%s796 + $0x3c] sm:$0xf]
        %v813 = vunpack.c.l.b16 %v743
        %v814 = vunpack.c.l.b16 %v746
        %v815 = vunpack.c.l.b16 %v750
        %v816 = vunpack.c.l.b16 %v753
        %v817 = vunpack.c.l.b16 %v757
        %v818 = vunpack.c.l.b16 %v760
        %v819 = vunpack.c.l.b16 %v764
        %v820 = vunpack.c.l.b16 %v767
        %v821 = vunpack.c.l.b16 %v771
        %v822 = vunpack.c.l.b16 %v774
        %v823 = vunpack.c.l.b16 %v778
        %v824 = vunpack.c.l.b16 %v781
        %v825 = vunpack.c.l.b16 %v785
        %v826 = vunpack.c.l.b16 %v788
        %v827 = vunpack.c.l.b16 %v792
        %v828 = vunpack.c.l.b16 %v795
        %v829 = vpack.c.b16 %v814, %v813
        %v830 = vpack.c.b16 %v816, %v815
        %v831 = vpack.c.b16 %v818, %v817
        %v832 = vpack.c.b16 %v820, %v819
        %v833 = vpack.c.b16 %v822, %v821
        %v834 = vpack.c.b16 %v824, %v823
        %v835 = vpack.c.b16 %v826, %v825
        %v836 = vpack.c.b16 %v828, %v827
        %v861 = vunpack.c.l.b16 %v797
        %v862 = vunpack.c.l.b16 %v798
        %v863 = vunpack.c.l.b16 %v799
        %v864 = vunpack.c.l.b16 %v800
        %v865 = vunpack.c.l.b16 %v801
        %v866 = vunpack.c.l.b16 %v802
        %v867 = vunpack.c.l.b16 %v803
        %v868 = vunpack.c.l.b16 %v804
        %v869 = vunpack.c.l.b16 %v805
        %v870 = vunpack.c.l.b16 %v806
        %v871 = vunpack.c.l.b16 %v807
        %v872 = vunpack.c.l.b16 %v808
        %v873 = vunpack.c.l.b16 %v809
        %v874 = vunpack.c.l.b16 %v810
        %v875 = vunpack.c.l.b16 %v811
        %v876 = vunpack.c.l.b16 %v812
        %v877 = vpack.c.b16 %v862, %v861
        %v878 = vpack.c.b16 %v864, %v863
        %v879 = vpack.c.b16 %v866, %v865
        %v880 = vpack.c.b16 %v868, %v867
        %v881 = vpack.c.b16 %v870, %v869
        %v882 = vpack.c.b16 %v872, %v871
        %v883 = vpack.c.b16 %v874, %v873
        %v884 = vpack.c.b16 %v876, %v875
        %893 = vmatpush.bf16.msra.mxu0 %v884
        %894 = vmatpush.bf16.msra.mxu0 %v883
        %895 = vmatpush.bf16.msra.mxu0 %v882
        %896 = vmatpush.bf16.msra.mxu0 %v881
        %897 = vmatpush.bf16.msra.mxu0 %v880
        %898 = vmatpush.bf16.msra.mxu0 %v879
        %899 = vmatpush.bf16.msra.mxu0 %v878
        %900 = vmatpush.bf16.msra.mxu0 %v877
        %901 = vmatmul.bf16.gmra.mxu0 %v829
        %v902 = vpop.f32.mrf.mxu0
        %v903 = vadd.f32 0.0, %v902
        %v904 = vpop.f32.mrf.mxu0
        %v905 = vadd.f32 0.0, %v904
        %906 = vmatmul.bf16.gmra.mxu0 %v830
        %v907 = vpop.f32.mrf.mxu0
        %v908 = vadd.f32 0.0, %v907
        %v909 = vpop.f32.mrf.mxu0
        %v910 = vadd.f32 0.0, %v909
        %911 = vmatmul.bf16.gmra.mxu0 %v831
        %v912 = vpop.f32.mrf.mxu0
        %v913 = vadd.f32 0.0, %v912
        %v914 = vpop.f32.mrf.mxu0
        %v915 = vadd.f32 0.0, %v914
        %916 = vmatmul.bf16.gmra.mxu0 %v832
        %v917 = vpop.f32.mrf.mxu0
        %v918 = vadd.f32 0.0, %v917
        %v919 = vpop.f32.mrf.mxu0
        %v920 = vadd.f32 0.0, %v919
        %921 = vmatmul.bf16.gmra.mxu0 %v833
        %v922 = vpop.f32.mrf.mxu0
        %v923 = vadd.f32 0.0, %v922
        %v924 = vpop.f32.mrf.mxu0
        %v925 = vadd.f32 0.0, %v924
        %926 = vmatmul.bf16.gmra.mxu0 %v834
        %v927 = vpop.f32.mrf.mxu0
        %v928 = vadd.f32 0.0, %v927
        %v929 = vpop.f32.mrf.mxu0
        %v930 = vadd.f32 0.0, %v929
        %931 = vmatmul.bf16.gmra.mxu0 %v835
        %v932 = vpop.f32.mrf.mxu0
        %v933 = vadd.f32 0.0, %v932
        %v934 = vpop.f32.mrf.mxu0
        %v935 = vadd.f32 0.0, %v934
        %936 = vmatmul.bf16.gmra.mxu0 %v836
        %v937 = vpop.f32.mrf.mxu0
        %v938 = vadd.f32 0.0, %v937
        %v939 = vpop.f32.mrf.mxu0
        %v940 = vadd.f32 0.0, %v939
        %941 = vdwg.mxu0
        %v942 = vadd.f32 %v650, %v903
        %v943 = vadd.f32 %v652, %v905
        %v944 = vadd.f32 %v655, %v908
        %v945 = vadd.f32 %v657, %v910
        %v946 = vadd.f32 %v660, %v913
        %v947 = vadd.f32 %v662, %v915
        %v948 = vadd.f32 %v665, %v918
        %v949 = vadd.f32 %v667, %v920
        %v950 = vadd.f32 %v670, %v923
        %v951 = vadd.f32 %v672, %v925
        %v952 = vadd.f32 %v675, %v928
        %v953 = vadd.f32 %v677, %v930
        %v954 = vadd.f32 %v680, %v933
        %v955 = vadd.f32 %v682, %v935
        %v956 = vadd.f32 %v685, %v938
        %v957 = vadd.f32 %v687, %v940
        %s958 = sadd.s32 %s255, 6
        %s959 = smul.u32 %s958, 7
        %s960 = smul.addr %s959, 4
        %s961 = scalar_lea.vmem %s212, %s960 [#allocation2]
        %v962 = vld [vmem:[%s961] sm:$0x8]
        %v963 = vld [vmem:[%s961 + $0x4] sm:$0xf]
        %v964 = vld [vmem:[%s961 + $0x8] sm:$0x7]
        %v965 = vld [vmem:[%s961 + $0x1c] sm:$0x8]
        %v966 = vld [vmem:[%s961 + $0x20] sm:$0xf]
        %v967 = vld [vmem:[%s961 + $0x24] sm:$0x7]
        %v968 = vld [vmem:[%s961 + $0x38] sm:$0x8]
        %v969 = vld [vmem:[%s961 + $0x3c] sm:$0xf]
        %v970 = vld [vmem:[%s961 + $0x40] sm:$0x7]
        %v971 = vld [vmem:[%s961 + $0x54] sm:$0x8]
        %v972 = vld [vmem:[%s961 + $0x58] sm:$0xf]
        %v973 = vld [vmem:[%s961 + $0x5c] sm:$0x7]
        %v974 = vld [vmem:[%s961 + $0x70] sm:$0x8]
        %v975 = vld [vmem:[%s961 + $0x74] sm:$0xf]
        %v976 = vld [vmem:[%s961 + $0x78] sm:$0x7]
        %v977 = vld [vmem:[%s961 + $0x8c] sm:$0x8]
        %v978 = vld [vmem:[%s961 + $0x90] sm:$0xf]
        %v979 = vld [vmem:[%s961 + $0x94] sm:$0x7]
        %v980 = vld [vmem:[%s961 + $0xa8] sm:$0x8]
        %v981 = vld [vmem:[%s961 + $0xac] sm:$0xf]
        %v982 = vld [vmem:[%s961 + $0xb0] sm:$0x7]
        %v983 = vld [vmem:[%s961 + $0xc4] sm:$0x8]
        %v984 = vld [vmem:[%s961 + $0xc8] sm:$0xf]
        %v985 = vld [vmem:[%s961 + $0xcc] sm:$0x7]
        %vm1010 = vcmask 1040384
        %vm1011 = vcmask 1044484
        %vm1012 = vmor %vm1010, %vm1011
        %v1013 = vrot.slane %v962, 7
        %v1014 = vrot.slane %v1013, 4
        %v1015 = vrot.slane %v963, 7
        %v1016 = vsel %vm1012, %v1014, %v1015
        %v1017 = vrot.slane %v1015, 4
        %v1018 = vrot.slane %v964, 7
        %v1019 = vsel %vm1012, %v1017, %v1018
        %v1020 = vrot.slane %v965, 7
        %v1021 = vrot.slane %v1020, 4
        %v1022 = vrot.slane %v966, 7
        %v1023 = vsel %vm1012, %v1021, %v1022
        %v1024 = vrot.slane %v1022, 4
        %v1025 = vrot.slane %v967, 7
        %v1026 = vsel %vm1012, %v1024, %v1025
        %v1027 = vrot.slane %v968, 7
        %v1028 = vrot.slane %v1027, 4
        %v1029 = vrot.slane %v969, 7
        %v1030 = vsel %vm1012, %v1028, %v1029
        %v1031 = vrot.slane %v1029, 4
        %v1032 = vrot.slane %v970, 7
        %v1033 = vsel %vm1012, %v1031, %v1032
        %v1034 = vrot.slane %v971, 7
        %v1035 = vrot.slane %v1034, 4
        %v1036 = vrot.slane %v972, 7
        %v1037 = vsel %vm1012, %v1035, %v1036
        %v1038 = vrot.slane %v1036, 4
        %v1039 = vrot.slane %v973, 7
        %v1040 = vsel %vm1012, %v1038, %v1039
        %v1041 = vrot.slane %v974, 7
        %v1042 = vrot.slane %v1041, 4
        %v1043 = vrot.slane %v975, 7
        %v1044 = vsel %vm1012, %v1042, %v1043
        %v1045 = vrot.slane %v1043, 4
        %v1046 = vrot.slane %v976, 7
        %v1047 = vsel %vm1012, %v1045, %v1046
        %v1048 = vrot.slane %v977, 7
        %v1049 = vrot.slane %v1048, 4
        %v1050 = vrot.slane %v978, 7
        %v1051 = vsel %vm1012, %v1049, %v1050
        %v1052 = vrot.slane %v1050, 4
        %v1053 = vrot.slane %v979, 7
        %v1054 = vsel %vm1012, %v1052, %v1053
        %v1055 = vrot.slane %v980, 7
        %v1056 = vrot.slane %v1055, 4
        %v1057 = vrot.slane %v981, 7
        %v1058 = vsel %vm1012, %v1056, %v1057
        %v1059 = vrot.slane %v1057, 4
        %v1060 = vrot.slane %v982, 7
        %v1061 = vsel %vm1012, %v1059, %v1060
        %v1062 = vrot.slane %v983, 7
        %v1063 = vrot.slane %v1062, 4
        %v1064 = vrot.slane %v984, 7
        %v1065 = vsel %vm1012, %v1063, %v1064
        %v1066 = vrot.slane %v1064, 4
        %v1067 = vrot.slane %v985, 7
        %v1068 = vsel %vm1012, %v1066, %v1067
        %s1069 = scalar_lea.vmem [#allocation5], 192
        %v1070 = vld [vmem:[%s1069] sm:$0xf]
        %v1071 = vld [vmem:[%s1069 + $0x4] sm:$0xf]
        %v1072 = vld [vmem:[%s1069 + $0x8] sm:$0xf]
        %v1073 = vld [vmem:[%s1069 + $0xc] sm:$0xf]
        %v1074 = vld [vmem:[%s1069 + $0x10] sm:$0xf]
        %v1075 = vld [vmem:[%s1069 + $0x14] sm:$0xf]
        %v1076 = vld [vmem:[%s1069 + $0x18] sm:$0xf]
        %v1077 = vld [vmem:[%s1069 + $0x1c] sm:$0xf]
        %v1078 = vld [vmem:[%s1069 + $0x20] sm:$0xf]
        %v1079 = vld [vmem:[%s1069 + $0x24] sm:$0xf]
        %v1080 = vld [vmem:[%s1069 + $0x28] sm:$0xf]
        %v1081 = vld [vmem:[%s1069 + $0x2c] sm:$0xf]
        %v1082 = vld [vmem:[%s1069 + $0x30] sm:$0xf]
        %v1083 = vld [vmem:[%s1069 + $0x34] sm:$0xf]
        %v1084 = vld [vmem:[%s1069 + $0x38] sm:$0xf]
        %v1085 = vld [vmem:[%s1069 + $0x3c] sm:$0xf]
        %v1086 = vunpack.c.l.b16 %v1016
        %v1087 = vunpack.c.l.b16 %v1019
        %v1088 = vunpack.c.l.b16 %v1023
        %v1089 = vunpack.c.l.b16 %v1026
        %v1090 = vunpack.c.l.b16 %v1030
        %v1091 = vunpack.c.l.b16 %v1033
        %v1092 = vunpack.c.l.b16 %v1037
        %v1093 = vunpack.c.l.b16 %v1040
        %v1094 = vunpack.c.l.b16 %v1044
        %v1095 = vunpack.c.l.b16 %v1047
        %v1096 = vunpack.c.l.b16 %v1051
        %v1097 = vunpack.c.l.b16 %v1054
        %v1098 = vunpack.c.l.b16 %v1058
        %v1099 = vunpack.c.l.b16 %v1061
        %v1100 = vunpack.c.l.b16 %v1065
        %v1101 = vunpack.c.l.b16 %v1068
        %v1102 = vpack.c.b16 %v1087, %v1086
        %v1103 = vpack.c.b16 %v1089, %v1088
        %v1104 = vpack.c.b16 %v1091, %v1090
        %v1105 = vpack.c.b16 %v1093, %v1092
        %v1106 = vpack.c.b16 %v1095, %v1094
        %v1107 = vpack.c.b16 %v1097, %v1096
        %v1108 = vpack.c.b16 %v1099, %v1098
        %v1109 = vpack.c.b16 %v1101, %v1100
        %v1134 = vunpack.c.l.b16 %v1070
        %v1135 = vunpack.c.l.b16 %v1071
        %v1136 = vunpack.c.l.b16 %v1072
        %v1137 = vunpack.c.l.b16 %v1073
        %v1138 = vunpack.c.l.b16 %v1074
        %v1139 = vunpack.c.l.b16 %v1075
        %v1140 = vunpack.c.l.b16 %v1076
        %v1141 = vunpack.c.l.b16 %v1077
        %v1142 = vunpack.c.l.b16 %v1078
        %v1143 = vunpack.c.l.b16 %v1079
        %v1144 = vunpack.c.l.b16 %v1080
        %v1145 = vunpack.c.l.b16 %v1081
        %v1146 = vunpack.c.l.b16 %v1082
        %v1147 = vunpack.c.l.b16 %v1083
        %v1148 = vunpack.c.l.b16 %v1084
        %v1149 = vunpack.c.l.b16 %v1085
        %v1150 = vpack.c.b16 %v1135, %v1134
        %v1151 = vpack.c.b16 %v1137, %v1136
        %v1152 = vpack.c.b16 %v1139, %v1138
        %v1153 = vpack.c.b16 %v1141, %v1140
        %v1154 = vpack.c.b16 %v1143, %v1142
        %v1155 = vpack.c.b16 %v1145, %v1144
        %v1156 = vpack.c.b16 %v1147, %v1146
        %v1157 = vpack.c.b16 %v1149, %v1148
        %1166 = vmatpush.bf16.msra.mxu0 %v1157
        %1167 = vmatpush.bf16.msra.mxu0 %v1156
        %1168 = vmatpush.bf16.msra.mxu0 %v1155
        %1169 = vmatpush.bf16.msra.mxu0 %v1154
        %1170 = vmatpush.bf16.msra.mxu0 %v1153
        %1171 = vmatpush.bf16.msra.mxu0 %v1152
        %1172 = vmatpush.bf16.msra.mxu0 %v1151
        %1173 = vmatpush.bf16.msra.mxu0 %v1150
        %1174 = vmatmul.bf16.gmra.mxu0 %v1102
        %v1175 = vpop.f32.mrf.mxu0
        %v1176 = vadd.f32 0.0, %v1175
        %v1177 = vpop.f32.mrf.mxu0
        %v1178 = vadd.f32 0.0, %v1177
        %1179 = vmatmul.bf16.gmra.mxu0 %v1103
        %v1180 = vpop.f32.mrf.mxu0
        %v1181 = vadd.f32 0.0, %v1180
        %v1182 = vpop.f32.mrf.mxu0
        %v1183 = vadd.f32 0.0, %v1182
        %1184 = vmatmul.bf16.gmra.mxu0 %v1104
        %v1185 = vpop.f32.mrf.mxu0
        %v1186 = vadd.f32 0.0, %v1185
        %v1187 = vpop.f32.mrf.mxu0
        %v1188 = vadd.f32 0.0, %v1187
        %1189 = vmatmul.bf16.gmra.mxu0 %v1105
        %v1190 = vpop.f32.mrf.mxu0
        %v1191 = vadd.f32 0.0, %v1190
        %v1192 = vpop.f32.mrf.mxu0
        %v1193 = vadd.f32 0.0, %v1192
        %1194 = vmatmul.bf16.gmra.mxu0 %v1106
        %v1195 = vpop.f32.mrf.mxu0
        %v1196 = vadd.f32 0.0, %v1195
        %v1197 = vpop.f32.mrf.mxu0
        %v1198 = vadd.f32 0.0, %v1197
        %1199 = vmatmul.bf16.gmra.mxu0 %v1107
        %v1200 = vpop.f32.mrf.mxu0
        %v1201 = vadd.f32 0.0, %v1200
        %v1202 = vpop.f32.mrf.mxu0
        %v1203 = vadd.f32 0.0, %v1202
        %1204 = vmatmul.bf16.gmra.mxu0 %v1108
        %v1205 = vpop.f32.mrf.mxu0
        %v1206 = vadd.f32 0.0, %v1205
        %v1207 = vpop.f32.mrf.mxu0
        %v1208 = vadd.f32 0.0, %v1207
        %1209 = vmatmul.bf16.gmra.mxu0 %v1109
        %v1210 = vpop.f32.mrf.mxu0
        %v1211 = vadd.f32 0.0, %v1210
        %v1212 = vpop.f32.mrf.mxu0
        %v1213 = vadd.f32 0.0, %v1212
        %1214 = vdwg.mxu0
        %v1215 = vadd.f32 %v942, %v1176
        %v1216 = vadd.f32 %v943, %v1178
        %v1217 = vadd.f32 %v944, %v1181
        %v1218 = vadd.f32 %v945, %v1183
        %v1219 = vadd.f32 %v946, %v1186
        %v1220 = vadd.f32 %v947, %v1188
        %v1221 = vadd.f32 %v948, %v1191
        %v1222 = vadd.f32 %v949, %v1193
        %v1223 = vadd.f32 %v950, %v1196
        %v1224 = vadd.f32 %v951, %v1198
        %v1225 = vadd.f32 %v952, %v1201
        %v1226 = vadd.f32 %v953, %v1203
        %v1227 = vadd.f32 %v954, %v1206
        %v1228 = vadd.f32 %v955, %v1208
        %v1229 = vadd.f32 %v956, %v1211
        %v1230 = vadd.f32 %v957, %v1213
        %v1231 = vld [vmem:[%s961 + $0x8] sm:$0xe]
        %v1232 = vld [vmem:[%s961 + $0xc] sm:$0xf]
        %v1233 = vld [vmem:[%s961 + $0x10] sm:$0x1]
        %v1234 = vld [vmem:[%s961 + $0x24] sm:$0xe]
        %v1235 = vld [vmem:[%s961 + $0x28] sm:$0xf]
        %v1236 = vld [vmem:[%s961 + $0x2c] sm:$0x1]
        %v1237 = vld [vmem:[%s961 + $0x40] sm:$0xe]
        %v1238 = vld [vmem:[%s961 + $0x44] sm:$0xf]
        %v1239 = vld [vmem:[%s961 + $0x48] sm:$0x1]
        %v1240 = vld [vmem:[%s961 + $0x5c] sm:$0xe]
        %v1241 = vld [vmem:[%s961 + $0x60] sm:$0xf]
        %v1242 = vld [vmem:[%s961 + $0x64] sm:$0x1]
        %v1243 = vld [vmem:[%s961 + $0x78] sm:$0xe]
        %v1244 = vld [vmem:[%s961 + $0x7c] sm:$0xf]
        %v1245 = vld [vmem:[%s961 + $0x80] sm:$0x1]
        %v1246 = vld [vmem:[%s961 + $0x94] sm:$0xe]
        %v1247 = vld [vmem:[%s961 + $0x98] sm:$0xf]
        %v1248 = vld [vmem:[%s961 + $0x9c] sm:$0x1]
        %v1249 = vld [vmem:[%s961 + $0xb0] sm:$0xe]
        %v1250 = vld [vmem:[%s961 + $0xb4] sm:$0xf]
        %v1251 = vld [vmem:[%s961 + $0xb8] sm:$0x1]
        %v1252 = vld [vmem:[%s961 + $0xcc] sm:$0xe]
        %v1253 = vld [vmem:[%s961 + $0xd0] sm:$0xf]
        %v1254 = vld [vmem:[%s961 + $0xd4] sm:$0x1]
        %v1279 = vrot.slane %v1231, 5
        %v1280 = vrot.slane %v1279, 4
        %v1281 = vrot.slane %v1232, 5
        %v1282 = vsel %vm341, %v1280, %v1281
        %v1283 = vrot.slane %v1281, 4
        %v1284 = vrot.slane %v1233, 5
        %v1285 = vsel %vm341, %v1283, %v1284
        %v1286 = vrot.slane %v1234, 5
        %v1287 = vrot.slane %v1286, 4
        %v1288 = vrot.slane %v1235, 5
        %v1289 = vsel %vm341, %v1287, %v1288
        %v1290 = vrot.slane %v1288, 4
        %v1291 = vrot.slane %v1236, 5
        %v1292 = vsel %vm341, %v1290, %v1291
        %v1293 = vrot.slane %v1237, 5
        %v1294 = vrot.slane %v1293, 4
        %v1295 = vrot.slane %v1238, 5
        %v1296 = vsel %vm341, %v1294, %v1295
        %v1297 = vrot.slane %v1295, 4
        %v1298 = vrot.slane %v1239, 5
        %v1299 = vsel %vm341, %v1297, %v1298
        %v1300 = vrot.slane %v1240, 5
        %v1301 = vrot.slane %v1300, 4
        %v1302 = vrot.slane %v1241, 5
        %v1303 = vsel %vm341, %v1301, %v1302
        %v1304 = vrot.slane %v1302, 4
        %v1305 = vrot.slane %v1242, 5
        %v1306 = vsel %vm341, %v1304, %v1305
        %v1307 = vrot.slane %v1243, 5
        %v1308 = vrot.slane %v1307, 4
        %v1309 = vrot.slane %v1244, 5
        %v1310 = vsel %vm341, %v1308, %v1309
        %v1311 = vrot.slane %v1309, 4
        %v1312 = vrot.slane %v1245, 5
        %v1313 = vsel %vm341, %v1311, %v1312
        %v1314 = vrot.slane %v1246, 5
        %v1315 = vrot.slane %v1314, 4
        %v1316 = vrot.slane %v1247, 5
        %v1317 = vsel %vm341, %v1315, %v1316
        %v1318 = vrot.slane %v1316, 4
        %v1319 = vrot.slane %v1248, 5
        %v1320 = vsel %vm341, %v1318, %v1319
        %v1321 = vrot.slane %v1249, 5
        %v1322 = vrot.slane %v1321, 4
        %v1323 = vrot.slane %v1250, 5
        %v1324 = vsel %vm341, %v1322, %v1323
        %v1325 = vrot.slane %v1323, 4
        %v1326 = vrot.slane %v1251, 5
        %v1327 = vsel %vm341, %v1325, %v1326
        %v1328 = vrot.slane %v1252, 5
        %v1329 = vrot.slane %v1328, 4
        %v1330 = vrot.slane %v1253, 5
        %v1331 = vsel %vm341, %v1329, %v1330
        %v1332 = vrot.slane %v1330, 4
        %v1333 = vrot.slane %v1254, 5
        %v1334 = vsel %vm341, %v1332, %v1333
        %s1335 = scalar_lea.vmem [#allocation5], 256
        %v1336 = vld [vmem:[%s1335] sm:$0xf]
        %v1337 = vld [vmem:[%s1335 + $0x4] sm:$0xf]
        %v1338 = vld [vmem:[%s1335 + $0x8] sm:$0xf]
        %v1339 = vld [vmem:[%s1335 + $0xc] sm:$0xf]
        %v1340 = vld [vmem:[%s1335 + $0x10] sm:$0xf]
        %v1341 = vld [vmem:[%s1335 + $0x14] sm:$0xf]
        %v1342 = vld [vmem:[%s1335 + $0x18] sm:$0xf]
        %v1343 = vld [vmem:[%s1335 + $0x1c] sm:$0xf]
        %v1344 = vld [vmem:[%s1335 + $0x20] sm:$0xf]
        %v1345 = vld [vmem:[%s1335 + $0x24] sm:$0xf]
        %v1346 = vld [vmem:[%s1335 + $0x28] sm:$0xf]
        %v1347 = vld [vmem:[%s1335 + $0x2c] sm:$0xf]
        %v1348 = vld [vmem:[%s1335 + $0x30] sm:$0xf]
        %v1349 = vld [vmem:[%s1335 + $0x34] sm:$0xf]
        %v1350 = vld [vmem:[%s1335 + $0x38] sm:$0xf]
        %v1351 = vld [vmem:[%s1335 + $0x3c] sm:$0xf]
        %v1352 = vunpack.c.l.b16 %v1282
        %v1353 = vunpack.c.l.b16 %v1285
        %v1354 = vunpack.c.l.b16 %v1289
        %v1355 = vunpack.c.l.b16 %v1292
        %v1356 = vunpack.c.l.b16 %v1296
        %v1357 = vunpack.c.l.b16 %v1299
        %v1358 = vunpack.c.l.b16 %v1303
        %v1359 = vunpack.c.l.b16 %v1306
        %v1360 = vunpack.c.l.b16 %v1310
        %v1361 = vunpack.c.l.b16 %v1313
        %v1362 = vunpack.c.l.b16 %v1317
        %v1363 = vunpack.c.l.b16 %v1320
        %v1364 = vunpack.c.l.b16 %v1324
        %v1365 = vunpack.c.l.b16 %v1327
        %v1366 = vunpack.c.l.b16 %v1331
        %v1367 = vunpack.c.l.b16 %v1334
        %v1368 = vpack.c.b16 %v1353, %v1352
        %v1369 = vpack.c.b16 %v1355, %v1354
        %v1370 = vpack.c.b16 %v1357, %v1356
        %v1371 = vpack.c.b16 %v1359, %v1358
        %v1372 = vpack.c.b16 %v1361, %v1360
        %v1373 = vpack.c.b16 %v1363, %v1362
        %v1374 = vpack.c.b16 %v1365, %v1364
        %v1375 = vpack.c.b16 %v1367, %v1366
        %v1400 = vunpack.c.l.b16 %v1336
        %v1401 = vunpack.c.l.b16 %v1337
        %v1402 = vunpack.c.l.b16 %v1338
        %v1403 = vunpack.c.l.b16 %v1339
        %v1404 = vunpack.c.l.b16 %v1340
        %v1405 = vunpack.c.l.b16 %v1341
        %v1406 = vunpack.c.l.b16 %v1342
        %v1407 = vunpack.c.l.b16 %v1343
        %v1408 = vunpack.c.l.b16 %v1344
        %v1409 = vunpack.c.l.b16 %v1345
        %v1410 = vunpack.c.l.b16 %v1346
        %v1411 = vunpack.c.l.b16 %v1347
        %v1412 = vunpack.c.l.b16 %v1348
        %v1413 = vunpack.c.l.b16 %v1349
        %v1414 = vunpack.c.l.b16 %v1350
        %v1415 = vunpack.c.l.b16 %v1351
        %v1416 = vpack.c.b16 %v1401, %v1400
        %v1417 = vpack.c.b16 %v1403, %v1402
        %v1418 = vpack.c.b16 %v1405, %v1404
        %v1419 = vpack.c.b16 %v1407, %v1406
        %v1420 = vpack.c.b16 %v1409, %v1408
        %v1421 = vpack.c.b16 %v1411, %v1410
        %v1422 = vpack.c.b16 %v1413, %v1412
        %v1423 = vpack.c.b16 %v1415, %v1414
        %1432 = vmatpush.bf16.msra.mxu0 %v1423
        %1433 = vmatpush.bf16.msra.mxu0 %v1422
        %1434 = vmatpush.bf16.msra.mxu0 %v1421
        %1435 = vmatpush.bf16.msra.mxu0 %v1420
        %1436 = vmatpush.bf16.msra.mxu0 %v1419
        %1437 = vmatpush.bf16.msra.mxu0 %v1418
        %1438 = vmatpush.bf16.msra.mxu0 %v1417
        %1439 = vmatpush.bf16.msra.mxu0 %v1416
        %1440 = vmatmul.bf16.gmra.mxu0 %v1368
        %v1441 = vpop.f32.mrf.mxu0
        %v1442 = vadd.f32 0.0, %v1441
        %v1443 = vpop.f32.mrf.mxu0
        %v1444 = vadd.f32 0.0, %v1443
        %1445 = vmatmul.bf16.gmra.mxu0 %v1369
        %v1446 = vpop.f32.mrf.mxu0
        %v1447 = vadd.f32 0.0, %v1446
        %v1448 = vpop.f32.mrf.mxu0
        %v1449 = vadd.f32 0.0, %v1448
        %1450 = vmatmul.bf16.gmra.mxu0 %v1370
        %v1451 = vpop.f32.mrf.mxu0
        %v1452 = vadd.f32 0.0, %v1451
        %v1453 = vpop.f32.mrf.mxu0
        %v1454 = vadd.f32 0.0, %v1453
        %1455 = vmatmul.bf16.gmra.mxu0 %v1371
        %v1456 = vpop.f32.mrf.mxu0
        %v1457 = vadd.f32 0.0, %v1456
        %v1458 = vpop.f32.mrf.mxu0
        %v1459 = vadd.f32 0.0, %v1458
        %1460 = vmatmul.bf16.gmra.mxu0 %v1372
        %v1461 = vpop.f32.mrf.mxu0
        %v1462 = vadd.f32 0.0, %v1461
        %v1463 = vpop.f32.mrf.mxu0
        %v1464 = vadd.f32 0.0, %v1463
        %1465 = vmatmul.bf16.gmra.mxu0 %v1373
        %v1466 = vpop.f32.mrf.mxu0
        %v1467 = vadd.f32 0.0, %v1466
        %v1468 = vpop.f32.mrf.mxu0
        %v1469 = vadd.f32 0.0, %v1468
        %1470 = vmatmul.bf16.gmra.mxu0 %v1374
        %v1471 = vpop.f32.mrf.mxu0
        %v1472 = vadd.f32 0.0, %v1471
        %v1473 = vpop.f32.mrf.mxu0
        %v1474 = vadd.f32 0.0, %v1473
        %1475 = vmatmul.bf16.gmra.mxu0 %v1375
        %v1476 = vpop.f32.mrf.mxu0
        %v1477 = vadd.f32 0.0, %v1476
        %v1478 = vpop.f32.mrf.mxu0
        %v1479 = vadd.f32 0.0, %v1478
        %1480 = vdwg.mxu0
        %v1481 = vadd.f32 %v1215, %v1442
        %v1482 = vadd.f32 %v1216, %v1444
        %v1483 = vadd.f32 %v1217, %v1447
        %v1484 = vadd.f32 %v1218, %v1449
        %v1485 = vadd.f32 %v1219, %v1452
        %v1486 = vadd.f32 %v1220, %v1454
        %v1487 = vadd.f32 %v1221, %v1457
        %v1488 = vadd.f32 %v1222, %v1459
        %v1489 = vadd.f32 %v1223, %v1462
        %v1490 = vadd.f32 %v1224, %v1464
        %v1491 = vadd.f32 %v1225, %v1467
        %v1492 = vadd.f32 %v1226, %v1469
        %v1493 = vadd.f32 %v1227, %v1472
        %v1494 = vadd.f32 %v1228, %v1474
        %v1495 = vadd.f32 %v1229, %v1477
        %v1496 = vadd.f32 %v1230, %v1479
        %v1497 = vld [vmem:[%s961 + $0xc] sm:$0x8]
        %v1498 = vld [vmem:[%s961 + $0x10] sm:$0xf]
        %v1499 = vld [vmem:[%s961 + $0x14] sm:$0x7]
        %v1500 = vld [vmem:[%s961 + $0x28] sm:$0x8]
        %v1501 = vld [vmem:[%s961 + $0x2c] sm:$0xf]
        %v1502 = vld [vmem:[%s961 + $0x30] sm:$0x7]
        %v1503 = vld [vmem:[%s961 + $0x44] sm:$0x8]
        %v1504 = vld [vmem:[%s961 + $0x48] sm:$0xf]
        %v1505 = vld [vmem:[%s961 + $0x4c] sm:$0x7]
        %v1506 = vld [vmem:[%s961 + $0x60] sm:$0x8]
        %v1507 = vld [vmem:[%s961 + $0x64] sm:$0xf]
        %v1508 = vld [vmem:[%s961 + $0x68] sm:$0x7]
        %v1509 = vld [vmem:[%s961 + $0x7c] sm:$0x8]
        %v1510 = vld [vmem:[%s961 + $0x80] sm:$0xf]
        %v1511 = vld [vmem:[%s961 + $0x84] sm:$0x7]
        %v1512 = vld [vmem:[%s961 + $0x98] sm:$0x8]
        %v1513 = vld [vmem:[%s961 + $0x9c] sm:$0xf]
        %v1514 = vld [vmem:[%s961 + $0xa0] sm:$0x7]
        %v1515 = vld [vmem:[%s961 + $0xb4] sm:$0x8]
        %v1516 = vld [vmem:[%s961 + $0xb8] sm:$0xf]
        %v1517 = vld [vmem:[%s961 + $0xbc] sm:$0x7]
        %v1518 = vld [vmem:[%s961 + $0xd0] sm:$0x8]
        %v1519 = vld [vmem:[%s961 + $0xd4] sm:$0xf]
        %v1520 = vld [vmem:[%s961 + $0xd8] sm:$0x7]
        %v1545 = vrot.slane %v1497, 7
        %v1546 = vrot.slane %v1545, 4
        %v1547 = vrot.slane %v1498, 7
        %v1548 = vsel %vm1012, %v1546, %v1547
        %v1549 = vrot.slane %v1547, 4
        %v1550 = vrot.slane %v1499, 7
        %v1551 = vsel %vm1012, %v1549, %v1550
        %v1552 = vrot.slane %v1500, 7
        %v1553 = vrot.slane %v1552, 4
        %v1554 = vrot.slane %v1501, 7
        %v1555 = vsel %vm1012, %v1553, %v1554
        %v1556 = vrot.slane %v1554, 4
        %v1557 = vrot.slane %v1502, 7
        %v1558 = vsel %vm1012, %v1556, %v1557
        %v1559 = vrot.slane %v1503, 7
        %v1560 = vrot.slane %v1559, 4
        %v1561 = vrot.slane %v1504, 7
        %v1562 = vsel %vm1012, %v1560, %v1561
        %v1563 = vrot.slane %v1561, 4
        %v1564 = vrot.slane %v1505, 7
        %v1565 = vsel %vm1012, %v1563, %v1564
        %v1566 = vrot.slane %v1506, 7
        %v1567 = vrot.slane %v1566, 4
        %v1568 = vrot.slane %v1507, 7
        %v1569 = vsel %vm1012, %v1567, %v1568
        %v1570 = vrot.slane %v1568, 4
        %v1571 = vrot.slane %v1508, 7
        %v1572 = vsel %vm1012, %v1570, %v1571
        %v1573 = vrot.slane %v1509, 7
        %v1574 = vrot.slane %v1573, 4
        %v1575 = vrot.slane %v1510, 7
        %v1576 = vsel %vm1012, %v1574, %v1575
        %v1577 = vrot.slane %v1575, 4
        %v1578 = vrot.slane %v1511, 7
        %v1579 = vsel %vm1012, %v1577, %v1578
        %v1580 = vrot.slane %v1512, 7
        %v1581 = vrot.slane %v1580, 4
        %v1582 = vrot.slane %v1513, 7
        %v1583 = vsel %vm1012, %v1581, %v1582
        %v1584 = vrot.slane %v1582, 4
        %v1585 = vrot.slane %v1514, 7
        %v1586 = vsel %vm1012, %v1584, %v1585
        %v1587 = vrot.slane %v1515, 7
        %v1588 = vrot.slane %v1587, 4
        %v1589 = vrot.slane %v1516, 7
        %v1590 = vsel %vm1012, %v1588, %v1589
        %v1591 = vrot.slane %v1589, 4
        %v1592 = vrot.slane %v1517, 7
        %v1593 = vsel %vm1012, %v1591, %v1592
        %v1594 = vrot.slane %v1518, 7
        %v1595 = vrot.slane %v1594, 4
        %v1596 = vrot.slane %v1519, 7
        %v1597 = vsel %vm1012, %v1595, %v1596
        %v1598 = vrot.slane %v1596, 4
        %v1599 = vrot.slane %v1520, 7
        %v1600 = vsel %vm1012, %v1598, %v1599
        %s1601 = scalar_lea.vmem [#allocation5], 320
        %v1602 = vld [vmem:[%s1601] sm:$0xf]
        %v1603 = vld [vmem:[%s1601 + $0x4] sm:$0xf]
        %v1604 = vld [vmem:[%s1601 + $0x8] sm:$0xf]
        %v1605 = vld [vmem:[%s1601 + $0xc] sm:$0xf]
        %v1606 = vld [vmem:[%s1601 + $0x10] sm:$0xf]
        %v1607 = vld [vmem:[%s1601 + $0x14] sm:$0xf]
        %v1608 = vld [vmem:[%s1601 + $0x18] sm:$0xf]
        %v1609 = vld [vmem:[%s1601 + $0x1c] sm:$0xf]
        %v1610 = vld [vmem:[%s1601 + $0x20] sm:$0xf]
        %v1611 = vld [vmem:[%s1601 + $0x24] sm:$0xf]
        %v1612 = vld [vmem:[%s1601 + $0x28] sm:$0xf]
        %v1613 = vld [vmem:[%s1601 + $0x2c] sm:$0xf]
        %v1614 = vld [vmem:[%s1601 + $0x30] sm:$0xf]
        %v1615 = vld [vmem:[%s1601 + $0x34] sm:$0xf]
        %v1616 = vld [vmem:[%s1601 + $0x38] sm:$0xf]
        %v1617 = vld [vmem:[%s1601 + $0x3c] sm:$0xf]
        %v1618 = vunpack.c.l.b16 %v1548
        %v1619 = vunpack.c.l.b16 %v1551
        %v1620 = vunpack.c.l.b16 %v1555
        %v1621 = vunpack.c.l.b16 %v1558
        %v1622 = vunpack.c.l.b16 %v1562
        %v1623 = vunpack.c.l.b16 %v1565
        %v1624 = vunpack.c.l.b16 %v1569
        %v1625 = vunpack.c.l.b16 %v1572
        %v1626 = vunpack.c.l.b16 %v1576
        %v1627 = vunpack.c.l.b16 %v1579
        %v1628 = vunpack.c.l.b16 %v1583
        %v1629 = vunpack.c.l.b16 %v1586
        %v1630 = vunpack.c.l.b16 %v1590
        %v1631 = vunpack.c.l.b16 %v1593
        %v1632 = vunpack.c.l.b16 %v1597
        %v1633 = vunpack.c.l.b16 %v1600
        %v1634 = vpack.c.b16 %v1619, %v1618
        %v1635 = vpack.c.b16 %v1621, %v1620
        %v1636 = vpack.c.b16 %v1623, %v1622
        %v1637 = vpack.c.b16 %v1625, %v1624
        %v1638 = vpack.c.b16 %v1627, %v1626
        %v1639 = vpack.c.b16 %v1629, %v1628
        %v1640 = vpack.c.b16 %v1631, %v1630
        %v1641 = vpack.c.b16 %v1633, %v1632
        %v1666 = vunpack.c.l.b16 %v1602
        %v1667 = vunpack.c.l.b16 %v1603
        %v1668 = vunpack.c.l.b16 %v1604
        %v1669 = vunpack.c.l.b16 %v1605
        %v1670 = vunpack.c.l.b16 %v1606
        %v1671 = vunpack.c.l.b16 %v1607
        %v1672 = vunpack.c.l.b16 %v1608
        %v1673 = vunpack.c.l.b16 %v1609
        %v1674 = vunpack.c.l.b16 %v1610
        %v1675 = vunpack.c.l.b16 %v1611
        %v1676 = vunpack.c.l.b16 %v1612
        %v1677 = vunpack.c.l.b16 %v1613
        %v1678 = vunpack.c.l.b16 %v1614
        %v1679 = vunpack.c.l.b16 %v1615
        %v1680 = vunpack.c.l.b16 %v1616
        %v1681 = vunpack.c.l.b16 %v1617
        %v1682 = vpack.c.b16 %v1667, %v1666
        %v1683 = vpack.c.b16 %v1669, %v1668
        %v1684 = vpack.c.b16 %v1671, %v1670
        %v1685 = vpack.c.b16 %v1673, %v1672
        %v1686 = vpack.c.b16 %v1675, %v1674
        %v1687 = vpack.c.b16 %v1677, %v1676
        %v1688 = vpack.c.b16 %v1679, %v1678
        %v1689 = vpack.c.b16 %v1681, %v1680
        %1698 = vmatpush.bf16.msra.mxu0 %v1689
        %1699 = vmatpush.bf16.msra.mxu0 %v1688
        %1700 = vmatpush.bf16.msra.mxu0 %v1687
        %1701 = vmatpush.bf16.msra.mxu0 %v1686
        %1702 = vmatpush.bf16.msra.mxu0 %v1685
        %1703 = vmatpush.bf16.msra.mxu0 %v1684
        %1704 = vmatpush.bf16.msra.mxu0 %v1683
        %1705 = vmatpush.bf16.msra.mxu0 %v1682
        %1706 = vmatmul.bf16.gmra.mxu0 %v1634
        %v1707 = vpop.f32.mrf.mxu0
        %v1708 = vadd.f32 0.0, %v1707
        %v1709 = vpop.f32.mrf.mxu0
        %v1710 = vadd.f32 0.0, %v1709
        %1711 = vmatmul.bf16.gmra.mxu0 %v1635
        %v1712 = vpop.f32.mrf.mxu0
        %v1713 = vadd.f32 0.0, %v1712
        %v1714 = vpop.f32.mrf.mxu0
        %v1715 = vadd.f32 0.0, %v1714
        %1716 = vmatmul.bf16.gmra.mxu0 %v1636
        %v1717 = vpop.f32.mrf.mxu0
        %v1718 = vadd.f32 0.0, %v1717
        %v1719 = vpop.f32.mrf.mxu0
        %v1720 = vadd.f32 0.0, %v1719
        %1721 = vmatmul.bf16.gmra.mxu0 %v1637
        %v1722 = vpop.f32.mrf.mxu0
        %v1723 = vadd.f32 0.0, %v1722
        %v1724 = vpop.f32.mrf.mxu0
        %v1725 = vadd.f32 0.0, %v1724
        %1726 = vmatmul.bf16.gmra.mxu0 %v1638
        %v1727 = vpop.f32.mrf.mxu0
        %v1728 = vadd.f32 0.0, %v1727
        %v1729 = vpop.f32.mrf.mxu0
        %v1730 = vadd.f32 0.0, %v1729
        %1731 = vmatmul.bf16.gmra.mxu0 %v1639
        %v1732 = vpop.f32.mrf.mxu0
        %v1733 = vadd.f32 0.0, %v1732
        %v1734 = vpop.f32.mrf.mxu0
        %v1735 = vadd.f32 0.0, %v1734
        %1736 = vmatmul.bf16.gmra.mxu0 %v1640
        %v1737 = vpop.f32.mrf.mxu0
        %v1738 = vadd.f32 0.0, %v1737
        %v1739 = vpop.f32.mrf.mxu0
        %v1740 = vadd.f32 0.0, %v1739
        %1741 = vmatmul.bf16.gmra.mxu0 %v1641
        %v1742 = vpop.f32.mrf.mxu0
        %v1743 = vadd.f32 0.0, %v1742
        %v1744 = vpop.f32.mrf.mxu0
        %v1745 = vadd.f32 0.0, %v1744
        %1746 = vdwg.mxu0
        %v1747 = vadd.f32 %v1481, %v1708
        %v1748 = vadd.f32 %v1482, %v1710
        %v1749 = vadd.f32 %v1483, %v1713
        %v1750 = vadd.f32 %v1484, %v1715
        %v1751 = vadd.f32 %v1485, %v1718
        %v1752 = vadd.f32 %v1486, %v1720
        %v1753 = vadd.f32 %v1487, %v1723
        %v1754 = vadd.f32 %v1488, %v1725
        %v1755 = vadd.f32 %v1489, %v1728
        %v1756 = vadd.f32 %v1490, %v1730
        %v1757 = vadd.f32 %v1491, %v1733
        %v1758 = vadd.f32 %v1492, %v1735
        %v1759 = vadd.f32 %v1493, %v1738
        %v1760 = vadd.f32 %v1494, %v1740
        %v1761 = vadd.f32 %v1495, %v1743
        %v1762 = vadd.f32 %v1496, %v1745
        %s1763 = sadd.s32 %s255, 12
        %s1764 = smul.u32 %s1763, 7
        %s1765 = smul.addr %s1764, 4
        %s1766 = scalar_lea.vmem %s212, %s1765 [#allocation2]
        %v1767 = vld [vmem:[%s1766 + $0x4] sm:$0xc]
        %v1768 = vld [vmem:[%s1766 + $0x8] sm:$0xf]
        %v1769 = vld [vmem:[%s1766 + $0xc] sm:$0x3]
        %v1770 = vld [vmem:[%s1766 + $0x20] sm:$0xc]
        %v1771 = vld [vmem:[%s1766 + $0x24] sm:$0xf]
        %v1772 = vld [vmem:[%s1766 + $0x28] sm:$0x3]
        %v1773 = vld [vmem:[%s1766 + $0x3c] sm:$0xc]
        %v1774 = vld [vmem:[%s1766 + $0x40] sm:$0xf]
        %v1775 = vld [vmem:[%s1766 + $0x44] sm:$0x3]
        %v1776 = vld [vmem:[%s1766 + $0x58] sm:$0xc]
        %v1777 = vld [vmem:[%s1766 + $0x5c] sm:$0xf]
        %v1778 = vld [vmem:[%s1766 + $0x60] sm:$0x3]
        %v1779 = vld [vmem:[%s1766 + $0x74] sm:$0xc]
        %v1780 = vld [vmem:[%s1766 + $0x78] sm:$0xf]
        %v1781 = vld [vmem:[%s1766 + $0x7c] sm:$0x3]
        %v1782 = vld [vmem:[%s1766 + $0x90] sm:$0xc]
        %v1783 = vld [vmem:[%s1766 + $0x94] sm:$0xf]
        %v1784 = vld [vmem:[%s1766 + $0x98] sm:$0x3]
        %v1785 = vld [vmem:[%s1766 + $0xac] sm:$0xc]
        %v1786 = vld [vmem:[%s1766 + $0xb0] sm:$0xf]
        %v1787 = vld [vmem:[%s1766 + $0xb4] sm:$0x3]
        %v1788 = vld [vmem:[%s1766 + $0xc8] sm:$0xc]
        %v1789 = vld [vmem:[%s1766 + $0xcc] sm:$0xf]
        %v1790 = vld [vmem:[%s1766 + $0xd0] sm:$0x3]
        %v1815 = vrot.slane %v1767, 6
        %v1816 = vrot.slane %v1815, 4
        %v1817 = vrot.slane %v1768, 6
        %v1818 = vsel %vm739, %v1816, %v1817
        %v1819 = vrot.slane %v1817, 4
        %v1820 = vrot.slane %v1769, 6
        %v1821 = vsel %vm739, %v1819, %v1820
        %v1822 = vrot.slane %v1770, 6
        %v1823 = vrot.slane %v1822, 4
        %v1824 = vrot.slane %v1771, 6
        %v1825 = vsel %vm739, %v1823, %v1824
        %v1826 = vrot.slane %v1824, 4
        %v1827 = vrot.slane %v1772, 6
        %v1828 = vsel %vm739, %v1826, %v1827
        %v1829 = vrot.slane %v1773, 6
        %v1830 = vrot.slane %v1829, 4
        %v1831 = vrot.slane %v1774, 6
        %v1832 = vsel %vm739, %v1830, %v1831
        %v1833 = vrot.slane %v1831, 4
        %v1834 = vrot.slane %v1775, 6
        %v1835 = vsel %vm739, %v1833, %v1834
        %v1836 = vrot.slane %v1776, 6
        %v1837 = vrot.slane %v1836, 4
        %v1838 = vrot.slane %v1777, 6
        %v1839 = vsel %vm739, %v1837, %v1838
        %v1840 = vrot.slane %v1838, 4
        %v1841 = vrot.slane %v1778, 6
        %v1842 = vsel %vm739, %v1840, %v1841
        %v1843 = vrot.slane %v1779, 6
        %v1844 = vrot.slane %v1843, 4
        %v1845 = vrot.slane %v1780, 6
        %v1846 = vsel %vm739, %v1844, %v1845
        %v1847 = vrot.slane %v1845, 4
        %v1848 = vrot.slane %v1781, 6
        %v1849 = vsel %vm739, %v1847, %v1848
        %v1850 = vrot.slane %v1782, 6
        %v1851 = vrot.slane %v1850, 4
        %v1852 = vrot.slane %v1783, 6
        %v1853 = vsel %vm739, %v1851, %v1852
        %v1854 = vrot.slane %v1852, 4
        %v1855 = vrot.slane %v1784, 6
        %v1856 = vsel %vm739, %v1854, %v1855
        %v1857 = vrot.slane %v1785, 6
        %v1858 = vrot.slane %v1857, 4
        %v1859 = vrot.slane %v1786, 6
        %v1860 = vsel %vm739, %v1858, %v1859
        %v1861 = vrot.slane %v1859, 4
        %v1862 = vrot.slane %v1787, 6
        %v1863 = vsel %vm739, %v1861, %v1862
        %v1864 = vrot.slane %v1788, 6
        %v1865 = vrot.slane %v1864, 4
        %v1866 = vrot.slane %v1789, 6
        %v1867 = vsel %vm739, %v1865, %v1866
        %v1868 = vrot.slane %v1866, 4
        %v1869 = vrot.slane %v1790, 6
        %v1870 = vsel %vm739, %v1868, %v1869
        %s1871 = scalar_lea.vmem [#allocation5], 384
        %v1872 = vld [vmem:[%s1871] sm:$0xf]
        %v1873 = vld [vmem:[%s1871 + $0x4] sm:$0xf]
        %v1874 = vld [vmem:[%s1871 + $0x8] sm:$0xf]
        %v1875 = vld [vmem:[%s1871 + $0xc] sm:$0xf]
        %v1876 = vld [vmem:[%s1871 + $0x10] sm:$0xf]
        %v1877 = vld [vmem:[%s1871 + $0x14] sm:$0xf]
        %v1878 = vld [vmem:[%s1871 + $0x18] sm:$0xf]
        %v1879 = vld [vmem:[%s1871 + $0x1c] sm:$0xf]
        %v1880 = vld [vmem:[%s1871 + $0x20] sm:$0xf]
        %v1881 = vld [vmem:[%s1871 + $0x24] sm:$0xf]
        %v1882 = vld [vmem:[%s1871 + $0x28] sm:$0xf]
        %v1883 = vld [vmem:[%s1871 + $0x2c] sm:$0xf]
        %v1884 = vld [vmem:[%s1871 + $0x30] sm:$0xf]
        %v1885 = vld [vmem:[%s1871 + $0x34] sm:$0xf]
        %v1886 = vld [vmem:[%s1871 + $0x38] sm:$0xf]
        %v1887 = vld [vmem:[%s1871 + $0x3c] sm:$0xf]
        %v1888 = vunpack.c.l.b16 %v1818
        %v1889 = vunpack.c.l.b16 %v1821
        %v1890 = vunpack.c.l.b16 %v1825
        %v1891 = vunpack.c.l.b16 %v1828
        %v1892 = vunpack.c.l.b16 %v1832
        %v1893 = vunpack.c.l.b16 %v1835
        %v1894 = vunpack.c.l.b16 %v1839
        %v1895 = vunpack.c.l.b16 %v1842
        %v1896 = vunpack.c.l.b16 %v1846
        %v1897 = vunpack.c.l.b16 %v1849
        %v1898 = vunpack.c.l.b16 %v1853
        %v1899 = vunpack.c.l.b16 %v1856
        %v1900 = vunpack.c.l.b16 %v1860
        %v1901 = vunpack.c.l.b16 %v1863
        %v1902 = vunpack.c.l.b16 %v1867
        %v1903 = vunpack.c.l.b16 %v1870
        %v1904 = vpack.c.b16 %v1889, %v1888
        %v1905 = vpack.c.b16 %v1891, %v1890
        %v1906 = vpack.c.b16 %v1893, %v1892
        %v1907 = vpack.c.b16 %v1895, %v1894
        %v1908 = vpack.c.b16 %v1897, %v1896
        %v1909 = vpack.c.b16 %v1899, %v1898
        %v1910 = vpack.c.b16 %v1901, %v1900
        %v1911 = vpack.c.b16 %v1903, %v1902
        %v1936 = vunpack.c.l.b16 %v1872
        %v1937 = vunpack.c.l.b16 %v1873
        %v1938 = vunpack.c.l.b16 %v1874
        %v1939 = vunpack.c.l.b16 %v1875
        %v1940 = vunpack.c.l.b16 %v1876
        %v1941 = vunpack.c.l.b16 %v1877
        %v1942 = vunpack.c.l.b16 %v1878
        %v1943 = vunpack.c.l.b16 %v1879
        %v1944 = vunpack.c.l.b16 %v1880
        %v1945 = vunpack.c.l.b16 %v1881
        %v1946 = vunpack.c.l.b16 %v1882
        %v1947 = vunpack.c.l.b16 %v1883
        %v1948 = vunpack.c.l.b16 %v1884
        %v1949 = vunpack.c.l.b16 %v1885
        %v1950 = vunpack.c.l.b16 %v1886
        %v1951 = vunpack.c.l.b16 %v1887
        %v1952 = vpack.c.b16 %v1937, %v1936
        %v1953 = vpack.c.b16 %v1939, %v1938
        %v1954 = vpack.c.b16 %v1941, %v1940
        %v1955 = vpack.c.b16 %v1943, %v1942
        %v1956 = vpack.c.b16 %v1945, %v1944
        %v1957 = vpack.c.b16 %v1947, %v1946
        %v1958 = vpack.c.b16 %v1949, %v1948
        %v1959 = vpack.c.b16 %v1951, %v1950
        %1968 = vmatpush.bf16.msra.mxu0 %v1959
        %1969 = vmatpush.bf16.msra.mxu0 %v1958
        %1970 = vmatpush.bf16.msra.mxu0 %v1957
        %1971 = vmatpush.bf16.msra.mxu0 %v1956
        %1972 = vmatpush.bf16.msra.mxu0 %v1955
        %1973 = vmatpush.bf16.msra.mxu0 %v1954
        %1974 = vmatpush.bf16.msra.mxu0 %v1953
        %1975 = vmatpush.bf16.msra.mxu0 %v1952
        %1976 = vmatmul.bf16.gmra.mxu0 %v1904
        %v1977 = vpop.f32.mrf.mxu0
        %v1978 = vadd.f32 0.0, %v1977
        %v1979 = vpop.f32.mrf.mxu0
        %v1980 = vadd.f32 0.0, %v1979
        %1981 = vmatmul.bf16.gmra.mxu0 %v1905
        %v1982 = vpop.f32.mrf.mxu0
        %v1983 = vadd.f32 0.0, %v1982
        %v1984 = vpop.f32.mrf.mxu0
        %v1985 = vadd.f32 0.0, %v1984
        %1986 = vmatmul.bf16.gmra.mxu0 %v1906
        %v1987 = vpop.f32.mrf.mxu0
        %v1988 = vadd.f32 0.0, %v1987
        %v1989 = vpop.f32.mrf.mxu0
        %v1990 = vadd.f32 0.0, %v1989
        %1991 = vmatmul.bf16.gmra.mxu0 %v1907
        %v1992 = vpop.f32.mrf.mxu0
        %v1993 = vadd.f32 0.0, %v1992
        %v1994 = vpop.f32.mrf.mxu0
        %v1995 = vadd.f32 0.0, %v1994
        %1996 = vmatmul.bf16.gmra.mxu0 %v1908
        %v1997 = vpop.f32.mrf.mxu0
        %v1998 = vadd.f32 0.0, %v1997
        %v1999 = vpop.f32.mrf.mxu0
        %v2000 = vadd.f32 0.0, %v1999
        %2001 = vmatmul.bf16.gmra.mxu0 %v1909
        %v2002 = vpop.f32.mrf.mxu0
        %v2003 = vadd.f32 0.0, %v2002
        %v2004 = vpop.f32.mrf.mxu0
        %v2005 = vadd.f32 0.0, %v2004
        %2006 = vmatmul.bf16.gmra.mxu0 %v1910
        %v2007 = vpop.f32.mrf.mxu0
        %v2008 = vadd.f32 0.0, %v2007
        %v2009 = vpop.f32.mrf.mxu0
        %v2010 = vadd.f32 0.0, %v2009
        %2011 = vmatmul.bf16.gmra.mxu0 %v1911
        %v2012 = vpop.f32.mrf.mxu0
        %v2013 = vadd.f32 0.0, %v2012
        %v2014 = vpop.f32.mrf.mxu0
        %v2015 = vadd.f32 0.0, %v2014
        %2016 = vdwg.mxu0
        %v2017 = vadd.f32 %v1747, %v1978
        %v2018 = vadd.f32 %v1748, %v1980
        %v2019 = vadd.f32 %v1749, %v1983
        %v2020 = vadd.f32 %v1750, %v1985
        %v2021 = vadd.f32 %v1751, %v1988
        %v2022 = vadd.f32 %v1752, %v1990
        %v2023 = vadd.f32 %v1753, %v1993
        %v2024 = vadd.f32 %v1754, %v1995
        %v2025 = vadd.f32 %v1755, %v1998
        %v2026 = vadd.f32 %v1756, %v2000
        %v2027 = vadd.f32 %v1757, %v2003
        %v2028 = vadd.f32 %v1758, %v2005
        %v2029 = vadd.f32 %v1759, %v2008
        %v2030 = vadd.f32 %v1760, %v2010
        %v2031 = vadd.f32 %v1761, %v2013
        %v2032 = vadd.f32 %v1762, %v2015
        %v2033 = vld [vmem:[%s1766 + $0x8] sm:$0xe]
        %v2034 = vld [vmem:[%s1766 + $0xc] sm:$0xf]
        %v2035 = vld [vmem:[%s1766 + $0x10] sm:$0x1]
        %v2036 = vld [vmem:[%s1766 + $0x24] sm:$0xe]
        %v2037 = vld [vmem:[%s1766 + $0x28] sm:$0xf]
        %v2038 = vld [vmem:[%s1766 + $0x2c] sm:$0x1]
        %v2039 = vld [vmem:[%s1766 + $0x40] sm:$0xe]
        %v2040 = vld [vmem:[%s1766 + $0x44] sm:$0xf]
        %v2041 = vld [vmem:[%s1766 + $0x48] sm:$0x1]
        %v2042 = vld [vmem:[%s1766 + $0x5c] sm:$0xe]
        %v2043 = vld [vmem:[%s1766 + $0x60] sm:$0xf]
        %v2044 = vld [vmem:[%s1766 + $0x64] sm:$0x1]
        %v2045 = vld [vmem:[%s1766 + $0x78] sm:$0xe]
        %v2046 = vld [vmem:[%s1766 + $0x7c] sm:$0xf]
        %v2047 = vld [vmem:[%s1766 + $0x80] sm:$0x1]
        %v2048 = vld [vmem:[%s1766 + $0x94] sm:$0xe]
        %v2049 = vld [vmem:[%s1766 + $0x98] sm:$0xf]
        %v2050 = vld [vmem:[%s1766 + $0x9c] sm:$0x1]
        %v2051 = vld [vmem:[%s1766 + $0xb0] sm:$0xe]
        %v2052 = vld [vmem:[%s1766 + $0xb4] sm:$0xf]
        %v2053 = vld [vmem:[%s1766 + $0xb8] sm:$0x1]
        %v2054 = vld [vmem:[%s1766 + $0xcc] sm:$0xe]
        %v2055 = vld [vmem:[%s1766 + $0xd0] sm:$0xf]
        %v2056 = vld [vmem:[%s1766 + $0xd4] sm:$0x1]
        %v2081 = vrot.slane %v2033, 5
        %v2082 = vrot.slane %v2081, 4
        %v2083 = vrot.slane %v2034, 5
        %v2084 = vsel %vm341, %v2082, %v2083
        %v2085 = vrot.slane %v2083, 4
        %v2086 = vrot.slane %v2035, 5
        %v2087 = vsel %vm341, %v2085, %v2086
        %v2088 = vrot.slane %v2036, 5
        %v2089 = vrot.slane %v2088, 4
        %v2090 = vrot.slane %v2037, 5
        %v2091 = vsel %vm341, %v2089, %v2090
        %v2092 = vrot.slane %v2090, 4
        %v2093 = vrot.slane %v2038, 5
        %v2094 = vsel %vm341, %v2092, %v2093
        %v2095 = vrot.slane %v2039, 5
        %v2096 = vrot.slane %v2095, 4
        %v2097 = vrot.slane %v2040, 5
        %v2098 = vsel %vm341, %v2096, %v2097
        %v2099 = vrot.slane %v2097, 4
        %v2100 = vrot.slane %v2041, 5
        %v2101 = vsel %vm341, %v2099, %v2100
        %v2102 = vrot.slane %v2042, 5
        %v2103 = vrot.slane %v2102, 4
        %v2104 = vrot.slane %v2043, 5
        %v2105 = vsel %vm341, %v2103, %v2104
        %v2106 = vrot.slane %v2104, 4
        %v2107 = vrot.slane %v2044, 5
        %v2108 = vsel %vm341, %v2106, %v2107
        %v2109 = vrot.slane %v2045, 5
        %v2110 = vrot.slane %v2109, 4
        %v2111 = vrot.slane %v2046, 5
        %v2112 = vsel %vm341, %v2110, %v2111
        %v2113 = vrot.slane %v2111, 4
        %v2114 = vrot.slane %v2047, 5
        %v2115 = vsel %vm341, %v2113, %v2114
        %v2116 = vrot.slane %v2048, 5
        %v2117 = vrot.slane %v2116, 4
        %v2118 = vrot.slane %v2049, 5
        %v2119 = vsel %vm341, %v2117, %v2118
        %v2120 = vrot.slane %v2118, 4
        %v2121 = vrot.slane %v2050, 5
        %v2122 = vsel %vm341, %v2120, %v2121
        %v2123 = vrot.slane %v2051, 5
        %v2124 = vrot.slane %v2123, 4
        %v2125 = vrot.slane %v2052, 5
        %v2126 = vsel %vm341, %v2124, %v2125
        %v2127 = vrot.slane %v2125, 4
        %v2128 = vrot.slane %v2053, 5
        %v2129 = vsel %vm341, %v2127, %v2128
        %v2130 = vrot.slane %v2054, 5
        %v2131 = vrot.slane %v2130, 4
        %v2132 = vrot.slane %v2055, 5
        %v2133 = vsel %vm341, %v2131, %v2132
        %v2134 = vrot.slane %v2132, 4
        %v2135 = vrot.slane %v2056, 5
        %v2136 = vsel %vm341, %v2134, %v2135
        %s2137 = scalar_lea.vmem [#allocation5], 448
        %v2138 = vld [vmem:[%s2137] sm:$0xf]
        %v2139 = vld [vmem:[%s2137 + $0x4] sm:$0xf]
        %v2140 = vld [vmem:[%s2137 + $0x8] sm:$0xf]
        %v2141 = vld [vmem:[%s2137 + $0xc] sm:$0xf]
        %v2142 = vld [vmem:[%s2137 + $0x10] sm:$0xf]
        %v2143 = vld [vmem:[%s2137 + $0x14] sm:$0xf]
        %v2144 = vld [vmem:[%s2137 + $0x18] sm:$0xf]
        %v2145 = vld [vmem:[%s2137 + $0x1c] sm:$0xf]
        %v2146 = vld [vmem:[%s2137 + $0x20] sm:$0xf]
        %v2147 = vld [vmem:[%s2137 + $0x24] sm:$0xf]
        %v2148 = vld [vmem:[%s2137 + $0x28] sm:$0xf]
        %v2149 = vld [vmem:[%s2137 + $0x2c] sm:$0xf]
        %v2150 = vld [vmem:[%s2137 + $0x30] sm:$0xf]
        %v2151 = vld [vmem:[%s2137 + $0x34] sm:$0xf]
        %v2152 = vld [vmem:[%s2137 + $0x38] sm:$0xf]
        %v2153 = vld [vmem:[%s2137 + $0x3c] sm:$0xf]
        %v2154 = vunpack.c.l.b16 %v2084
        %v2155 = vunpack.c.l.b16 %v2087
        %v2156 = vunpack.c.l.b16 %v2091
        %v2157 = vunpack.c.l.b16 %v2094
        %v2158 = vunpack.c.l.b16 %v2098
        %v2159 = vunpack.c.l.b16 %v2101
        %v2160 = vunpack.c.l.b16 %v2105
        %v2161 = vunpack.c.l.b16 %v2108
        %v2162 = vunpack.c.l.b16 %v2112
        %v2163 = vunpack.c.l.b16 %v2115
        %v2164 = vunpack.c.l.b16 %v2119
        %v2165 = vunpack.c.l.b16 %v2122
        %v2166 = vunpack.c.l.b16 %v2126
        %v2167 = vunpack.c.l.b16 %v2129
        %v2168 = vunpack.c.l.b16 %v2133
        %v2169 = vunpack.c.l.b16 %v2136
        %v2170 = vpack.c.b16 %v2155, %v2154
        %v2171 = vpack.c.b16 %v2157, %v2156
        %v2172 = vpack.c.b16 %v2159, %v2158
        %v2173 = vpack.c.b16 %v2161, %v2160
        %v2174 = vpack.c.b16 %v2163, %v2162
        %v2175 = vpack.c.b16 %v2165, %v2164
        %v2176 = vpack.c.b16 %v2167, %v2166
        %v2177 = vpack.c.b16 %v2169, %v2168
        %v2202 = vunpack.c.l.b16 %v2138
        %v2203 = vunpack.c.l.b16 %v2139
        %v2204 = vunpack.c.l.b16 %v2140
        %v2205 = vunpack.c.l.b16 %v2141
        %v2206 = vunpack.c.l.b16 %v2142
        %v2207 = vunpack.c.l.b16 %v2143
        %v2208 = vunpack.c.l.b16 %v2144
        %v2209 = vunpack.c.l.b16 %v2145
        %v2210 = vunpack.c.l.b16 %v2146
        %v2211 = vunpack.c.l.b16 %v2147
        %v2212 = vunpack.c.l.b16 %v2148
        %v2213 = vunpack.c.l.b16 %v2149
        %v2214 = vunpack.c.l.b16 %v2150
        %v2215 = vunpack.c.l.b16 %v2151
        %v2216 = vunpack.c.l.b16 %v2152
        %v2217 = vunpack.c.l.b16 %v2153
        %v2218 = vpack.c.b16 %v2203, %v2202
        %v2219 = vpack.c.b16 %v2205, %v2204
        %v2220 = vpack.c.b16 %v2207, %v2206
        %v2221 = vpack.c.b16 %v2209, %v2208
        %v2222 = vpack.c.b16 %v2211, %v2210
        %v2223 = vpack.c.b16 %v2213, %v2212
        %v2224 = vpack.c.b16 %v2215, %v2214
        %v2225 = vpack.c.b16 %v2217, %v2216
        %2234 = vmatpush.bf16.msra.mxu0 %v2225
        %2235 = vmatpush.bf16.msra.mxu0 %v2224
        %2236 = vmatpush.bf16.msra.mxu0 %v2223
        %2237 = vmatpush.bf16.msra.mxu0 %v2222
        %2238 = vmatpush.bf16.msra.mxu0 %v2221
        %2239 = vmatpush.bf16.msra.mxu0 %v2220
        %2240 = vmatpush.bf16.msra.mxu0 %v2219
        %2241 = vmatpush.bf16.msra.mxu0 %v2218
        %2242 = vmatmul.bf16.gmra.mxu0 %v2170
        %v2243 = vpop.f32.mrf.mxu0
        %v2244 = vadd.f32 0.0, %v2243
        %v2245 = vpop.f32.mrf.mxu0
        %v2246 = vadd.f32 0.0, %v2245
        %2247 = vmatmul.bf16.gmra.mxu0 %v2171
        %v2248 = vpop.f32.mrf.mxu0
        %v2249 = vadd.f32 0.0, %v2248
        %v2250 = vpop.f32.mrf.mxu0
        %v2251 = vadd.f32 0.0, %v2250
        %2252 = vmatmul.bf16.gmra.mxu0 %v2172
        %v2253 = vpop.f32.mrf.mxu0
        %v2254 = vadd.f32 0.0, %v2253
        %v2255 = vpop.f32.mrf.mxu0
        %v2256 = vadd.f32 0.0, %v2255
        %2257 = vmatmul.bf16.gmra.mxu0 %v2173
        %v2258 = vpop.f32.mrf.mxu0
        %v2259 = vadd.f32 0.0, %v2258
        %v2260 = vpop.f32.mrf.mxu0
        %v2261 = vadd.f32 0.0, %v2260
        %2262 = vmatmul.bf16.gmra.mxu0 %v2174
        %v2263 = vpop.f32.mrf.mxu0
        %v2264 = vadd.f32 0.0, %v2263
        %v2265 = vpop.f32.mrf.mxu0
        %v2266 = vadd.f32 0.0, %v2265
        %2267 = vmatmul.bf16.gmra.mxu0 %v2175
        %v2268 = vpop.f32.mrf.mxu0
        %v2269 = vadd.f32 0.0, %v2268
        %v2270 = vpop.f32.mrf.mxu0
        %v2271 = vadd.f32 0.0, %v2270
        %2272 = vmatmul.bf16.gmra.mxu0 %v2176
        %v2273 = vpop.f32.mrf.mxu0
        %v2274 = vadd.f32 0.0, %v2273
        %v2275 = vpop.f32.mrf.mxu0
        %v2276 = vadd.f32 0.0, %v2275
        %2277 = vmatmul.bf16.gmra.mxu0 %v2177
        %v2278 = vpop.f32.mrf.mxu0
        %v2279 = vadd.f32 0.0, %v2278
        %v2280 = vpop.f32.mrf.mxu0
        %v2281 = vadd.f32 0.0, %v2280
        %2282 = vdwg.mxu0
        %v2283 = vadd.f32 %v2017, %v2244
        %v2284 = vadd.f32 %v2018, %v2246
        %v2285 = vadd.f32 %v2019, %v2249
        %v2286 = vadd.f32 %v2020, %v2251
        %v2287 = vadd.f32 %v2021, %v2254
        %v2288 = vadd.f32 %v2022, %v2256
        %v2289 = vadd.f32 %v2023, %v2259
        %v2290 = vadd.f32 %v2024, %v2261
        %v2291 = vadd.f32 %v2025, %v2264
        %v2292 = vadd.f32 %v2026, %v2266
        %v2293 = vadd.f32 %v2027, %v2269
        %v2294 = vadd.f32 %v2028, %v2271
        %v2295 = vadd.f32 %v2029, %v2274
        %v2296 = vadd.f32 %v2030, %v2276
        %v2297 = vadd.f32 %v2031, %v2279
        %v2298 = vadd.f32 %v2032, %v2281
        %v2299 = vld [vmem:[%s1766 + $0x10] sm:$0xf]
        %v2300 = vld [vmem:[%s1766 + $0x2c] sm:$0xf]
        %v2301 = vld [vmem:[%s1766 + $0x48] sm:$0xf]
        %v2302 = vld [vmem:[%s1766 + $0x64] sm:$0xf]
        %v2303 = vld [vmem:[%s1766 + $0x80] sm:$0xf]
        %v2304 = vld [vmem:[%s1766 + $0x9c] sm:$0xf]
        %v2305 = vld [vmem:[%s1766 + $0xb8] sm:$0xf]
        %v2306 = vld [vmem:[%s1766 + $0xd4] sm:$0xf]
        %s2307 = scalar_lea.vmem [#allocation5], 512
        %v2308 = vld [vmem:[%s2307] sm:$0xf]
        %v2309 = vld [vmem:[%s2307 + $0x4] sm:$0xf]
        %v2310 = vld [vmem:[%s2307 + $0x8] sm:$0xf]
        %v2311 = vld [vmem:[%s2307 + $0xc] sm:$0xf]
        %v2312 = vld [vmem:[%s2307 + $0x10] sm:$0xf]
        %v2313 = vld [vmem:[%s2307 + $0x14] sm:$0xf]
        %v2314 = vld [vmem:[%s2307 + $0x18] sm:$0xf]
        %v2315 = vld [vmem:[%s2307 + $0x1c] sm:$0xf]
        %v2316 = vld [vmem:[%s2307 + $0x20] sm:$0xf]
        %v2317 = vld [vmem:[%s2307 + $0x24] sm:$0xf]
        %v2318 = vld [vmem:[%s2307 + $0x28] sm:$0xf]
        %v2319 = vld [vmem:[%s2307 + $0x2c] sm:$0xf]
        %v2320 = vld [vmem:[%s2307 + $0x30] sm:$0xf]
        %v2321 = vld [vmem:[%s2307 + $0x34] sm:$0xf]
        %v2322 = vld [vmem:[%s2307 + $0x38] sm:$0xf]
        %v2323 = vld [vmem:[%s2307 + $0x3c] sm:$0xf]
        %v2332 = vunpack.c.l.b16 %v2034
        %v2333 = vunpack.c.l.b16 %v2299
        %v2334 = vunpack.c.l.b16 %v2037
        %v2335 = vunpack.c.l.b16 %v2300
        %v2336 = vunpack.c.l.b16 %v2040
        %v2337 = vunpack.c.l.b16 %v2301
        %v2338 = vunpack.c.l.b16 %v2043
        %v2339 = vunpack.c.l.b16 %v2302
        %v2340 = vunpack.c.l.b16 %v2046
        %v2341 = vunpack.c.l.b16 %v2303
        %v2342 = vunpack.c.l.b16 %v2049
        %v2343 = vunpack.c.l.b16 %v2304
        %v2344 = vunpack.c.l.b16 %v2052
        %v2345 = vunpack.c.l.b16 %v2305
        %v2346 = vunpack.c.l.b16 %v2055
        %v2347 = vunpack.c.l.b16 %v2306
        %v2348 = vpack.c.b16 %v2333, %v2332
        %v2349 = vpack.c.b16 %v2335, %v2334
        %v2350 = vpack.c.b16 %v2337, %v2336
        %v2351 = vpack.c.b16 %v2339, %v2338
        %v2352 = vpack.c.b16 %v2341, %v2340
        %v2353 = vpack.c.b16 %v2343, %v2342
        %v2354 = vpack.c.b16 %v2345, %v2344
        %v2355 = vpack.c.b16 %v2347, %v2346
        %v2380 = vunpack.c.l.b16 %v2308
        %v2381 = vunpack.c.l.b16 %v2309
        %v2382 = vunpack.c.l.b16 %v2310
        %v2383 = vunpack.c.l.b16 %v2311
        %v2384 = vunpack.c.l.b16 %v2312
        %v2385 = vunpack.c.l.b16 %v2313
        %v2386 = vunpack.c.l.b16 %v2314
        %v2387 = vunpack.c.l.b16 %v2315
        %v2388 = vunpack.c.l.b16 %v2316
        %v2389 = vunpack.c.l.b16 %v2317
        %v2390 = vunpack.c.l.b16 %v2318
        %v2391 = vunpack.c.l.b16 %v2319
        %v2392 = vunpack.c.l.b16 %v2320
        %v2393 = vunpack.c.l.b16 %v2321
        %v2394 = vunpack.c.l.b16 %v2322
        %v2395 = vunpack.c.l.b16 %v2323
        %v2396 = vpack.c.b16 %v2381, %v2380
        %v2397 = vpack.c.b16 %v2383, %v2382
        %v2398 = vpack.c.b16 %v2385, %v2384
        %v2399 = vpack.c.b16 %v2387, %v2386
        %v2400 = vpack.c.b16 %v2389, %v2388
        %v2401 = vpack.c.b16 %v2391, %v2390
        %v2402 = vpack.c.b16 %v2393, %v2392
        %v2403 = vpack.c.b16 %v2395, %v2394
        %2412 = vmatpush.bf16.msra.mxu0 %v2403
        %2413 = vmatpush.bf16.msra.mxu0 %v2402
        %2414 = vmatpush.bf16.msra.mxu0 %v2401
        %2415 = vmatpush.bf16.msra.mxu0 %v2400
        %2416 = vmatpush.bf16.msra.mxu0 %v2399
        %2417 = vmatpush.bf16.msra.mxu0 %v2398
        %2418 = vmatpush.bf16.msra.mxu0 %v2397
        %2419 = vmatpush.bf16.msra.mxu0 %v2396
        %2420 = vmatmul.bf16.gmra.mxu0 %v2348
        %v2421 = vpop.f32.mrf.mxu0
        %v2422 = vadd.f32 0.0, %v2421
        %v2423 = vpop.f32.mrf.mxu0
        %v2424 = vadd.f32 0.0, %v2423
        %2425 = vmatmul.bf16.gmra.mxu0 %v2349
        %v2426 = vpop.f32.mrf.mxu0
        %v2427 = vadd.f32 0.0, %v2426
        %v2428 = vpop.f32.mrf.mxu0
        %v2429 = vadd.f32 0.0, %v2428
        %2430 = vmatmul.bf16.gmra.mxu0 %v2350
        %v2431 = vpop.f32.mrf.mxu0
        %v2432 = vadd.f32 0.0, %v2431
        %v2433 = vpop.f32.mrf.mxu0
        %v2434 = vadd.f32 0.0, %v2433
        %2435 = vmatmul.bf16.gmra.mxu0 %v2351
        %v2436 = vpop.f32.mrf.mxu0
        %v2437 = vadd.f32 0.0, %v2436
        %v2438 = vpop.f32.mrf.mxu0
        %v2439 = vadd.f32 0.0, %v2438
        %2440 = vmatmul.bf16.gmra.mxu0 %v2352
        %v2441 = vpop.f32.mrf.mxu0
        %v2442 = vadd.f32 0.0, %v2441
        %v2443 = vpop.f32.mrf.mxu0
        %v2444 = vadd.f32 0.0, %v2443
        %2445 = vmatmul.bf16.gmra.mxu0 %v2353
        %v2446 = vpop.f32.mrf.mxu0
        %v2447 = vadd.f32 0.0, %v2446
        %v2448 = vpop.f32.mrf.mxu0
        %v2449 = vadd.f32 0.0, %v2448
        %2450 = vmatmul.bf16.gmra.mxu0 %v2354
        %v2451 = vpop.f32.mrf.mxu0
        %v2452 = vadd.f32 0.0, %v2451
        %v2453 = vpop.f32.mrf.mxu0
        %v2454 = vadd.f32 0.0, %v2453
        %2455 = vmatmul.bf16.gmra.mxu0 %v2355
        %v2456 = vpop.f32.mrf.mxu0
        %v2457 = vadd.f32 0.0, %v2456
        %v2458 = vpop.f32.mrf.mxu0
        %v2459 = vadd.f32 0.0, %v2458
        %2460 = vdwg.mxu0
        %v2461 = vadd.f32 %v2283, %v2422
        %v2462 = vadd.f32 %v2284, %v2424
        %v2463 = vadd.f32 %v2285, %v2427
        %v2464 = vadd.f32 %v2286, %v2429
        %v2465 = vadd.f32 %v2287, %v2432
        %v2466 = vadd.f32 %v2288, %v2434
        %v2467 = vadd.f32 %v2289, %v2437
        %v2468 = vadd.f32 %v2290, %v2439
        %v2469 = vadd.f32 %v2291, %v2442
        %v2470 = vadd.f32 %v2292, %v2444
        %v2471 = vadd.f32 %v2293, %v2447
        %v2472 = vadd.f32 %v2294, %v2449
        %v2473 = vadd.f32 %v2295, %v2452
        %v2474 = vadd.f32 %v2296, %v2454
        %v2475 = vadd.f32 %v2297, %v2457
        %v2476 = vadd.f32 %v2298, %v2459
        %s2477 = sadd.s32 %s255, 18
        %s2478 = smul.u32 %s2477, 7
        %s2479 = smul.addr %s2478, 4
        %s2480 = scalar_lea.vmem %s212, %s2479 [#allocation2]
        %v2481 = vld [vmem:[%s2480] sm:$0xf]
        %v2482 = vld [vmem:[%s2480 + $0x4] sm:$0xf]
        %v2483 = vld [vmem:[%s2480 + $0x1c] sm:$0xf]
        %v2484 = vld [vmem:[%s2480 + $0x20] sm:$0xf]
        %v2485 = vld [vmem:[%s2480 + $0x38] sm:$0xf]
        %v2486 = vld [vmem:[%s2480 + $0x3c] sm:$0xf]
        %v2487 = vld [vmem:[%s2480 + $0x54] sm:$0xf]
        %v2488 = vld [vmem:[%s2480 + $0x58] sm:$0xf]
        %v2489 = vld [vmem:[%s2480 + $0x70] sm:$0xf]
        %v2490 = vld [vmem:[%s2480 + $0x74] sm:$0xf]
        %v2491 = vld [vmem:[%s2480 + $0x8c] sm:$0xf]
        %v2492 = vld [vmem:[%s2480 + $0x90] sm:$0xf]
        %v2493 = vld [vmem:[%s2480 + $0xa8] sm:$0xf]
        %v2494 = vld [vmem:[%s2480 + $0xac] sm:$0xf]
        %v2495 = vld [vmem:[%s2480 + $0xc4] sm:$0xf]
        %v2496 = vld [vmem:[%s2480 + $0xc8] sm:$0xf]
        %s2497 = scalar_lea.vmem [#allocation5], 576
        %v2498 = vld [vmem:[%s2497] sm:$0xf]
        %v2499 = vld [vmem:[%s2497 + $0x4] sm:$0xf]
        %v2500 = vld [vmem:[%s2497 + $0x8] sm:$0xf]
        %v2501 = vld [vmem:[%s2497 + $0xc] sm:$0xf]
        %v2502 = vld [vmem:[%s2497 + $0x10] sm:$0xf]
        %v2503 = vld [vmem:[%s2497 + $0x14] sm:$0xf]
        %v2504 = vld [vmem:[%s2497 + $0x18] sm:$0xf]
        %v2505 = vld [vmem:[%s2497 + $0x1c] sm:$0xf]
        %v2506 = vld [vmem:[%s2497 + $0x20] sm:$0xf]
        %v2507 = vld [vmem:[%s2497 + $0x24] sm:$0xf]
        %v2508 = vld [vmem:[%s2497 + $0x28] sm:$0xf]
        %v2509 = vld [vmem:[%s2497 + $0x2c] sm:$0xf]
        %v2510 = vld [vmem:[%s2497 + $0x30] sm:$0xf]
        %v2511 = vld [vmem:[%s2497 + $0x34] sm:$0xf]
        %v2512 = vld [vmem:[%s2497 + $0x38] sm:$0xf]
        %v2513 = vld [vmem:[%s2497 + $0x3c] sm:$0xf]
        %v2530 = vunpack.c.l.b16 %v2481
        %v2531 = vunpack.c.l.b16 %v2482
        %v2532 = vunpack.c.l.b16 %v2483
        %v2533 = vunpack.c.l.b16 %v2484
        %v2534 = vunpack.c.l.b16 %v2485
        %v2535 = vunpack.c.l.b16 %v2486
        %v2536 = vunpack.c.l.b16 %v2487
        %v2537 = vunpack.c.l.b16 %v2488
        %v2538 = vunpack.c.l.b16 %v2489
        %v2539 = vunpack.c.l.b16 %v2490
        %v2540 = vunpack.c.l.b16 %v2491
        %v2541 = vunpack.c.l.b16 %v2492
        %v2542 = vunpack.c.l.b16 %v2493
        %v2543 = vunpack.c.l.b16 %v2494
        %v2544 = vunpack.c.l.b16 %v2495
        %v2545 = vunpack.c.l.b16 %v2496
        %v2546 = vpack.c.b16 %v2531, %v2530
        %v2547 = vpack.c.b16 %v2533, %v2532
        %v2548 = vpack.c.b16 %v2535, %v2534
        %v2549 = vpack.c.b16 %v2537, %v2536
        %v2550 = vpack.c.b16 %v2539, %v2538
        %v2551 = vpack.c.b16 %v2541, %v2540
        %v2552 = vpack.c.b16 %v2543, %v2542
        %v2553 = vpack.c.b16 %v2545, %v2544
        %v2578 = vunpack.c.l.b16 %v2498
        %v2579 = vunpack.c.l.b16 %v2499
        %v2580 = vunpack.c.l.b16 %v2500
        %v2581 = vunpack.c.l.b16 %v2501
        %v2582 = vunpack.c.l.b16 %v2502
        %v2583 = vunpack.c.l.b16 %v2503
        %v2584 = vunpack.c.l.b16 %v2504
        %v2585 = vunpack.c.l.b16 %v2505
        %v2586 = vunpack.c.l.b16 %v2506
        %v2587 = vunpack.c.l.b16 %v2507
        %v2588 = vunpack.c.l.b16 %v2508
        %v2589 = vunpack.c.l.b16 %v2509
        %v2590 = vunpack.c.l.b16 %v2510
        %v2591 = vunpack.c.l.b16 %v2511
        %v2592 = vunpack.c.l.b16 %v2512
        %v2593 = vunpack.c.l.b16 %v2513
        %v2594 = vpack.c.b16 %v2579, %v2578
        %v2595 = vpack.c.b16 %v2581, %v2580
        %v2596 = vpack.c.b16 %v2583, %v2582
        %v2597 = vpack.c.b16 %v2585, %v2584
        %v2598 = vpack.c.b16 %v2587, %v2586
        %v2599 = vpack.c.b16 %v2589, %v2588
        %v2600 = vpack.c.b16 %v2591, %v2590
        %v2601 = vpack.c.b16 %v2593, %v2592
        %2610 = vmatpush.bf16.msra.mxu0 %v2601
        %2611 = vmatpush.bf16.msra.mxu0 %v2600
        %2612 = vmatpush.bf16.msra.mxu0 %v2599
        %2613 = vmatpush.bf16.msra.mxu0 %v2598
        %2614 = vmatpush.bf16.msra.mxu0 %v2597
        %2615 = vmatpush.bf16.msra.mxu0 %v2596
        %2616 = vmatpush.bf16.msra.mxu0 %v2595
        %2617 = vmatpush.bf16.msra.mxu0 %v2594
        %2618 = vmatmul.bf16.gmra.mxu0 %v2546
        %v2619 = vpop.f32.mrf.mxu0
        %v2620 = vadd.f32 0.0, %v2619
        %v2621 = vpop.f32.mrf.mxu0
        %v2622 = vadd.f32 0.0, %v2621
        %2623 = vmatmul.bf16.gmra.mxu0 %v2547
        %v2624 = vpop.f32.mrf.mxu0
        %v2625 = vadd.f32 0.0, %v2624
        %v2626 = vpop.f32.mrf.mxu0
        %v2627 = vadd.f32 0.0, %v2626
        %2628 = vmatmul.bf16.gmra.mxu0 %v2548
        %v2629 = vpop.f32.mrf.mxu0
        %v2630 = vadd.f32 0.0, %v2629
        %v2631 = vpop.f32.mrf.mxu0
        %v2632 = vadd.f32 0.0, %v2631
        %2633 = vmatmul.bf16.gmra.mxu0 %v2549
        %v2634 = vpop.f32.mrf.mxu0
        %v2635 = vadd.f32 0.0, %v2634
        %v2636 = vpop.f32.mrf.mxu0
        %v2637 = vadd.f32 0.0, %v2636
        %2638 = vmatmul.bf16.gmra.mxu0 %v2550
        %v2639 = vpop.f32.mrf.mxu0
        %v2640 = vadd.f32 0.0, %v2639
        %v2641 = vpop.f32.mrf.mxu0
        %v2642 = vadd.f32 0.0, %v2641
        %2643 = vmatmul.bf16.gmra.mxu0 %v2551
        %v2644 = vpop.f32.mrf.mxu0
        %v2645 = vadd.f32 0.0, %v2644
        %v2646 = vpop.f32.mrf.mxu0
        %v2647 = vadd.f32 0.0, %v2646
        %2648 = vmatmul.bf16.gmra.mxu0 %v2552
        %v2649 = vpop.f32.mrf.mxu0
        %v2650 = vadd.f32 0.0, %v2649
        %v2651 = vpop.f32.mrf.mxu0
        %v2652 = vadd.f32 0.0, %v2651
        %2653 = vmatmul.bf16.gmra.mxu0 %v2553
        %v2654 = vpop.f32.mrf.mxu0
        %v2655 = vadd.f32 0.0, %v2654
        %v2656 = vpop.f32.mrf.mxu0
        %v2657 = vadd.f32 0.0, %v2656
        %2658 = vdwg.mxu0
        %v2659 = vadd.f32 %v2461, %v2620
        %v2660 = vadd.f32 %v2462, %v2622
        %v2661 = vadd.f32 %v2463, %v2625
        %v2662 = vadd.f32 %v2464, %v2627
        %v2663 = vadd.f32 %v2465, %v2630
        %v2664 = vadd.f32 %v2466, %v2632
        %v2665 = vadd.f32 %v2467, %v2635
        %v2666 = vadd.f32 %v2468, %v2637
        %v2667 = vadd.f32 %v2469, %v2640
        %v2668 = vadd.f32 %v2470, %v2642
        %v2669 = vadd.f32 %v2471, %v2645
        %v2670 = vadd.f32 %v2472, %v2647
        %v2671 = vadd.f32 %v2473, %v2650
        %v2672 = vadd.f32 %v2474, %v2652
        %v2673 = vadd.f32 %v2475, %v2655
        %v2674 = vadd.f32 %v2476, %v2657
        %v2675 = vld [vmem:[%s2480] sm:$0x8]
        %v2676 = vld [vmem:[%s2480 + $0x4] sm:$0xf]
        %v2677 = vld [vmem:[%s2480 + $0x8] sm:$0x7]
        %v2678 = vld [vmem:[%s2480 + $0x1c] sm:$0x8]
        %v2679 = vld [vmem:[%s2480 + $0x20] sm:$0xf]
        %v2680 = vld [vmem:[%s2480 + $0x24] sm:$0x7]
        %v2681 = vld [vmem:[%s2480 + $0x38] sm:$0x8]
        %v2682 = vld [vmem:[%s2480 + $0x3c] sm:$0xf]
        %v2683 = vld [vmem:[%s2480 + $0x40] sm:$0x7]
        %v2684 = vld [vmem:[%s2480 + $0x54] sm:$0x8]
        %v2685 = vld [vmem:[%s2480 + $0x58] sm:$0xf]
        %v2686 = vld [vmem:[%s2480 + $0x5c] sm:$0x7]
        %v2687 = vld [vmem:[%s2480 + $0x70] sm:$0x8]
        %v2688 = vld [vmem:[%s2480 + $0x74] sm:$0xf]
        %v2689 = vld [vmem:[%s2480 + $0x78] sm:$0x7]
        %v2690 = vld [vmem:[%s2480 + $0x8c] sm:$0x8]
        %v2691 = vld [vmem:[%s2480 + $0x90] sm:$0xf]
        %v2692 = vld [vmem:[%s2480 + $0x94] sm:$0x7]
        %v2693 = vld [vmem:[%s2480 + $0xa8] sm:$0x8]
        %v2694 = vld [vmem:[%s2480 + $0xac] sm:$0xf]
        %v2695 = vld [vmem:[%s2480 + $0xb0] sm:$0x7]
        %v2696 = vld [vmem:[%s2480 + $0xc4] sm:$0x8]
        %v2697 = vld [vmem:[%s2480 + $0xc8] sm:$0xf]
        %v2698 = vld [vmem:[%s2480 + $0xcc] sm:$0x7]
        %v2723 = vrot.slane %v2675, 7
        %v2724 = vrot.slane %v2723, 4
        %v2725 = vrot.slane %v2676, 7
        %v2726 = vsel %vm1012, %v2724, %v2725
        %v2727 = vrot.slane %v2725, 4
        %v2728 = vrot.slane %v2677, 7
        %v2729 = vsel %vm1012, %v2727, %v2728
        %v2730 = vrot.slane %v2678, 7
        %v2731 = vrot.slane %v2730, 4
        %v2732 = vrot.slane %v2679, 7
        %v2733 = vsel %vm1012, %v2731, %v2732
        %v2734 = vrot.slane %v2732, 4
        %v2735 = vrot.slane %v2680, 7
        %v2736 = vsel %vm1012, %v2734, %v2735
        %v2737 = vrot.slane %v2681, 7
        %v2738 = vrot.slane %v2737, 4
        %v2739 = vrot.slane %v2682, 7
        %v2740 = vsel %vm1012, %v2738, %v2739
        %v2741 = vrot.slane %v2739, 4
        %v2742 = vrot.slane %v2683, 7
        %v2743 = vsel %vm1012, %v2741, %v2742
        %v2744 = vrot.slane %v2684, 7
        %v2745 = vrot.slane %v2744, 4
        %v2746 = vrot.slane %v2685, 7
        %v2747 = vsel %vm1012, %v2745, %v2746
        %v2748 = vrot.slane %v2746, 4
        %v2749 = vrot.slane %v2686, 7
        %v2750 = vsel %vm1012, %v2748, %v2749
        %v2751 = vrot.slane %v2687, 7
        %v2752 = vrot.slane %v2751, 4
        %v2753 = vrot.slane %v2688, 7
        %v2754 = vsel %vm1012, %v2752, %v2753
        %v2755 = vrot.slane %v2753, 4
        %v2756 = vrot.slane %v2689, 7
        %v2757 = vsel %vm1012, %v2755, %v2756
        %v2758 = vrot.slane %v2690, 7
        %v2759 = vrot.slane %v2758, 4
        %v2760 = vrot.slane %v2691, 7
        %v2761 = vsel %vm1012, %v2759, %v2760
        %v2762 = vrot.slane %v2760, 4
        %v2763 = vrot.slane %v2692, 7
        %v2764 = vsel %vm1012, %v2762, %v2763
        %v2765 = vrot.slane %v2693, 7
        %v2766 = vrot.slane %v2765, 4
        %v2767 = vrot.slane %v2694, 7
        %v2768 = vsel %vm1012, %v2766, %v2767
        %v2769 = vrot.slane %v2767, 4
        %v2770 = vrot.slane %v2695, 7
        %v2771 = vsel %vm1012, %v2769, %v2770
        %v2772 = vrot.slane %v2696, 7
        %v2773 = vrot.slane %v2772, 4
        %v2774 = vrot.slane %v2697, 7
        %v2775 = vsel %vm1012, %v2773, %v2774
        %v2776 = vrot.slane %v2774, 4
        %v2777 = vrot.slane %v2698, 7
        %v2778 = vsel %vm1012, %v2776, %v2777
        %s2779 = scalar_lea.vmem [#allocation5], 640
        %v2780 = vld [vmem:[%s2779] sm:$0xf]
        %v2781 = vld [vmem:[%s2779 + $0x4] sm:$0xf]
        %v2782 = vld [vmem:[%s2779 + $0x8] sm:$0xf]
        %v2783 = vld [vmem:[%s2779 + $0xc] sm:$0xf]
        %v2784 = vld [vmem:[%s2779 + $0x10] sm:$0xf]
        %v2785 = vld [vmem:[%s2779 + $0x14] sm:$0xf]
        %v2786 = vld [vmem:[%s2779 + $0x18] sm:$0xf]
        %v2787 = vld [vmem:[%s2779 + $0x1c] sm:$0xf]
        %v2788 = vld [vmem:[%s2779 + $0x20] sm:$0xf]
        %v2789 = vld [vmem:[%s2779 + $0x24] sm:$0xf]
        %v2790 = vld [vmem:[%s2779 + $0x28] sm:$0xf]
        %v2791 = vld [vmem:[%s2779 + $0x2c] sm:$0xf]
        %v2792 = vld [vmem:[%s2779 + $0x30] sm:$0xf]
        %v2793 = vld [vmem:[%s2779 + $0x34] sm:$0xf]
        %v2794 = vld [vmem:[%s2779 + $0x38] sm:$0xf]
        %v2795 = vld [vmem:[%s2779 + $0x3c] sm:$0xf]
        %v2796 = vunpack.c.l.b16 %v2726
        %v2797 = vunpack.c.l.b16 %v2729
        %v2798 = vunpack.c.l.b16 %v2733
        %v2799 = vunpack.c.l.b16 %v2736
        %v2800 = vunpack.c.l.b16 %v2740
        %v2801 = vunpack.c.l.b16 %v2743
        %v2802 = vunpack.c.l.b16 %v2747
        %v2803 = vunpack.c.l.b16 %v2750
        %v2804 = vunpack.c.l.b16 %v2754
        %v2805 = vunpack.c.l.b16 %v2757
        %v2806 = vunpack.c.l.b16 %v2761
        %v2807 = vunpack.c.l.b16 %v2764
        %v2808 = vunpack.c.l.b16 %v2768
        %v2809 = vunpack.c.l.b16 %v2771
        %v2810 = vunpack.c.l.b16 %v2775
        %v2811 = vunpack.c.l.b16 %v2778
        %v2812 = vpack.c.b16 %v2797, %v2796
        %v2813 = vpack.c.b16 %v2799, %v2798
        %v2814 = vpack.c.b16 %v2801, %v2800
        %v2815 = vpack.c.b16 %v2803, %v2802
        %v2816 = vpack.c.b16 %v2805, %v2804
        %v2817 = vpack.c.b16 %v2807, %v2806
        %v2818 = vpack.c.b16 %v2809, %v2808
        %v2819 = vpack.c.b16 %v2811, %v2810
        %v2844 = vunpack.c.l.b16 %v2780
        %v2845 = vunpack.c.l.b16 %v2781
        %v2846 = vunpack.c.l.b16 %v2782
        %v2847 = vunpack.c.l.b16 %v2783
        %v2848 = vunpack.c.l.b16 %v2784
        %v2849 = vunpack.c.l.b16 %v2785
        %v2850 = vunpack.c.l.b16 %v2786
        %v2851 = vunpack.c.l.b16 %v2787
        %v2852 = vunpack.c.l.b16 %v2788
        %v2853 = vunpack.c.l.b16 %v2789
        %v2854 = vunpack.c.l.b16 %v2790
        %v2855 = vunpack.c.l.b16 %v2791
        %v2856 = vunpack.c.l.b16 %v2792
        %v2857 = vunpack.c.l.b16 %v2793
        %v2858 = vunpack.c.l.b16 %v2794
        %v2859 = vunpack.c.l.b16 %v2795
        %v2860 = vpack.c.b16 %v2845, %v2844
        %v2861 = vpack.c.b16 %v2847, %v2846
        %v2862 = vpack.c.b16 %v2849, %v2848
        %v2863 = vpack.c.b16 %v2851, %v2850
        %v2864 = vpack.c.b16 %v2853, %v2852
        %v2865 = vpack.c.b16 %v2855, %v2854
        %v2866 = vpack.c.b16 %v2857, %v2856
        %v2867 = vpack.c.b16 %v2859, %v2858
        %2876 = vmatpush.bf16.msra.mxu0 %v2867
        %2877 = vmatpush.bf16.msra.mxu0 %v2866
        %2878 = vmatpush.bf16.msra.mxu0 %v2865
        %2879 = vmatpush.bf16.msra.mxu0 %v2864
        %2880 = vmatpush.bf16.msra.mxu0 %v2863
        %2881 = vmatpush.bf16.msra.mxu0 %v2862
        %2882 = vmatpush.bf16.msra.mxu0 %v2861
        %2883 = vmatpush.bf16.msra.mxu0 %v2860
        %2884 = vmatmul.bf16.gmra.mxu0 %v2812
        %v2885 = vpop.f32.mrf.mxu0
        %v2886 = vadd.f32 0.0, %v2885
        %v2887 = vpop.f32.mrf.mxu0
        %v2888 = vadd.f32 0.0, %v2887
        %2889 = vmatmul.bf16.gmra.mxu0 %v2813
        %v2890 = vpop.f32.mrf.mxu0
        %v2891 = vadd.f32 0.0, %v2890
        %v2892 = vpop.f32.mrf.mxu0
        %v2893 = vadd.f32 0.0, %v2892
        %2894 = vmatmul.bf16.gmra.mxu0 %v2814
        %v2895 = vpop.f32.mrf.mxu0
        %v2896 = vadd.f32 0.0, %v2895
        %v2897 = vpop.f32.mrf.mxu0
        %v2898 = vadd.f32 0.0, %v2897
        %2899 = vmatmul.bf16.gmra.mxu0 %v2815
        %v2900 = vpop.f32.mrf.mxu0
        %v2901 = vadd.f32 0.0, %v2900
        %v2902 = vpop.f32.mrf.mxu0
        %v2903 = vadd.f32 0.0, %v2902
        %2904 = vmatmul.bf16.gmra.mxu0 %v2816
        %v2905 = vpop.f32.mrf.mxu0
        %v2906 = vadd.f32 0.0, %v2905
        %v2907 = vpop.f32.mrf.mxu0
        %v2908 = vadd.f32 0.0, %v2907
        %2909 = vmatmul.bf16.gmra.mxu0 %v2817
        %v2910 = vpop.f32.mrf.mxu0
        %v2911 = vadd.f32 0.0, %v2910
        %v2912 = vpop.f32.mrf.mxu0
        %v2913 = vadd.f32 0.0, %v2912
        %2914 = vmatmul.bf16.gmra.mxu0 %v2818
        %v2915 = vpop.f32.mrf.mxu0
        %v2916 = vadd.f32 0.0, %v2915
        %v2917 = vpop.f32.mrf.mxu0
        %v2918 = vadd.f32 0.0, %v2917
        %2919 = vmatmul.bf16.gmra.mxu0 %v2819
        %v2920 = vpop.f32.mrf.mxu0
        %v2921 = vadd.f32 0.0, %v2920
        %v2922 = vpop.f32.mrf.mxu0
        %v2923 = vadd.f32 0.0, %v2922
        %2924 = vdwg.mxu0
        %v2925 = vadd.f32 %v2659, %v2886
        %v2926 = vadd.f32 %v2660, %v2888
        %v2927 = vadd.f32 %v2661, %v2891
        %v2928 = vadd.f32 %v2662, %v2893
        %v2929 = vadd.f32 %v2663, %v2896
        %v2930 = vadd.f32 %v2664, %v2898
        %v2931 = vadd.f32 %v2665, %v2901
        %v2932 = vadd.f32 %v2666, %v2903
        %v2933 = vadd.f32 %v2667, %v2906
        %v2934 = vadd.f32 %v2668, %v2908
        %v2935 = vadd.f32 %v2669, %v2911
        %v2936 = vadd.f32 %v2670, %v2913
        %v2937 = vadd.f32 %v2671, %v2916
        %v2938 = vadd.f32 %v2672, %v2918
        %v2939 = vadd.f32 %v2673, %v2921
        %v2940 = vadd.f32 %v2674, %v2923
        %v2941 = vld [vmem:[%s2480 + $0x4] sm:$0xc]
        %v2942 = vld [vmem:[%s2480 + $0x8] sm:$0xf]
        %v2943 = vld [vmem:[%s2480 + $0xc] sm:$0x3]
        %v2944 = vld [vmem:[%s2480 + $0x20] sm:$0xc]
        %v2945 = vld [vmem:[%s2480 + $0x24] sm:$0xf]
        %v2946 = vld [vmem:[%s2480 + $0x28] sm:$0x3]
        %v2947 = vld [vmem:[%s2480 + $0x3c] sm:$0xc]
        %v2948 = vld [vmem:[%s2480 + $0x40] sm:$0xf]
        %v2949 = vld [vmem:[%s2480 + $0x44] sm:$0x3]
        %v2950 = vld [vmem:[%s2480 + $0x58] sm:$0xc]
        %v2951 = vld [vmem:[%s2480 + $0x5c] sm:$0xf]
        %v2952 = vld [vmem:[%s2480 + $0x60] sm:$0x3]
        %v2953 = vld [vmem:[%s2480 + $0x74] sm:$0xc]
        %v2954 = vld [vmem:[%s2480 + $0x78] sm:$0xf]
        %v2955 = vld [vmem:[%s2480 + $0x7c] sm:$0x3]
        %v2956 = vld [vmem:[%s2480 + $0x90] sm:$0xc]
        %v2957 = vld [vmem:[%s2480 + $0x94] sm:$0xf]
        %v2958 = vld [vmem:[%s2480 + $0x98] sm:$0x3]
        %v2959 = vld [vmem:[%s2480 + $0xac] sm:$0xc]
        %v2960 = vld [vmem:[%s2480 + $0xb0] sm:$0xf]
        %v2961 = vld [vmem:[%s2480 + $0xb4] sm:$0x3]
        %v2962 = vld [vmem:[%s2480 + $0xc8] sm:$0xc]
        %v2963 = vld [vmem:[%s2480 + $0xcc] sm:$0xf]
        %v2964 = vld [vmem:[%s2480 + $0xd0] sm:$0x3]
        %v2989 = vrot.slane %v2941, 6
        %v2990 = vrot.slane %v2989, 4
        %v2991 = vrot.slane %v2942, 6
        %v2992 = vsel %vm739, %v2990, %v2991
        %v2993 = vrot.slane %v2991, 4
        %v2994 = vrot.slane %v2943, 6
        %v2995 = vsel %vm739, %v2993, %v2994
        %v2996 = vrot.slane %v2944, 6
        %v2997 = vrot.slane %v2996, 4
        %v2998 = vrot.slane %v2945, 6
        %v2999 = vsel %vm739, %v2997, %v2998
        %v3000 = vrot.slane %v2998, 4
        %v3001 = vrot.slane %v2946, 6
        %v3002 = vsel %vm739, %v3000, %v3001
        %v3003 = vrot.slane %v2947, 6
        %v3004 = vrot.slane %v3003, 4
        %v3005 = vrot.slane %v2948, 6
        %v3006 = vsel %vm739, %v3004, %v3005
        %v3007 = vrot.slane %v3005, 4
        %v3008 = vrot.slane %v2949, 6
        %v3009 = vsel %vm739, %v3007, %v3008
        %v3010 = vrot.slane %v2950, 6
        %v3011 = vrot.slane %v3010, 4
        %v3012 = vrot.slane %v2951, 6
        %v3013 = vsel %vm739, %v3011, %v3012
        %v3014 = vrot.slane %v3012, 4
        %v3015 = vrot.slane %v2952, 6
        %v3016 = vsel %vm739, %v3014, %v3015
        %v3017 = vrot.slane %v2953, 6
        %v3018 = vrot.slane %v3017, 4
        %v3019 = vrot.slane %v2954, 6
        %v3020 = vsel %vm739, %v3018, %v3019
        %v3021 = vrot.slane %v3019, 4
        %v3022 = vrot.slane %v2955, 6
        %v3023 = vsel %vm739, %v3021, %v3022
        %v3024 = vrot.slane %v2956, 6
        %v3025 = vrot.slane %v3024, 4
        %v3026 = vrot.slane %v2957, 6
        %v3027 = vsel %vm739, %v3025, %v3026
        %v3028 = vrot.slane %v3026, 4
        %v3029 = vrot.slane %v2958, 6
        %v3030 = vsel %vm739, %v3028, %v3029
        %v3031 = vrot.slane %v2959, 6
        %v3032 = vrot.slane %v3031, 4
        %v3033 = vrot.slane %v2960, 6
        %v3034 = vsel %vm739, %v3032, %v3033
        %v3035 = vrot.slane %v3033, 4
        %v3036 = vrot.slane %v2961, 6
        %v3037 = vsel %vm739, %v3035, %v3036
        %v3038 = vrot.slane %v2962, 6
        %v3039 = vrot.slane %v3038, 4
        %v3040 = vrot.slane %v2963, 6
        %v3041 = vsel %vm739, %v3039, %v3040
        %v3042 = vrot.slane %v3040, 4
        %v3043 = vrot.slane %v2964, 6
        %v3044 = vsel %vm739, %v3042, %v3043
        %s3045 = scalar_lea.vmem [#allocation5], 704
        %v3046 = vld [vmem:[%s3045] sm:$0xf]
        %v3047 = vld [vmem:[%s3045 + $0x4] sm:$0xf]
        %v3048 = vld [vmem:[%s3045 + $0x8] sm:$0xf]
        %v3049 = vld [vmem:[%s3045 + $0xc] sm:$0xf]
        %v3050 = vld [vmem:[%s3045 + $0x10] sm:$0xf]
        %v3051 = vld [vmem:[%s3045 + $0x14] sm:$0xf]
        %v3052 = vld [vmem:[%s3045 + $0x18] sm:$0xf]
        %v3053 = vld [vmem:[%s3045 + $0x1c] sm:$0xf]
        %v3054 = vld [vmem:[%s3045 + $0x20] sm:$0xf]
        %v3055 = vld [vmem:[%s3045 + $0x24] sm:$0xf]
        %v3056 = vld [vmem:[%s3045 + $0x28] sm:$0xf]
        %v3057 = vld [vmem:[%s3045 + $0x2c] sm:$0xf]
        %v3058 = vld [vmem:[%s3045 + $0x30] sm:$0xf]
        %v3059 = vld [vmem:[%s3045 + $0x34] sm:$0xf]
        %v3060 = vld [vmem:[%s3045 + $0x38] sm:$0xf]
        %v3061 = vld [vmem:[%s3045 + $0x3c] sm:$0xf]
        %v3062 = vunpack.c.l.b16 %v2992
        %v3063 = vunpack.c.l.b16 %v2995
        %v3064 = vunpack.c.l.b16 %v2999
        %v3065 = vunpack.c.l.b16 %v3002
        %v3066 = vunpack.c.l.b16 %v3006
        %v3067 = vunpack.c.l.b16 %v3009
        %v3068 = vunpack.c.l.b16 %v3013
        %v3069 = vunpack.c.l.b16 %v3016
        %v3070 = vunpack.c.l.b16 %v3020
        %v3071 = vunpack.c.l.b16 %v3023
        %v3072 = vunpack.c.l.b16 %v3027
        %v3073 = vunpack.c.l.b16 %v3030
        %v3074 = vunpack.c.l.b16 %v3034
        %v3075 = vunpack.c.l.b16 %v3037
        %v3076 = vunpack.c.l.b16 %v3041
        %v3077 = vunpack.c.l.b16 %v3044
        %v3078 = vpack.c.b16 %v3063, %v3062
        %v3079 = vpack.c.b16 %v3065, %v3064
        %v3080 = vpack.c.b16 %v3067, %v3066
        %v3081 = vpack.c.b16 %v3069, %v3068
        %v3082 = vpack.c.b16 %v3071, %v3070
        %v3083 = vpack.c.b16 %v3073, %v3072
        %v3084 = vpack.c.b16 %v3075, %v3074
        %v3085 = vpack.c.b16 %v3077, %v3076
        %v3110 = vunpack.c.l.b16 %v3046
        %v3111 = vunpack.c.l.b16 %v3047
        %v3112 = vunpack.c.l.b16 %v3048
        %v3113 = vunpack.c.l.b16 %v3049
        %v3114 = vunpack.c.l.b16 %v3050
        %v3115 = vunpack.c.l.b16 %v3051
        %v3116 = vunpack.c.l.b16 %v3052
        %v3117 = vunpack.c.l.b16 %v3053
        %v3118 = vunpack.c.l.b16 %v3054
        %v3119 = vunpack.c.l.b16 %v3055
        %v3120 = vunpack.c.l.b16 %v3056
        %v3121 = vunpack.c.l.b16 %v3057
        %v3122 = vunpack.c.l.b16 %v3058
        %v3123 = vunpack.c.l.b16 %v3059
        %v3124 = vunpack.c.l.b16 %v3060
        %v3125 = vunpack.c.l.b16 %v3061
        %v3126 = vpack.c.b16 %v3111, %v3110
        %v3127 = vpack.c.b16 %v3113, %v3112
        %v3128 = vpack.c.b16 %v3115, %v3114
        %v3129 = vpack.c.b16 %v3117, %v3116
        %v3130 = vpack.c.b16 %v3119, %v3118
        %v3131 = vpack.c.b16 %v3121, %v3120
        %v3132 = vpack.c.b16 %v3123, %v3122
        %v3133 = vpack.c.b16 %v3125, %v3124
        %3142 = vmatpush.bf16.msra.mxu0 %v3133
        %3143 = vmatpush.bf16.msra.mxu0 %v3132
        %3144 = vmatpush.bf16.msra.mxu0 %v3131
        %3145 = vmatpush.bf16.msra.mxu0 %v3130
        %3146 = vmatpush.bf16.msra.mxu0 %v3129
        %3147 = vmatpush.bf16.msra.mxu0 %v3128
        %3148 = vmatpush.bf16.msra.mxu0 %v3127
        %3149 = vmatpush.bf16.msra.mxu0 %v3126
        %3150 = vmatmul.bf16.gmra.mxu0 %v3078
        %v3151 = vpop.f32.mrf.mxu0
        %v3152 = vadd.f32 0.0, %v3151
        %v3153 = vpop.f32.mrf.mxu0
        %v3154 = vadd.f32 0.0, %v3153
        %3155 = vmatmul.bf16.gmra.mxu0 %v3079
        %v3156 = vpop.f32.mrf.mxu0
        %v3157 = vadd.f32 0.0, %v3156
        %v3158 = vpop.f32.mrf.mxu0
        %v3159 = vadd.f32 0.0, %v3158
        %3160 = vmatmul.bf16.gmra.mxu0 %v3080
        %v3161 = vpop.f32.mrf.mxu0
        %v3162 = vadd.f32 0.0, %v3161
        %v3163 = vpop.f32.mrf.mxu0
        %v3164 = vadd.f32 0.0, %v3163
        %3165 = vmatmul.bf16.gmra.mxu0 %v3081
        %v3166 = vpop.f32.mrf.mxu0
        %v3167 = vadd.f32 0.0, %v3166
        %v3168 = vpop.f32.mrf.mxu0
        %v3169 = vadd.f32 0.0, %v3168
        %3170 = vmatmul.bf16.gmra.mxu0 %v3082
        %v3171 = vpop.f32.mrf.mxu0
        %v3172 = vadd.f32 0.0, %v3171
        %v3173 = vpop.f32.mrf.mxu0
        %v3174 = vadd.f32 0.0, %v3173
        %3175 = vmatmul.bf16.gmra.mxu0 %v3083
        %v3176 = vpop.f32.mrf.mxu0
        %v3177 = vadd.f32 0.0, %v3176
        %v3178 = vpop.f32.mrf.mxu0
        %v3179 = vadd.f32 0.0, %v3178
        %3180 = vmatmul.bf16.gmra.mxu0 %v3084
        %v3181 = vpop.f32.mrf.mxu0
        %v3182 = vadd.f32 0.0, %v3181
        %v3183 = vpop.f32.mrf.mxu0
        %v3184 = vadd.f32 0.0, %v3183
        %3185 = vmatmul.bf16.gmra.mxu0 %v3085
        %v3186 = vpop.f32.mrf.mxu0
        %v3187 = vadd.f32 0.0, %v3186
        %v3188 = vpop.f32.mrf.mxu0
        %v3189 = vadd.f32 0.0, %v3188
        %3190 = vdwg.mxu0
        %v3191 = vadd.f32 %v2925, %v3152
        %v3192 = vadd.f32 %v2926, %v3154
        %v3193 = vadd.f32 %v2927, %v3157
        %v3194 = vadd.f32 %v2928, %v3159
        %v3195 = vadd.f32 %v2929, %v3162
        %v3196 = vadd.f32 %v2930, %v3164
        %v3197 = vadd.f32 %v2931, %v3167
        %v3198 = vadd.f32 %v2932, %v3169
        %v3199 = vadd.f32 %v2933, %v3172
        %v3200 = vadd.f32 %v2934, %v3174
        %v3201 = vadd.f32 %v2935, %v3177
        %v3202 = vadd.f32 %v2936, %v3179
        %v3203 = vadd.f32 %v2937, %v3182
        %v3204 = vadd.f32 %v2938, %v3184
        %v3205 = vadd.f32 %v2939, %v3187
        %v3206 = vadd.f32 %v2940, %v3189
        %v3207 = vld [vmem:[%s2480 + $0x8] sm:$0xe]
        %v3208 = vld [vmem:[%s2480 + $0xc] sm:$0xf]
        %v3209 = vld [vmem:[%s2480 + $0x10] sm:$0x1]
        %v3210 = vld [vmem:[%s2480 + $0x24] sm:$0xe]
        %v3211 = vld [vmem:[%s2480 + $0x28] sm:$0xf]
        %v3212 = vld [vmem:[%s2480 + $0x2c] sm:$0x1]
        %v3213 = vld [vmem:[%s2480 + $0x40] sm:$0xe]
        %v3214 = vld [vmem:[%s2480 + $0x44] sm:$0xf]
        %v3215 = vld [vmem:[%s2480 + $0x48] sm:$0x1]
        %v3216 = vld [vmem:[%s2480 + $0x5c] sm:$0xe]
        %v3217 = vld [vmem:[%s2480 + $0x60] sm:$0xf]
        %v3218 = vld [vmem:[%s2480 + $0x64] sm:$0x1]
        %v3219 = vld [vmem:[%s2480 + $0x78] sm:$0xe]
        %v3220 = vld [vmem:[%s2480 + $0x7c] sm:$0xf]
        %v3221 = vld [vmem:[%s2480 + $0x80] sm:$0x1]
        %v3222 = vld [vmem:[%s2480 + $0x94] sm:$0xe]
        %v3223 = vld [vmem:[%s2480 + $0x98] sm:$0xf]
        %v3224 = vld [vmem:[%s2480 + $0x9c] sm:$0x1]
        %v3225 = vld [vmem:[%s2480 + $0xb0] sm:$0xe]
        %v3226 = vld [vmem:[%s2480 + $0xb4] sm:$0xf]
        %v3227 = vld [vmem:[%s2480 + $0xb8] sm:$0x1]
        %v3228 = vld [vmem:[%s2480 + $0xcc] sm:$0xe]
        %v3229 = vld [vmem:[%s2480 + $0xd0] sm:$0xf]
        %v3230 = vld [vmem:[%s2480 + $0xd4] sm:$0x1]
        %v3255 = vrot.slane %v3207, 5
        %v3256 = vrot.slane %v3255, 4
        %v3257 = vrot.slane %v3208, 5
        %v3258 = vsel %vm341, %v3256, %v3257
        %v3259 = vrot.slane %v3257, 4
        %v3260 = vrot.slane %v3209, 5
        %v3261 = vsel %vm341, %v3259, %v3260
        %v3262 = vrot.slane %v3210, 5
        %v3263 = vrot.slane %v3262, 4
        %v3264 = vrot.slane %v3211, 5
        %v3265 = vsel %vm341, %v3263, %v3264
        %v3266 = vrot.slane %v3264, 4
        %v3267 = vrot.slane %v3212, 5
        %v3268 = vsel %vm341, %v3266, %v3267
        %v3269 = vrot.slane %v3213, 5
        %v3270 = vrot.slane %v3269, 4
        %v3271 = vrot.slane %v3214, 5
        %v3272 = vsel %vm341, %v3270, %v3271
        %v3273 = vrot.slane %v3271, 4
        %v3274 = vrot.slane %v3215, 5
        %v3275 = vsel %vm341, %v3273, %v3274
        %v3276 = vrot.slane %v3216, 5
        %v3277 = vrot.slane %v3276, 4
        %v3278 = vrot.slane %v3217, 5
        %v3279 = vsel %vm341, %v3277, %v3278
        %v3280 = vrot.slane %v3278, 4
        %v3281 = vrot.slane %v3218, 5
        %v3282 = vsel %vm341, %v3280, %v3281
        %v3283 = vrot.slane %v3219, 5
        %v3284 = vrot.slane %v3283, 4
        %v3285 = vrot.slane %v3220, 5
        %v3286 = vsel %vm341, %v3284, %v3285
        %v3287 = vrot.slane %v3285, 4
        %v3288 = vrot.slane %v3221, 5
        %v3289 = vsel %vm341, %v3287, %v3288
        %v3290 = vrot.slane %v3222, 5
        %v3291 = vrot.slane %v3290, 4
        %v3292 = vrot.slane %v3223, 5
        %v3293 = vsel %vm341, %v3291, %v3292
        %v3294 = vrot.slane %v3292, 4
        %v3295 = vrot.slane %v3224, 5
        %v3296 = vsel %vm341, %v3294, %v3295
        %v3297 = vrot.slane %v3225, 5
        %v3298 = vrot.slane %v3297, 4
        %v3299 = vrot.slane %v3226, 5
        %v3300 = vsel %vm341, %v3298, %v3299
        %v3301 = vrot.slane %v3299, 4
        %v3302 = vrot.slane %v3227, 5
        %v3303 = vsel %vm341, %v3301, %v3302
        %v3304 = vrot.slane %v3228, 5
        %v3305 = vrot.slane %v3304, 4
        %v3306 = vrot.slane %v3229, 5
        %v3307 = vsel %vm341, %v3305, %v3306
        %v3308 = vrot.slane %v3306, 4
        %v3309 = vrot.slane %v3230, 5
        %v3310 = vsel %vm341, %v3308, %v3309
        %s3311 = scalar_lea.vmem [#allocation5], 768
        %v3312 = vld [vmem:[%s3311] sm:$0xf]
        %v3313 = vld [vmem:[%s3311 + $0x4] sm:$0xf]
        %v3314 = vld [vmem:[%s3311 + $0x8] sm:$0xf]
        %v3315 = vld [vmem:[%s3311 + $0xc] sm:$0xf]
        %v3316 = vld [vmem:[%s3311 + $0x10] sm:$0xf]
        %v3317 = vld [vmem:[%s3311 + $0x14] sm:$0xf]
        %v3318 = vld [vmem:[%s3311 + $0x18] sm:$0xf]
        %v3319 = vld [vmem:[%s3311 + $0x1c] sm:$0xf]
        %v3320 = vld [vmem:[%s3311 + $0x20] sm:$0xf]
        %v3321 = vld [vmem:[%s3311 + $0x24] sm:$0xf]
        %v3322 = vld [vmem:[%s3311 + $0x28] sm:$0xf]
        %v3323 = vld [vmem:[%s3311 + $0x2c] sm:$0xf]
        %v3324 = vld [vmem:[%s3311 + $0x30] sm:$0xf]
        %v3325 = vld [vmem:[%s3311 + $0x34] sm:$0xf]
        %v3326 = vld [vmem:[%s3311 + $0x38] sm:$0xf]
        %v3327 = vld [vmem:[%s3311 + $0x3c] sm:$0xf]
        %v3328 = vunpack.c.l.b16 %v3258
        %v3329 = vunpack.c.l.b16 %v3261
        %v3330 = vunpack.c.l.b16 %v3265
        %v3331 = vunpack.c.l.b16 %v3268
        %v3332 = vunpack.c.l.b16 %v3272
        %v3333 = vunpack.c.l.b16 %v3275
        %v3334 = vunpack.c.l.b16 %v3279
        %v3335 = vunpack.c.l.b16 %v3282
        %v3336 = vunpack.c.l.b16 %v3286
        %v3337 = vunpack.c.l.b16 %v3289
        %v3338 = vunpack.c.l.b16 %v3293
        %v3339 = vunpack.c.l.b16 %v3296
        %v3340 = vunpack.c.l.b16 %v3300
        %v3341 = vunpack.c.l.b16 %v3303
        %v3342 = vunpack.c.l.b16 %v3307
        %v3343 = vunpack.c.l.b16 %v3310
        %v3344 = vpack.c.b16 %v3329, %v3328
        %v3345 = vpack.c.b16 %v3331, %v3330
        %v3346 = vpack.c.b16 %v3333, %v3332
        %v3347 = vpack.c.b16 %v3335, %v3334
        %v3348 = vpack.c.b16 %v3337, %v3336
        %v3349 = vpack.c.b16 %v3339, %v3338
        %v3350 = vpack.c.b16 %v3341, %v3340
        %v3351 = vpack.c.b16 %v3343, %v3342
        %v3376 = vunpack.c.l.b16 %v3312
        %v3377 = vunpack.c.l.b16 %v3313
        %v3378 = vunpack.c.l.b16 %v3314
        %v3379 = vunpack.c.l.b16 %v3315
        %v3380 = vunpack.c.l.b16 %v3316
        %v3381 = vunpack.c.l.b16 %v3317
        %v3382 = vunpack.c.l.b16 %v3318
        %v3383 = vunpack.c.l.b16 %v3319
        %v3384 = vunpack.c.l.b16 %v3320
        %v3385 = vunpack.c.l.b16 %v3321
        %v3386 = vunpack.c.l.b16 %v3322
        %v3387 = vunpack.c.l.b16 %v3323
        %v3388 = vunpack.c.l.b16 %v3324
        %v3389 = vunpack.c.l.b16 %v3325
        %v3390 = vunpack.c.l.b16 %v3326
        %v3391 = vunpack.c.l.b16 %v3327
        %v3392 = vpack.c.b16 %v3377, %v3376
        %v3393 = vpack.c.b16 %v3379, %v3378
        %v3394 = vpack.c.b16 %v3381, %v3380
        %v3395 = vpack.c.b16 %v3383, %v3382
        %v3396 = vpack.c.b16 %v3385, %v3384
        %v3397 = vpack.c.b16 %v3387, %v3386
        %v3398 = vpack.c.b16 %v3389, %v3388
        %v3399 = vpack.c.b16 %v3391, %v3390
        %3408 = vmatpush.bf16.msra.mxu0 %v3399
        %3409 = vmatpush.bf16.msra.mxu0 %v3398
        %3410 = vmatpush.bf16.msra.mxu0 %v3397
        %3411 = vmatpush.bf16.msra.mxu0 %v3396
        %3412 = vmatpush.bf16.msra.mxu0 %v3395
        %3413 = vmatpush.bf16.msra.mxu0 %v3394
        %3414 = vmatpush.bf16.msra.mxu0 %v3393
        %3415 = vmatpush.bf16.msra.mxu0 %v3392
        %3416 = vmatmul.bf16.gmra.mxu0 %v3344
        %v3417 = vpop.f32.mrf.mxu0
        %v3418 = vadd.f32 0.0, %v3417
        %v3419 = vpop.f32.mrf.mxu0
        %v3420 = vadd.f32 0.0, %v3419
        %3421 = vmatmul.bf16.gmra.mxu0 %v3345
        %v3422 = vpop.f32.mrf.mxu0
        %v3423 = vadd.f32 0.0, %v3422
        %v3424 = vpop.f32.mrf.mxu0
        %v3425 = vadd.f32 0.0, %v3424
        %3426 = vmatmul.bf16.gmra.mxu0 %v3346
        %v3427 = vpop.f32.mrf.mxu0
        %v3428 = vadd.f32 0.0, %v3427
        %v3429 = vpop.f32.mrf.mxu0
        %v3430 = vadd.f32 0.0, %v3429
        %3431 = vmatmul.bf16.gmra.mxu0 %v3347
        %v3432 = vpop.f32.mrf.mxu0
        %v3433 = vadd.f32 0.0, %v3432
        %v3434 = vpop.f32.mrf.mxu0
        %v3435 = vadd.f32 0.0, %v3434
        %3436 = vmatmul.bf16.gmra.mxu0 %v3348
        %v3437 = vpop.f32.mrf.mxu0
        %v3438 = vadd.f32 0.0, %v3437
        %v3439 = vpop.f32.mrf.mxu0
        %v3440 = vadd.f32 0.0, %v3439
        %3441 = vmatmul.bf16.gmra.mxu0 %v3349
        %v3442 = vpop.f32.mrf.mxu0
        %v3443 = vadd.f32 0.0, %v3442
        %v3444 = vpop.f32.mrf.mxu0
        %v3445 = vadd.f32 0.0, %v3444
        %3446 = vmatmul.bf16.gmra.mxu0 %v3350
        %v3447 = vpop.f32.mrf.mxu0
        %v3448 = vadd.f32 0.0, %v3447
        %v3449 = vpop.f32.mrf.mxu0
        %v3450 = vadd.f32 0.0, %v3449
        %3451 = vmatmul.bf16.gmra.mxu0 %v3351
        %v3452 = vpop.f32.mrf.mxu0
        %v3453 = vadd.f32 0.0, %v3452
        %v3454 = vpop.f32.mrf.mxu0
        %v3455 = vadd.f32 0.0, %v3454
        %3456 = vdwg.mxu0
        %v3457 = vadd.f32 %v3191, %v3418
        %v3458 = vadd.f32 %v3192, %v3420
        %v3459 = vadd.f32 %v3193, %v3423
        %v3460 = vadd.f32 %v3194, %v3425
        %v3461 = vadd.f32 %v3195, %v3428
        %v3462 = vadd.f32 %v3196, %v3430
        %v3463 = vadd.f32 %v3197, %v3433
        %v3464 = vadd.f32 %v3198, %v3435
        %v3465 = vadd.f32 %v3199, %v3438
        %v3466 = vadd.f32 %v3200, %v3440
        %v3467 = vadd.f32 %v3201, %v3443
        %v3468 = vadd.f32 %v3202, %v3445
        %v3469 = vadd.f32 %v3203, %v3448
        %v3470 = vadd.f32 %v3204, %v3450
        %v3471 = vadd.f32 %v3205, %v3453
        %v3472 = vadd.f32 %v3206, %v3455
        %v3473 = vld [vmem:[%s2480 + $0x10] sm:$0xf]
        %v3474 = vld [vmem:[%s2480 + $0x2c] sm:$0xf]
        %v3475 = vld [vmem:[%s2480 + $0x48] sm:$0xf]
        %v3476 = vld [vmem:[%s2480 + $0x64] sm:$0xf]
        %v3477 = vld [vmem:[%s2480 + $0x80] sm:$0xf]
        %v3478 = vld [vmem:[%s2480 + $0x9c] sm:$0xf]
        %v3479 = vld [vmem:[%s2480 + $0xb8] sm:$0xf]
        %v3480 = vld [vmem:[%s2480 + $0xd4] sm:$0xf]
        %s3481 = scalar_lea.vmem [#allocation5], 832
        %v3482 = vld [vmem:[%s3481] sm:$0xf]
        %v3483 = vld [vmem:[%s3481 + $0x4] sm:$0xf]
        %v3484 = vld [vmem:[%s3481 + $0x8] sm:$0xf]
        %v3485 = vld [vmem:[%s3481 + $0xc] sm:$0xf]
        %v3486 = vld [vmem:[%s3481 + $0x10] sm:$0xf]
        %v3487 = vld [vmem:[%s3481 + $0x14] sm:$0xf]
        %v3488 = vld [vmem:[%s3481 + $0x18] sm:$0xf]
        %v3489 = vld [vmem:[%s3481 + $0x1c] sm:$0xf]
        %v3490 = vld [vmem:[%s3481 + $0x20] sm:$0xf]
        %v3491 = vld [vmem:[%s3481 + $0x24] sm:$0xf]
        %v3492 = vld [vmem:[%s3481 + $0x28] sm:$0xf]
        %v3493 = vld [vmem:[%s3481 + $0x2c] sm:$0xf]
        %v3494 = vld [vmem:[%s3481 + $0x30] sm:$0xf]
        %v3495 = vld [vmem:[%s3481 + $0x34] sm:$0xf]
        %v3496 = vld [vmem:[%s3481 + $0x38] sm:$0xf]
        %v3497 = vld [vmem:[%s3481 + $0x3c] sm:$0xf]
        %v3506 = vunpack.c.l.b16 %v3208
        %v3507 = vunpack.c.l.b16 %v3473
        %v3508 = vunpack.c.l.b16 %v3211
        %v3509 = vunpack.c.l.b16 %v3474
        %v3510 = vunpack.c.l.b16 %v3214
        %v3511 = vunpack.c.l.b16 %v3475
        %v3512 = vunpack.c.l.b16 %v3217
        %v3513 = vunpack.c.l.b16 %v3476
        %v3514 = vunpack.c.l.b16 %v3220
        %v3515 = vunpack.c.l.b16 %v3477
        %v3516 = vunpack.c.l.b16 %v3223
        %v3517 = vunpack.c.l.b16 %v3478
        %v3518 = vunpack.c.l.b16 %v3226
        %v3519 = vunpack.c.l.b16 %v3479
        %v3520 = vunpack.c.l.b16 %v3229
        %v3521 = vunpack.c.l.b16 %v3480
        %v3522 = vpack.c.b16 %v3507, %v3506
        %v3523 = vpack.c.b16 %v3509, %v3508
        %v3524 = vpack.c.b16 %v3511, %v3510
        %v3525 = vpack.c.b16 %v3513, %v3512
        %v3526 = vpack.c.b16 %v3515, %v3514
        %v3527 = vpack.c.b16 %v3517, %v3516
        %v3528 = vpack.c.b16 %v3519, %v3518
        %v3529 = vpack.c.b16 %v3521, %v3520
        %v3554 = vunpack.c.l.b16 %v3482
        %v3555 = vunpack.c.l.b16 %v3483
        %v3556 = vunpack.c.l.b16 %v3484
        %v3557 = vunpack.c.l.b16 %v3485
        %v3558 = vunpack.c.l.b16 %v3486
        %v3559 = vunpack.c.l.b16 %v3487
        %v3560 = vunpack.c.l.b16 %v3488
        %v3561 = vunpack.c.l.b16 %v3489
        %v3562 = vunpack.c.l.b16 %v3490
        %v3563 = vunpack.c.l.b16 %v3491
        %v3564 = vunpack.c.l.b16 %v3492
        %v3565 = vunpack.c.l.b16 %v3493
        %v3566 = vunpack.c.l.b16 %v3494
        %v3567 = vunpack.c.l.b16 %v3495
        %v3568 = vunpack.c.l.b16 %v3496
        %v3569 = vunpack.c.l.b16 %v3497
        %v3570 = vpack.c.b16 %v3555, %v3554
        %v3571 = vpack.c.b16 %v3557, %v3556
        %v3572 = vpack.c.b16 %v3559, %v3558
        %v3573 = vpack.c.b16 %v3561, %v3560
        %v3574 = vpack.c.b16 %v3563, %v3562
        %v3575 = vpack.c.b16 %v3565, %v3564
        %v3576 = vpack.c.b16 %v3567, %v3566
        %v3577 = vpack.c.b16 %v3569, %v3568
        %3586 = vmatpush.bf16.msra.mxu0 %v3577
        %3587 = vmatpush.bf16.msra.mxu0 %v3576
        %3588 = vmatpush.bf16.msra.mxu0 %v3575
        %3589 = vmatpush.bf16.msra.mxu0 %v3574
        %3590 = vmatpush.bf16.msra.mxu0 %v3573
        %3591 = vmatpush.bf16.msra.mxu0 %v3572
        %3592 = vmatpush.bf16.msra.mxu0 %v3571
        %3593 = vmatpush.bf16.msra.mxu0 %v3570
        %3594 = vmatmul.bf16.gmra.mxu0 %v3522
        %v3595 = vpop.f32.mrf.mxu0
        %v3596 = vadd.f32 0.0, %v3595
        %v3597 = vpop.f32.mrf.mxu0
        %v3598 = vadd.f32 0.0, %v3597
        %3599 = vmatmul.bf16.gmra.mxu0 %v3523
        %v3600 = vpop.f32.mrf.mxu0
        %v3601 = vadd.f32 0.0, %v3600
        %v3602 = vpop.f32.mrf.mxu0
        %v3603 = vadd.f32 0.0, %v3602
        %3604 = vmatmul.bf16.gmra.mxu0 %v3524
        %v3605 = vpop.f32.mrf.mxu0
        %v3606 = vadd.f32 0.0, %v3605
        %v3607 = vpop.f32.mrf.mxu0
        %v3608 = vadd.f32 0.0, %v3607
        %3609 = vmatmul.bf16.gmra.mxu0 %v3525
        %v3610 = vpop.f32.mrf.mxu0
        %v3611 = vadd.f32 0.0, %v3610
        %v3612 = vpop.f32.mrf.mxu0
        %v3613 = vadd.f32 0.0, %v3612
        %3614 = vmatmul.bf16.gmra.mxu0 %v3526
        %v3615 = vpop.f32.mrf.mxu0
        %v3616 = vadd.f32 0.0, %v3615
        %v3617 = vpop.f32.mrf.mxu0
        %v3618 = vadd.f32 0.0, %v3617
        %3619 = vmatmul.bf16.gmra.mxu0 %v3527
        %v3620 = vpop.f32.mrf.mxu0
        %v3621 = vadd.f32 0.0, %v3620
        %v3622 = vpop.f32.mrf.mxu0
        %v3623 = vadd.f32 0.0, %v3622
        %3624 = vmatmul.bf16.gmra.mxu0 %v3528
        %v3625 = vpop.f32.mrf.mxu0
        %v3626 = vadd.f32 0.0, %v3625
        %v3627 = vpop.f32.mrf.mxu0
        %v3628 = vadd.f32 0.0, %v3627
        %3629 = vmatmul.bf16.gmra.mxu0 %v3529
        %v3630 = vpop.f32.mrf.mxu0
        %v3631 = vadd.f32 0.0, %v3630
        %v3632 = vpop.f32.mrf.mxu0
        %v3633 = vadd.f32 0.0, %v3632
        %3634 = vdwg.mxu0
        %v3635 = vadd.f32 %v3457, %v3596
        %v3636 = vadd.f32 %v3458, %v3598
        %v3637 = vadd.f32 %v3459, %v3601
        %v3638 = vadd.f32 %v3460, %v3603
        %v3639 = vadd.f32 %v3461, %v3606
        %v3640 = vadd.f32 %v3462, %v3608
        %v3641 = vadd.f32 %v3463, %v3611
        %v3642 = vadd.f32 %v3464, %v3613
        %v3643 = vadd.f32 %v3465, %v3616
        %v3644 = vadd.f32 %v3466, %v3618
        %v3645 = vadd.f32 %v3467, %v3621
        %v3646 = vadd.f32 %v3468, %v3623
        %v3647 = vadd.f32 %v3469, %v3626
        %v3648 = vadd.f32 %v3470, %v3628
        %v3649 = vadd.f32 %v3471, %v3631
        %v3650 = vadd.f32 %v3472, %v3633
        %v3651 = vld [vmem:[%s2480 + $0xc] sm:$0x8]
        %v3652 = vld [vmem:[%s2480 + $0x10] sm:$0xf]
        %v3653 = vld [vmem:[%s2480 + $0x14] sm:$0x7]
        %v3654 = vld [vmem:[%s2480 + $0x28] sm:$0x8]
        %v3655 = vld [vmem:[%s2480 + $0x2c] sm:$0xf]
        %v3656 = vld [vmem:[%s2480 + $0x30] sm:$0x7]
        %v3657 = vld [vmem:[%s2480 + $0x44] sm:$0x8]
        %v3658 = vld [vmem:[%s2480 + $0x48] sm:$0xf]
        %v3659 = vld [vmem:[%s2480 + $0x4c] sm:$0x7]
        %v3660 = vld [vmem:[%s2480 + $0x60] sm:$0x8]
        %v3661 = vld [vmem:[%s2480 + $0x64] sm:$0xf]
        %v3662 = vld [vmem:[%s2480 + $0x68] sm:$0x7]
        %v3663 = vld [vmem:[%s2480 + $0x7c] sm:$0x8]
        %v3664 = vld [vmem:[%s2480 + $0x80] sm:$0xf]
        %v3665 = vld [vmem:[%s2480 + $0x84] sm:$0x7]
        %v3666 = vld [vmem:[%s2480 + $0x98] sm:$0x8]
        %v3667 = vld [vmem:[%s2480 + $0x9c] sm:$0xf]
        %v3668 = vld [vmem:[%s2480 + $0xa0] sm:$0x7]
        %v3669 = vld [vmem:[%s2480 + $0xb4] sm:$0x8]
        %v3670 = vld [vmem:[%s2480 + $0xb8] sm:$0xf]
        %v3671 = vld [vmem:[%s2480 + $0xbc] sm:$0x7]
        %v3672 = vld [vmem:[%s2480 + $0xd0] sm:$0x8]
        %v3673 = vld [vmem:[%s2480 + $0xd4] sm:$0xf]
        %v3674 = vld [vmem:[%s2480 + $0xd8] sm:$0x7]
        %v3699 = vrot.slane %v3651, 7
        %v3700 = vrot.slane %v3699, 4
        %v3701 = vrot.slane %v3652, 7
        %v3702 = vsel %vm1012, %v3700, %v3701
        %v3703 = vrot.slane %v3701, 4
        %v3704 = vrot.slane %v3653, 7
        %v3705 = vsel %vm1012, %v3703, %v3704
        %v3706 = vrot.slane %v3654, 7
        %v3707 = vrot.slane %v3706, 4
        %v3708 = vrot.slane %v3655, 7
        %v3709 = vsel %vm1012, %v3707, %v3708
        %v3710 = vrot.slane %v3708, 4
        %v3711 = vrot.slane %v3656, 7
        %v3712 = vsel %vm1012, %v3710, %v3711
        %v3713 = vrot.slane %v3657, 7
        %v3714 = vrot.slane %v3713, 4
        %v3715 = vrot.slane %v3658, 7
        %v3716 = vsel %vm1012, %v3714, %v3715
        %v3717 = vrot.slane %v3715, 4
        %v3718 = vrot.slane %v3659, 7
        %v3719 = vsel %vm1012, %v3717, %v3718
        %v3720 = vrot.slane %v3660, 7
        %v3721 = vrot.slane %v3720, 4
        %v3722 = vrot.slane %v3661, 7
        %v3723 = vsel %vm1012, %v3721, %v3722
        %v3724 = vrot.slane %v3722, 4
        %v3725 = vrot.slane %v3662, 7
        %v3726 = vsel %vm1012, %v3724, %v3725
        %v3727 = vrot.slane %v3663, 7
        %v3728 = vrot.slane %v3727, 4
        %v3729 = vrot.slane %v3664, 7
        %v3730 = vsel %vm1012, %v3728, %v3729
        %v3731 = vrot.slane %v3729, 4
        %v3732 = vrot.slane %v3665, 7
        %v3733 = vsel %vm1012, %v3731, %v3732
        %v3734 = vrot.slane %v3666, 7
        %v3735 = vrot.slane %v3734, 4
        %v3736 = vrot.slane %v3667, 7
        %v3737 = vsel %vm1012, %v3735, %v3736
        %v3738 = vrot.slane %v3736, 4
        %v3739 = vrot.slane %v3668, 7
        %v3740 = vsel %vm1012, %v3738, %v3739
        %v3741 = vrot.slane %v3669, 7
        %v3742 = vrot.slane %v3741, 4
        %v3743 = vrot.slane %v3670, 7
        %v3744 = vsel %vm1012, %v3742, %v3743
        %v3745 = vrot.slane %v3743, 4
        %v3746 = vrot.slane %v3671, 7
        %v3747 = vsel %vm1012, %v3745, %v3746
        %v3748 = vrot.slane %v3672, 7
        %v3749 = vrot.slane %v3748, 4
        %v3750 = vrot.slane %v3673, 7
        %v3751 = vsel %vm1012, %v3749, %v3750
        %v3752 = vrot.slane %v3750, 4
        %v3753 = vrot.slane %v3674, 7
        %v3754 = vsel %vm1012, %v3752, %v3753
        %s3755 = scalar_lea.vmem [#allocation5], 896
        %v3756 = vld [vmem:[%s3755] sm:$0xf]
        %v3757 = vld [vmem:[%s3755 + $0x4] sm:$0xf]
        %v3758 = vld [vmem:[%s3755 + $0x8] sm:$0xf]
        %v3759 = vld [vmem:[%s3755 + $0xc] sm:$0xf]
        %v3760 = vld [vmem:[%s3755 + $0x10] sm:$0xf]
        %v3761 = vld [vmem:[%s3755 + $0x14] sm:$0xf]
        %v3762 = vld [vmem:[%s3755 + $0x18] sm:$0xf]
        %v3763 = vld [vmem:[%s3755 + $0x1c] sm:$0xf]
        %v3764 = vld [vmem:[%s3755 + $0x20] sm:$0xf]
        %v3765 = vld [vmem:[%s3755 + $0x24] sm:$0xf]
        %v3766 = vld [vmem:[%s3755 + $0x28] sm:$0xf]
        %v3767 = vld [vmem:[%s3755 + $0x2c] sm:$0xf]
        %v3768 = vld [vmem:[%s3755 + $0x30] sm:$0xf]
        %v3769 = vld [vmem:[%s3755 + $0x34] sm:$0xf]
        %v3770 = vld [vmem:[%s3755 + $0x38] sm:$0xf]
        %v3771 = vld [vmem:[%s3755 + $0x3c] sm:$0xf]
        %v3772 = vunpack.c.l.b16 %v3702
        %v3773 = vunpack.c.l.b16 %v3705
        %v3774 = vunpack.c.l.b16 %v3709
        %v3775 = vunpack.c.l.b16 %v3712
        %v3776 = vunpack.c.l.b16 %v3716
        %v3777 = vunpack.c.l.b16 %v3719
        %v3778 = vunpack.c.l.b16 %v3723
        %v3779 = vunpack.c.l.b16 %v3726
        %v3780 = vunpack.c.l.b16 %v3730
        %v3781 = vunpack.c.l.b16 %v3733
        %v3782 = vunpack.c.l.b16 %v3737
        %v3783 = vunpack.c.l.b16 %v3740
        %v3784 = vunpack.c.l.b16 %v3744
        %v3785 = vunpack.c.l.b16 %v3747
        %v3786 = vunpack.c.l.b16 %v3751
        %v3787 = vunpack.c.l.b16 %v3754
        %v3788 = vpack.c.b16 %v3773, %v3772
        %v3789 = vpack.c.b16 %v3775, %v3774
        %v3790 = vpack.c.b16 %v3777, %v3776
        %v3791 = vpack.c.b16 %v3779, %v3778
        %v3792 = vpack.c.b16 %v3781, %v3780
        %v3793 = vpack.c.b16 %v3783, %v3782
        %v3794 = vpack.c.b16 %v3785, %v3784
        %v3795 = vpack.c.b16 %v3787, %v3786
        %v3820 = vunpack.c.l.b16 %v3756
        %v3821 = vunpack.c.l.b16 %v3757
        %v3822 = vunpack.c.l.b16 %v3758
        %v3823 = vunpack.c.l.b16 %v3759
        %v3824 = vunpack.c.l.b16 %v3760
        %v3825 = vunpack.c.l.b16 %v3761
        %v3826 = vunpack.c.l.b16 %v3762
        %v3827 = vunpack.c.l.b16 %v3763
        %v3828 = vunpack.c.l.b16 %v3764
        %v3829 = vunpack.c.l.b16 %v3765
        %v3830 = vunpack.c.l.b16 %v3766
        %v3831 = vunpack.c.l.b16 %v3767
        %v3832 = vunpack.c.l.b16 %v3768
        %v3833 = vunpack.c.l.b16 %v3769
        %v3834 = vunpack.c.l.b16 %v3770
        %v3835 = vunpack.c.l.b16 %v3771
        %v3836 = vpack.c.b16 %v3821, %v3820
        %v3837 = vpack.c.b16 %v3823, %v3822
        %v3838 = vpack.c.b16 %v3825, %v3824
        %v3839 = vpack.c.b16 %v3827, %v3826
        %v3840 = vpack.c.b16 %v3829, %v3828
        %v3841 = vpack.c.b16 %v3831, %v3830
        %v3842 = vpack.c.b16 %v3833, %v3832
        %v3843 = vpack.c.b16 %v3835, %v3834
        %3852 = vmatpush.bf16.msra.mxu0 %v3843
        %3853 = vmatpush.bf16.msra.mxu0 %v3842
        %3854 = vmatpush.bf16.msra.mxu0 %v3841
        %3855 = vmatpush.bf16.msra.mxu0 %v3840
        %3856 = vmatpush.bf16.msra.mxu0 %v3839
        %3857 = vmatpush.bf16.msra.mxu0 %v3838
        %3858 = vmatpush.bf16.msra.mxu0 %v3837
        %3859 = vmatpush.bf16.msra.mxu0 %v3836
        %3860 = vmatmul.bf16.gmra.mxu0 %v3788
        %v3861 = vpop.f32.mrf.mxu0
        %v3862 = vadd.f32 0.0, %v3861
        %v3863 = vpop.f32.mrf.mxu0
        %v3864 = vadd.f32 0.0, %v3863
        %3865 = vmatmul.bf16.gmra.mxu0 %v3789
        %v3866 = vpop.f32.mrf.mxu0
        %v3867 = vadd.f32 0.0, %v3866
        %v3868 = vpop.f32.mrf.mxu0
        %v3869 = vadd.f32 0.0, %v3868
        %3870 = vmatmul.bf16.gmra.mxu0 %v3790
        %v3871 = vpop.f32.mrf.mxu0
        %v3872 = vadd.f32 0.0, %v3871
        %v3873 = vpop.f32.mrf.mxu0
        %v3874 = vadd.f32 0.0, %v3873
        %3875 = vmatmul.bf16.gmra.mxu0 %v3791
        %v3876 = vpop.f32.mrf.mxu0
        %v3877 = vadd.f32 0.0, %v3876
        %v3878 = vpop.f32.mrf.mxu0
        %v3879 = vadd.f32 0.0, %v3878
        %3880 = vmatmul.bf16.gmra.mxu0 %v3792
        %v3881 = vpop.f32.mrf.mxu0
        %v3882 = vadd.f32 0.0, %v3881
        %v3883 = vpop.f32.mrf.mxu0
        %v3884 = vadd.f32 0.0, %v3883
        %3885 = vmatmul.bf16.gmra.mxu0 %v3793
        %v3886 = vpop.f32.mrf.mxu0
        %v3887 = vadd.f32 0.0, %v3886
        %v3888 = vpop.f32.mrf.mxu0
        %v3889 = vadd.f32 0.0, %v3888
        %3890 = vmatmul.bf16.gmra.mxu0 %v3794
        %v3891 = vpop.f32.mrf.mxu0
        %v3892 = vadd.f32 0.0, %v3891
        %v3893 = vpop.f32.mrf.mxu0
        %v3894 = vadd.f32 0.0, %v3893
        %3895 = vmatmul.bf16.gmra.mxu0 %v3795
        %v3896 = vpop.f32.mrf.mxu0
        %v3897 = vadd.f32 0.0, %v3896
        %v3898 = vpop.f32.mrf.mxu0
        %v3899 = vadd.f32 0.0, %v3898
        %3900 = vdwg.mxu0
        %v3901 = vadd.f32 %v3635, %v3862
        %v3902 = vadd.f32 %v3636, %v3864
        %v3903 = vadd.f32 %v3637, %v3867
        %v3904 = vadd.f32 %v3638, %v3869
        %v3905 = vadd.f32 %v3639, %v3872
        %v3906 = vadd.f32 %v3640, %v3874
        %v3907 = vadd.f32 %v3641, %v3877
        %v3908 = vadd.f32 %v3642, %v3879
        %v3909 = vadd.f32 %v3643, %v3882
        %v3910 = vadd.f32 %v3644, %v3884
        %v3911 = vadd.f32 %v3645, %v3887
        %v3912 = vadd.f32 %v3646, %v3889
        %v3913 = vadd.f32 %v3647, %v3892
        %v3914 = vadd.f32 %v3648, %v3894
        %v3915 = vadd.f32 %v3649, %v3897
        %v3916 = vadd.f32 %v3650, %v3899
        %v3917 = vld [vmem:[%s2480 + $0x10] sm:$0xc]
        %v3918 = vld [vmem:[%s2480 + $0x14] sm:$0xf]
        %v3919 = vld [vmem:[%s2480 + $0x18] sm:$0x3]
        %v3920 = vld [vmem:[%s2480 + $0x2c] sm:$0xc]
        %v3921 = vld [vmem:[%s2480 + $0x30] sm:$0xf]
        %v3922 = vld [vmem:[%s2480 + $0x34] sm:$0x3]
        %v3923 = vld [vmem:[%s2480 + $0x48] sm:$0xc]
        %v3924 = vld [vmem:[%s2480 + $0x4c] sm:$0xf]
        %v3925 = vld [vmem:[%s2480 + $0x50] sm:$0x3]
        %v3926 = vld [vmem:[%s2480 + $0x64] sm:$0xc]
        %v3927 = vld [vmem:[%s2480 + $0x68] sm:$0xf]
        %v3928 = vld [vmem:[%s2480 + $0x6c] sm:$0x3]
        %v3929 = vld [vmem:[%s2480 + $0x80] sm:$0xc]
        %v3930 = vld [vmem:[%s2480 + $0x84] sm:$0xf]
        %v3931 = vld [vmem:[%s2480 + $0x88] sm:$0x3]
        %v3932 = vld [vmem:[%s2480 + $0x9c] sm:$0xc]
        %v3933 = vld [vmem:[%s2480 + $0xa0] sm:$0xf]
        %v3934 = vld [vmem:[%s2480 + $0xa4] sm:$0x3]
        %v3935 = vld [vmem:[%s2480 + $0xb8] sm:$0xc]
        %v3936 = vld [vmem:[%s2480 + $0xbc] sm:$0xf]
        %v3937 = vld [vmem:[%s2480 + $0xc0] sm:$0x3]
        %v3938 = vld [vmem:[%s2480 + $0xd4] sm:$0xc]
        %v3939 = vld [vmem:[%s2480 + $0xd8] sm:$0xf]
        %v3940 = vld [vmem:[%s2480 + $0xdc] sm:$0x3]
        %v3965 = vrot.slane %v3917, 6
        %v3966 = vrot.slane %v3965, 4
        %v3967 = vrot.slane %v3918, 6
        %v3968 = vsel %vm739, %v3966, %v3967
        %v3969 = vrot.slane %v3967, 4
        %v3970 = vrot.slane %v3919, 6
        %v3971 = vsel %vm739, %v3969, %v3970
        %v3972 = vrot.slane %v3920, 6
        %v3973 = vrot.slane %v3972, 4
        %v3974 = vrot.slane %v3921, 6
        %v3975 = vsel %vm739, %v3973, %v3974
        %v3976 = vrot.slane %v3974, 4
        %v3977 = vrot.slane %v3922, 6
        %v3978 = vsel %vm739, %v3976, %v3977
        %v3979 = vrot.slane %v3923, 6
        %v3980 = vrot.slane %v3979, 4
        %v3981 = vrot.slane %v3924, 6
        %v3982 = vsel %vm739, %v3980, %v3981
        %v3983 = vrot.slane %v3981, 4
        %v3984 = vrot.slane %v3925, 6
        %v3985 = vsel %vm739, %v3983, %v3984
        %v3986 = vrot.slane %v3926, 6
        %v3987 = vrot.slane %v3986, 4
        %v3988 = vrot.slane %v3927, 6
        %v3989 = vsel %vm739, %v3987, %v3988
        %v3990 = vrot.slane %v3988, 4
        %v3991 = vrot.slane %v3928, 6
        %v3992 = vsel %vm739, %v3990, %v3991
        %v3993 = vrot.slane %v3929, 6
        %v3994 = vrot.slane %v3993, 4
        %v3995 = vrot.slane %v3930, 6
        %v3996 = vsel %vm739, %v3994, %v3995
        %v3997 = vrot.slane %v3995, 4
        %v3998 = vrot.slane %v3931, 6
        %v3999 = vsel %vm739, %v3997, %v3998
        %v4000 = vrot.slane %v3932, 6
        %v4001 = vrot.slane %v4000, 4
        %v4002 = vrot.slane %v3933, 6
        %v4003 = vsel %vm739, %v4001, %v4002
        %v4004 = vrot.slane %v4002, 4
        %v4005 = vrot.slane %v3934, 6
        %v4006 = vsel %vm739, %v4004, %v4005
        %v4007 = vrot.slane %v3935, 6
        %v4008 = vrot.slane %v4007, 4
        %v4009 = vrot.slane %v3936, 6
        %v4010 = vsel %vm739, %v4008, %v4009
        %v4011 = vrot.slane %v4009, 4
        %v4012 = vrot.slane %v3937, 6
        %v4013 = vsel %vm739, %v4011, %v4012
        %v4014 = vrot.slane %v3938, 6
        %v4015 = vrot.slane %v4014, 4
        %v4016 = vrot.slane %v3939, 6
        %v4017 = vsel %vm739, %v4015, %v4016
        %v4018 = vrot.slane %v4016, 4
        %v4019 = vrot.slane %v3940, 6
        %v4020 = vsel %vm739, %v4018, %v4019
        %s4021 = scalar_lea.vmem [#allocation5], 960
        %v4022 = vld [vmem:[%s4021] sm:$0xf]
        %v4023 = vld [vmem:[%s4021 + $0x4] sm:$0xf]
        %v4024 = vld [vmem:[%s4021 + $0x8] sm:$0xf]
        %v4025 = vld [vmem:[%s4021 + $0xc] sm:$0xf]
        %v4026 = vld [vmem:[%s4021 + $0x10] sm:$0xf]
        %v4027 = vld [vmem:[%s4021 + $0x14] sm:$0xf]
        %v4028 = vld [vmem:[%s4021 + $0x18] sm:$0xf]
        %v4029 = vld [vmem:[%s4021 + $0x1c] sm:$0xf]
        %v4030 = vld [vmem:[%s4021 + $0x20] sm:$0xf]
        %v4031 = vld [vmem:[%s4021 + $0x24] sm:$0xf]
        %v4032 = vld [vmem:[%s4021 + $0x28] sm:$0xf]
        %v4033 = vld [vmem:[%s4021 + $0x2c] sm:$0xf]
        %v4034 = vld [vmem:[%s4021 + $0x30] sm:$0xf]
        %v4035 = vld [vmem:[%s4021 + $0x34] sm:$0xf]
        %v4036 = vld [vmem:[%s4021 + $0x38] sm:$0xf]
        %v4037 = vld [vmem:[%s4021 + $0x3c] sm:$0xf]
        %v4038 = vunpack.c.l.b16 %v3968
        %v4039 = vunpack.c.l.b16 %v3971
        %v4040 = vunpack.c.l.b16 %v3975
        %v4041 = vunpack.c.l.b16 %v3978
        %v4042 = vunpack.c.l.b16 %v3982
        %v4043 = vunpack.c.l.b16 %v3985
        %v4044 = vunpack.c.l.b16 %v3989
        %v4045 = vunpack.c.l.b16 %v3992
        %v4046 = vunpack.c.l.b16 %v3996
        %v4047 = vunpack.c.l.b16 %v3999
        %v4048 = vunpack.c.l.b16 %v4003
        %v4049 = vunpack.c.l.b16 %v4006
        %v4050 = vunpack.c.l.b16 %v4010
        %v4051 = vunpack.c.l.b16 %v4013
        %v4052 = vunpack.c.l.b16 %v4017
        %v4053 = vunpack.c.l.b16 %v4020
        %v4054 = vpack.c.b16 %v4039, %v4038
        %v4055 = vpack.c.b16 %v4041, %v4040
        %v4056 = vpack.c.b16 %v4043, %v4042
        %v4057 = vpack.c.b16 %v4045, %v4044
        %v4058 = vpack.c.b16 %v4047, %v4046
        %v4059 = vpack.c.b16 %v4049, %v4048
        %v4060 = vpack.c.b16 %v4051, %v4050
        %v4061 = vpack.c.b16 %v4053, %v4052
        %v4086 = vunpack.c.l.b16 %v4022
        %v4087 = vunpack.c.l.b16 %v4023
        %v4088 = vunpack.c.l.b16 %v4024
        %v4089 = vunpack.c.l.b16 %v4025
        %v4090 = vunpack.c.l.b16 %v4026
        %v4091 = vunpack.c.l.b16 %v4027
        %v4092 = vunpack.c.l.b16 %v4028
        %v4093 = vunpack.c.l.b16 %v4029
        %v4094 = vunpack.c.l.b16 %v4030
        %v4095 = vunpack.c.l.b16 %v4031
        %v4096 = vunpack.c.l.b16 %v4032
        %v4097 = vunpack.c.l.b16 %v4033
        %v4098 = vunpack.c.l.b16 %v4034
        %v4099 = vunpack.c.l.b16 %v4035
        %v4100 = vunpack.c.l.b16 %v4036
        %v4101 = vunpack.c.l.b16 %v4037
        %v4102 = vpack.c.b16 %v4087, %v4086
        %v4103 = vpack.c.b16 %v4089, %v4088
        %v4104 = vpack.c.b16 %v4091, %v4090
        %v4105 = vpack.c.b16 %v4093, %v4092
        %v4106 = vpack.c.b16 %v4095, %v4094
        %v4107 = vpack.c.b16 %v4097, %v4096
        %v4108 = vpack.c.b16 %v4099, %v4098
        %v4109 = vpack.c.b16 %v4101, %v4100
        %4118 = vmatpush.bf16.msra.mxu0 %v4109
        %4119 = vmatpush.bf16.msra.mxu0 %v4108
        %4120 = vmatpush.bf16.msra.mxu0 %v4107
        %4121 = vmatpush.bf16.msra.mxu0 %v4106
        %4122 = vmatpush.bf16.msra.mxu0 %v4105
        %4123 = vmatpush.bf16.msra.mxu0 %v4104
        %4124 = vmatpush.bf16.msra.mxu0 %v4103
        %4125 = vmatpush.bf16.msra.mxu0 %v4102
        %4126 = vmatmul.bf16.gmra.mxu0 %v4054
        %v4127 = vpop.f32.mrf.mxu0
        %v4128 = vadd.f32 0.0, %v4127
        %v4129 = vpop.f32.mrf.mxu0
        %v4130 = vadd.f32 0.0, %v4129
        %4131 = vmatmul.bf16.gmra.mxu0 %v4055
        %v4132 = vpop.f32.mrf.mxu0
        %v4133 = vadd.f32 0.0, %v4132
        %v4134 = vpop.f32.mrf.mxu0
        %v4135 = vadd.f32 0.0, %v4134
        %4136 = vmatmul.bf16.gmra.mxu0 %v4056
        %v4137 = vpop.f32.mrf.mxu0
        %v4138 = vadd.f32 0.0, %v4137
        %v4139 = vpop.f32.mrf.mxu0
        %v4140 = vadd.f32 0.0, %v4139
        %4141 = vmatmul.bf16.gmra.mxu0 %v4057
        %v4142 = vpop.f32.mrf.mxu0
        %v4143 = vadd.f32 0.0, %v4142
        %v4144 = vpop.f32.mrf.mxu0
        %v4145 = vadd.f32 0.0, %v4144
        %4146 = vmatmul.bf16.gmra.mxu0 %v4058
        %v4147 = vpop.f32.mrf.mxu0
        %v4148 = vadd.f32 0.0, %v4147
        %v4149 = vpop.f32.mrf.mxu0
        %v4150 = vadd.f32 0.0, %v4149
        %4151 = vmatmul.bf16.gmra.mxu0 %v4059
        %v4152 = vpop.f32.mrf.mxu0
        %v4153 = vadd.f32 0.0, %v4152
        %v4154 = vpop.f32.mrf.mxu0
        %v4155 = vadd.f32 0.0, %v4154
        %4156 = vmatmul.bf16.gmra.mxu0 %v4060
        %v4157 = vpop.f32.mrf.mxu0
        %v4158 = vadd.f32 0.0, %v4157
        %v4159 = vpop.f32.mrf.mxu0
        %v4160 = vadd.f32 0.0, %v4159
        %4161 = vmatmul.bf16.gmra.mxu0 %v4061
        %v4162 = vpop.f32.mrf.mxu0
        %v4163 = vadd.f32 0.0, %v4162
        %v4164 = vpop.f32.mrf.mxu0
        %v4165 = vadd.f32 0.0, %v4164
        %4166 = vdwg.mxu0
        %v4167 = vadd.f32 %v3901, %v4128
        %v4168 = vadd.f32 %v3902, %v4130
        %v4169 = vadd.f32 %v3903, %v4133
        %v4170 = vadd.f32 %v3904, %v4135
        %v4171 = vadd.f32 %v3905, %v4138
        %v4172 = vadd.f32 %v3906, %v4140
        %v4173 = vadd.f32 %v3907, %v4143
        %v4174 = vadd.f32 %v3908, %v4145
        %v4175 = vadd.f32 %v3909, %v4148
        %v4176 = vadd.f32 %v3910, %v4150
        %v4177 = vadd.f32 %v3911, %v4153
        %v4178 = vadd.f32 %v3912, %v4155
        %v4179 = vadd.f32 %v3913, %v4158
        %v4180 = vadd.f32 %v3914, %v4160
        %v4181 = vadd.f32 %v3915, %v4163
        %v4182 = vadd.f32 %v3916, %v4165
        %s4183 = sadd.s32 %s255, 24
        %s4184 = smul.u32 %s4183, 7
        %s4185 = smul.addr %s4184, 4
        %s4186 = scalar_lea.vmem %s212, %s4185 [#allocation2]
        %v4187 = vld [vmem:[%s4186 + $0x4] sm:$0xc]
        %v4188 = vld [vmem:[%s4186 + $0x8] sm:$0xf]
        %v4189 = vld [vmem:[%s4186 + $0xc] sm:$0x3]
        %v4190 = vld [vmem:[%s4186 + $0x20] sm:$0xc]
        %v4191 = vld [vmem:[%s4186 + $0x24] sm:$0xf]
        %v4192 = vld [vmem:[%s4186 + $0x28] sm:$0x3]
        %v4193 = vld [vmem:[%s4186 + $0x3c] sm:$0xc]
        %v4194 = vld [vmem:[%s4186 + $0x40] sm:$0xf]
        %v4195 = vld [vmem:[%s4186 + $0x44] sm:$0x3]
        %v4196 = vld [vmem:[%s4186 + $0x58] sm:$0xc]
        %v4197 = vld [vmem:[%s4186 + $0x5c] sm:$0xf]
        %v4198 = vld [vmem:[%s4186 + $0x60] sm:$0x3]
        %v4199 = vld [vmem:[%s4186 + $0x74] sm:$0xc]
        %v4200 = vld [vmem:[%s4186 + $0x78] sm:$0xf]
        %v4201 = vld [vmem:[%s4186 + $0x7c] sm:$0x3]
        %v4202 = vld [vmem:[%s4186 + $0x90] sm:$0xc]
        %v4203 = vld [vmem:[%s4186 + $0x94] sm:$0xf]
        %v4204 = vld [vmem:[%s4186 + $0x98] sm:$0x3]
        %v4205 = vld [vmem:[%s4186 + $0xac] sm:$0xc]
        %v4206 = vld [vmem:[%s4186 + $0xb0] sm:$0xf]
        %v4207 = vld [vmem:[%s4186 + $0xb4] sm:$0x3]
        %v4208 = vld [vmem:[%s4186 + $0xc8] sm:$0xc]
        %v4209 = vld [vmem:[%s4186 + $0xcc] sm:$0xf]
        %v4210 = vld [vmem:[%s4186 + $0xd0] sm:$0x3]
        %v4235 = vrot.slane %v4187, 6
        %v4236 = vrot.slane %v4235, 4
        %v4237 = vrot.slane %v4188, 6
        %v4238 = vsel %vm739, %v4236, %v4237
        %v4239 = vrot.slane %v4237, 4
        %v4240 = vrot.slane %v4189, 6
        %v4241 = vsel %vm739, %v4239, %v4240
        %v4242 = vrot.slane %v4190, 6
        %v4243 = vrot.slane %v4242, 4
        %v4244 = vrot.slane %v4191, 6
        %v4245 = vsel %vm739, %v4243, %v4244
        %v4246 = vrot.slane %v4244, 4
        %v4247 = vrot.slane %v4192, 6
        %v4248 = vsel %vm739, %v4246, %v4247
        %v4249 = vrot.slane %v4193, 6
        %v4250 = vrot.slane %v4249, 4
        %v4251 = vrot.slane %v4194, 6
        %v4252 = vsel %vm739, %v4250, %v4251
        %v4253 = vrot.slane %v4251, 4
        %v4254 = vrot.slane %v4195, 6
        %v4255 = vsel %vm739, %v4253, %v4254
        %v4256 = vrot.slane %v4196, 6
        %v4257 = vrot.slane %v4256, 4
        %v4258 = vrot.slane %v4197, 6
        %v4259 = vsel %vm739, %v4257, %v4258
        %v4260 = vrot.slane %v4258, 4
        %v4261 = vrot.slane %v4198, 6
        %v4262 = vsel %vm739, %v4260, %v4261
        %v4263 = vrot.slane %v4199, 6
        %v4264 = vrot.slane %v4263, 4
        %v4265 = vrot.slane %v4200, 6
        %v4266 = vsel %vm739, %v4264, %v4265
        %v4267 = vrot.slane %v4265, 4
        %v4268 = vrot.slane %v4201, 6
        %v4269 = vsel %vm739, %v4267, %v4268
        %v4270 = vrot.slane %v4202, 6
        %v4271 = vrot.slane %v4270, 4
        %v4272 = vrot.slane %v4203, 6
        %v4273 = vsel %vm739, %v4271, %v4272
        %v4274 = vrot.slane %v4272, 4
        %v4275 = vrot.slane %v4204, 6
        %v4276 = vsel %vm739, %v4274, %v4275
        %v4277 = vrot.slane %v4205, 6
        %v4278 = vrot.slane %v4277, 4
        %v4279 = vrot.slane %v4206, 6
        %v4280 = vsel %vm739, %v4278, %v4279
        %v4281 = vrot.slane %v4279, 4
        %v4282 = vrot.slane %v4207, 6
        %v4283 = vsel %vm739, %v4281, %v4282
        %v4284 = vrot.slane %v4208, 6
        %v4285 = vrot.slane %v4284, 4
        %v4286 = vrot.slane %v4209, 6
        %v4287 = vsel %vm739, %v4285, %v4286
        %v4288 = vrot.slane %v4286, 4
        %v4289 = vrot.slane %v4210, 6
        %v4290 = vsel %vm739, %v4288, %v4289
        %s4291 = scalar_lea.vmem [#allocation5], 1024
        %v4292 = vld [vmem:[%s4291] sm:$0xf]
        %v4293 = vld [vmem:[%s4291 + $0x4] sm:$0xf]
        %v4294 = vld [vmem:[%s4291 + $0x8] sm:$0xf]
        %v4295 = vld [vmem:[%s4291 + $0xc] sm:$0xf]
        %v4296 = vld [vmem:[%s4291 + $0x10] sm:$0xf]
        %v4297 = vld [vmem:[%s4291 + $0x14] sm:$0xf]
        %v4298 = vld [vmem:[%s4291 + $0x18] sm:$0xf]
        %v4299 = vld [vmem:[%s4291 + $0x1c] sm:$0xf]
        %v4300 = vld [vmem:[%s4291 + $0x20] sm:$0xf]
        %v4301 = vld [vmem:[%s4291 + $0x24] sm:$0xf]
        %v4302 = vld [vmem:[%s4291 + $0x28] sm:$0xf]
        %v4303 = vld [vmem:[%s4291 + $0x2c] sm:$0xf]
        %v4304 = vld [vmem:[%s4291 + $0x30] sm:$0xf]
        %v4305 = vld [vmem:[%s4291 + $0x34] sm:$0xf]
        %v4306 = vld [vmem:[%s4291 + $0x38] sm:$0xf]
        %v4307 = vld [vmem:[%s4291 + $0x3c] sm:$0xf]
        %v4308 = vunpack.c.l.b16 %v4238
        %v4309 = vunpack.c.l.b16 %v4241
        %v4310 = vunpack.c.l.b16 %v4245
        %v4311 = vunpack.c.l.b16 %v4248
        %v4312 = vunpack.c.l.b16 %v4252
        %v4313 = vunpack.c.l.b16 %v4255
        %v4314 = vunpack.c.l.b16 %v4259
        %v4315 = vunpack.c.l.b16 %v4262
        %v4316 = vunpack.c.l.b16 %v4266
        %v4317 = vunpack.c.l.b16 %v4269
        %v4318 = vunpack.c.l.b16 %v4273
        %v4319 = vunpack.c.l.b16 %v4276
        %v4320 = vunpack.c.l.b16 %v4280
        %v4321 = vunpack.c.l.b16 %v4283
        %v4322 = vunpack.c.l.b16 %v4287
        %v4323 = vunpack.c.l.b16 %v4290
        %v4324 = vpack.c.b16 %v4309, %v4308
        %v4325 = vpack.c.b16 %v4311, %v4310
        %v4326 = vpack.c.b16 %v4313, %v4312
        %v4327 = vpack.c.b16 %v4315, %v4314
        %v4328 = vpack.c.b16 %v4317, %v4316
        %v4329 = vpack.c.b16 %v4319, %v4318
        %v4330 = vpack.c.b16 %v4321, %v4320
        %v4331 = vpack.c.b16 %v4323, %v4322
        %v4356 = vunpack.c.l.b16 %v4292
        %v4357 = vunpack.c.l.b16 %v4293
        %v4358 = vunpack.c.l.b16 %v4294
        %v4359 = vunpack.c.l.b16 %v4295
        %v4360 = vunpack.c.l.b16 %v4296
        %v4361 = vunpack.c.l.b16 %v4297
        %v4362 = vunpack.c.l.b16 %v4298
        %v4363 = vunpack.c.l.b16 %v4299
        %v4364 = vunpack.c.l.b16 %v4300
        %v4365 = vunpack.c.l.b16 %v4301
        %v4366 = vunpack.c.l.b16 %v4302
        %v4367 = vunpack.c.l.b16 %v4303
        %v4368 = vunpack.c.l.b16 %v4304
        %v4369 = vunpack.c.l.b16 %v4305
        %v4370 = vunpack.c.l.b16 %v4306
        %v4371 = vunpack.c.l.b16 %v4307
        %v4372 = vpack.c.b16 %v4357, %v4356
        %v4373 = vpack.c.b16 %v4359, %v4358
        %v4374 = vpack.c.b16 %v4361, %v4360
        %v4375 = vpack.c.b16 %v4363, %v4362
        %v4376 = vpack.c.b16 %v4365, %v4364
        %v4377 = vpack.c.b16 %v4367, %v4366
        %v4378 = vpack.c.b16 %v4369, %v4368
        %v4379 = vpack.c.b16 %v4371, %v4370
        %4388 = vmatpush.bf16.msra.mxu0 %v4379
        %4389 = vmatpush.bf16.msra.mxu0 %v4378
        %4390 = vmatpush.bf16.msra.mxu0 %v4377
        %4391 = vmatpush.bf16.msra.mxu0 %v4376
        %4392 = vmatpush.bf16.msra.mxu0 %v4375
        %4393 = vmatpush.bf16.msra.mxu0 %v4374
        %4394 = vmatpush.bf16.msra.mxu0 %v4373
        %4395 = vmatpush.bf16.msra.mxu0 %v4372
        %4396 = vmatmul.bf16.gmra.mxu0 %v4324
        %v4397 = vpop.f32.mrf.mxu0
        %v4398 = vadd.f32 0.0, %v4397
        %v4399 = vpop.f32.mrf.mxu0
        %v4400 = vadd.f32 0.0, %v4399
        %4401 = vmatmul.bf16.gmra.mxu0 %v4325
        %v4402 = vpop.f32.mrf.mxu0
        %v4403 = vadd.f32 0.0, %v4402
        %v4404 = vpop.f32.mrf.mxu0
        %v4405 = vadd.f32 0.0, %v4404
        %4406 = vmatmul.bf16.gmra.mxu0 %v4326
        %v4407 = vpop.f32.mrf.mxu0
        %v4408 = vadd.f32 0.0, %v4407
        %v4409 = vpop.f32.mrf.mxu0
        %v4410 = vadd.f32 0.0, %v4409
        %4411 = vmatmul.bf16.gmra.mxu0 %v4327
        %v4412 = vpop.f32.mrf.mxu0
        %v4413 = vadd.f32 0.0, %v4412
        %v4414 = vpop.f32.mrf.mxu0
        %v4415 = vadd.f32 0.0, %v4414
        %4416 = vmatmul.bf16.gmra.mxu0 %v4328
        %v4417 = vpop.f32.mrf.mxu0
        %v4418 = vadd.f32 0.0, %v4417
        %v4419 = vpop.f32.mrf.mxu0
        %v4420 = vadd.f32 0.0, %v4419
        %4421 = vmatmul.bf16.gmra.mxu0 %v4329
        %v4422 = vpop.f32.mrf.mxu0
        %v4423 = vadd.f32 0.0, %v4422
        %v4424 = vpop.f32.mrf.mxu0
        %v4425 = vadd.f32 0.0, %v4424
        %4426 = vmatmul.bf16.gmra.mxu0 %v4330
        %v4427 = vpop.f32.mrf.mxu0
        %v4428 = vadd.f32 0.0, %v4427
        %v4429 = vpop.f32.mrf.mxu0
        %v4430 = vadd.f32 0.0, %v4429
        %4431 = vmatmul.bf16.gmra.mxu0 %v4331
        %v4432 = vpop.f32.mrf.mxu0
        %v4433 = vadd.f32 0.0, %v4432
        %v4434 = vpop.f32.mrf.mxu0
        %v4435 = vadd.f32 0.0, %v4434
        %4436 = vdwg.mxu0
        %v4437 = vadd.f32 %v4167, %v4398
        %v4438 = vadd.f32 %v4168, %v4400
        %v4439 = vadd.f32 %v4169, %v4403
        %v4440 = vadd.f32 %v4170, %v4405
        %v4441 = vadd.f32 %v4171, %v4408
        %v4442 = vadd.f32 %v4172, %v4410
        %v4443 = vadd.f32 %v4173, %v4413
        %v4444 = vadd.f32 %v4174, %v4415
        %v4445 = vadd.f32 %v4175, %v4418
        %v4446 = vadd.f32 %v4176, %v4420
        %v4447 = vadd.f32 %v4177, %v4423
        %v4448 = vadd.f32 %v4178, %v4425
        %v4449 = vadd.f32 %v4179, %v4428
        %v4450 = vadd.f32 %v4180, %v4430
        %v4451 = vadd.f32 %v4181, %v4433
        %v4452 = vadd.f32 %v4182, %v4435
        %v4453 = vld [vmem:[%s4186 + $0x8] sm:$0xe]
        %v4454 = vld [vmem:[%s4186 + $0xc] sm:$0xf]
        %v4455 = vld [vmem:[%s4186 + $0x10] sm:$0x1]
        %v4456 = vld [vmem:[%s4186 + $0x24] sm:$0xe]
        %v4457 = vld [vmem:[%s4186 + $0x28] sm:$0xf]
        %v4458 = vld [vmem:[%s4186 + $0x2c] sm:$0x1]
        %v4459 = vld [vmem:[%s4186 + $0x40] sm:$0xe]
        %v4460 = vld [vmem:[%s4186 + $0x44] sm:$0xf]
        %v4461 = vld [vmem:[%s4186 + $0x48] sm:$0x1]
        %v4462 = vld [vmem:[%s4186 + $0x5c] sm:$0xe]
        %v4463 = vld [vmem:[%s4186 + $0x60] sm:$0xf]
        %v4464 = vld [vmem:[%s4186 + $0x64] sm:$0x1]
        %v4465 = vld [vmem:[%s4186 + $0x78] sm:$0xe]
        %v4466 = vld [vmem:[%s4186 + $0x7c] sm:$0xf]
        %v4467 = vld [vmem:[%s4186 + $0x80] sm:$0x1]
        %v4468 = vld [vmem:[%s4186 + $0x94] sm:$0xe]
        %v4469 = vld [vmem:[%s4186 + $0x98] sm:$0xf]
        %v4470 = vld [vmem:[%s4186 + $0x9c] sm:$0x1]
        %v4471 = vld [vmem:[%s4186 + $0xb0] sm:$0xe]
        %v4472 = vld [vmem:[%s4186 + $0xb4] sm:$0xf]
        %v4473 = vld [vmem:[%s4186 + $0xb8] sm:$0x1]
        %v4474 = vld [vmem:[%s4186 + $0xcc] sm:$0xe]
        %v4475 = vld [vmem:[%s4186 + $0xd0] sm:$0xf]
        %v4476 = vld [vmem:[%s4186 + $0xd4] sm:$0x1]
        %v4501 = vrot.slane %v4453, 5
        %v4502 = vrot.slane %v4501, 4
        %v4503 = vrot.slane %v4454, 5
        %v4504 = vsel %vm341, %v4502, %v4503
        %v4505 = vrot.slane %v4503, 4
        %v4506 = vrot.slane %v4455, 5
        %v4507 = vsel %vm341, %v4505, %v4506
        %v4508 = vrot.slane %v4456, 5
        %v4509 = vrot.slane %v4508, 4
        %v4510 = vrot.slane %v4457, 5
        %v4511 = vsel %vm341, %v4509, %v4510
        %v4512 = vrot.slane %v4510, 4
        %v4513 = vrot.slane %v4458, 5
        %v4514 = vsel %vm341, %v4512, %v4513
        %v4515 = vrot.slane %v4459, 5
        %v4516 = vrot.slane %v4515, 4
        %v4517 = vrot.slane %v4460, 5
        %v4518 = vsel %vm341, %v4516, %v4517
        %v4519 = vrot.slane %v4517, 4
        %v4520 = vrot.slane %v4461, 5
        %v4521 = vsel %vm341, %v4519, %v4520
        %v4522 = vrot.slane %v4462, 5
        %v4523 = vrot.slane %v4522, 4
        %v4524 = vrot.slane %v4463, 5
        %v4525 = vsel %vm341, %v4523, %v4524
        %v4526 = vrot.slane %v4524, 4
        %v4527 = vrot.slane %v4464, 5
        %v4528 = vsel %vm341, %v4526, %v4527
        %v4529 = vrot.slane %v4465, 5
        %v4530 = vrot.slane %v4529, 4
        %v4531 = vrot.slane %v4466, 5
        %v4532 = vsel %vm341, %v4530, %v4531
        %v4533 = vrot.slane %v4531, 4
        %v4534 = vrot.slane %v4467, 5
        %v4535 = vsel %vm341, %v4533, %v4534
        %v4536 = vrot.slane %v4468, 5
        %v4537 = vrot.slane %v4536, 4
        %v4538 = vrot.slane %v4469, 5
        %v4539 = vsel %vm341, %v4537, %v4538
        %v4540 = vrot.slane %v4538, 4
        %v4541 = vrot.slane %v4470, 5
        %v4542 = vsel %vm341, %v4540, %v4541
        %v4543 = vrot.slane %v4471, 5
        %v4544 = vrot.slane %v4543, 4
        %v4545 = vrot.slane %v4472, 5
        %v4546 = vsel %vm341, %v4544, %v4545
        %v4547 = vrot.slane %v4545, 4
        %v4548 = vrot.slane %v4473, 5
        %v4549 = vsel %vm341, %v4547, %v4548
        %v4550 = vrot.slane %v4474, 5
        %v4551 = vrot.slane %v4550, 4
        %v4552 = vrot.slane %v4475, 5
        %v4553 = vsel %vm341, %v4551, %v4552
        %v4554 = vrot.slane %v4552, 4
        %v4555 = vrot.slane %v4476, 5
        %v4556 = vsel %vm341, %v4554, %v4555
        %s4557 = scalar_lea.vmem [#allocation5], 1088
        %v4558 = vld [vmem:[%s4557] sm:$0xf]
        %v4559 = vld [vmem:[%s4557 + $0x4] sm:$0xf]
        %v4560 = vld [vmem:[%s4557 + $0x8] sm:$0xf]
        %v4561 = vld [vmem:[%s4557 + $0xc] sm:$0xf]
        %v4562 = vld [vmem:[%s4557 + $0x10] sm:$0xf]
        %v4563 = vld [vmem:[%s4557 + $0x14] sm:$0xf]
        %v4564 = vld [vmem:[%s4557 + $0x18] sm:$0xf]
        %v4565 = vld [vmem:[%s4557 + $0x1c] sm:$0xf]
        %v4566 = vld [vmem:[%s4557 + $0x20] sm:$0xf]
        %v4567 = vld [vmem:[%s4557 + $0x24] sm:$0xf]
        %v4568 = vld [vmem:[%s4557 + $0x28] sm:$0xf]
        %v4569 = vld [vmem:[%s4557 + $0x2c] sm:$0xf]
        %v4570 = vld [vmem:[%s4557 + $0x30] sm:$0xf]
        %v4571 = vld [vmem:[%s4557 + $0x34] sm:$0xf]
        %v4572 = vld [vmem:[%s4557 + $0x38] sm:$0xf]
        %v4573 = vld [vmem:[%s4557 + $0x3c] sm:$0xf]
        %v4574 = vunpack.c.l.b16 %v4504
        %v4575 = vunpack.c.l.b16 %v4507
        %v4576 = vunpack.c.l.b16 %v4511
        %v4577 = vunpack.c.l.b16 %v4514
        %v4578 = vunpack.c.l.b16 %v4518
        %v4579 = vunpack.c.l.b16 %v4521
        %v4580 = vunpack.c.l.b16 %v4525
        %v4581 = vunpack.c.l.b16 %v4528
        %v4582 = vunpack.c.l.b16 %v4532
        %v4583 = vunpack.c.l.b16 %v4535
        %v4584 = vunpack.c.l.b16 %v4539
        %v4585 = vunpack.c.l.b16 %v4542
        %v4586 = vunpack.c.l.b16 %v4546
        %v4587 = vunpack.c.l.b16 %v4549
        %v4588 = vunpack.c.l.b16 %v4553
        %v4589 = vunpack.c.l.b16 %v4556
        %v4590 = vpack.c.b16 %v4575, %v4574
        %v4591 = vpack.c.b16 %v4577, %v4576
        %v4592 = vpack.c.b16 %v4579, %v4578
        %v4593 = vpack.c.b16 %v4581, %v4580
        %v4594 = vpack.c.b16 %v4583, %v4582
        %v4595 = vpack.c.b16 %v4585, %v4584
        %v4596 = vpack.c.b16 %v4587, %v4586
        %v4597 = vpack.c.b16 %v4589, %v4588
        %v4622 = vunpack.c.l.b16 %v4558
        %v4623 = vunpack.c.l.b16 %v4559
        %v4624 = vunpack.c.l.b16 %v4560
        %v4625 = vunpack.c.l.b16 %v4561
        %v4626 = vunpack.c.l.b16 %v4562
        %v4627 = vunpack.c.l.b16 %v4563
        %v4628 = vunpack.c.l.b16 %v4564
        %v4629 = vunpack.c.l.b16 %v4565
        %v4630 = vunpack.c.l.b16 %v4566
        %v4631 = vunpack.c.l.b16 %v4567
        %v4632 = vunpack.c.l.b16 %v4568
        %v4633 = vunpack.c.l.b16 %v4569
        %v4634 = vunpack.c.l.b16 %v4570
        %v4635 = vunpack.c.l.b16 %v4571
        %v4636 = vunpack.c.l.b16 %v4572
        %v4637 = vunpack.c.l.b16 %v4573
        %v4638 = vpack.c.b16 %v4623, %v4622
        %v4639 = vpack.c.b16 %v4625, %v4624
        %v4640 = vpack.c.b16 %v4627, %v4626
        %v4641 = vpack.c.b16 %v4629, %v4628
        %v4642 = vpack.c.b16 %v4631, %v4630
        %v4643 = vpack.c.b16 %v4633, %v4632
        %v4644 = vpack.c.b16 %v4635, %v4634
        %v4645 = vpack.c.b16 %v4637, %v4636
        %4654 = vmatpush.bf16.msra.mxu0 %v4645
        %4655 = vmatpush.bf16.msra.mxu0 %v4644
        %4656 = vmatpush.bf16.msra.mxu0 %v4643
        %4657 = vmatpush.bf16.msra.mxu0 %v4642
        %4658 = vmatpush.bf16.msra.mxu0 %v4641
        %4659 = vmatpush.bf16.msra.mxu0 %v4640
        %4660 = vmatpush.bf16.msra.mxu0 %v4639
        %4661 = vmatpush.bf16.msra.mxu0 %v4638
        %4662 = vmatmul.bf16.gmra.mxu0 %v4590
        %v4663 = vpop.f32.mrf.mxu0
        %v4664 = vadd.f32 0.0, %v4663
        %v4665 = vpop.f32.mrf.mxu0
        %v4666 = vadd.f32 0.0, %v4665
        %4667 = vmatmul.bf16.gmra.mxu0 %v4591
        %v4668 = vpop.f32.mrf.mxu0
        %v4669 = vadd.f32 0.0, %v4668
        %v4670 = vpop.f32.mrf.mxu0
        %v4671 = vadd.f32 0.0, %v4670
        %4672 = vmatmul.bf16.gmra.mxu0 %v4592
        %v4673 = vpop.f32.mrf.mxu0
        %v4674 = vadd.f32 0.0, %v4673
        %v4675 = vpop.f32.mrf.mxu0
        %v4676 = vadd.f32 0.0, %v4675
        %4677 = vmatmul.bf16.gmra.mxu0 %v4593
        %v4678 = vpop.f32.mrf.mxu0
        %v4679 = vadd.f32 0.0, %v4678
        %v4680 = vpop.f32.mrf.mxu0
        %v4681 = vadd.f32 0.0, %v4680
        %4682 = vmatmul.bf16.gmra.mxu0 %v4594
        %v4683 = vpop.f32.mrf.mxu0
        %v4684 = vadd.f32 0.0, %v4683
        %v4685 = vpop.f32.mrf.mxu0
        %v4686 = vadd.f32 0.0, %v4685
        %4687 = vmatmul.bf16.gmra.mxu0 %v4595
        %v4688 = vpop.f32.mrf.mxu0
        %v4689 = vadd.f32 0.0, %v4688
        %v4690 = vpop.f32.mrf.mxu0
        %v4691 = vadd.f32 0.0, %v4690
        %4692 = vmatmul.bf16.gmra.mxu0 %v4596
        %v4693 = vpop.f32.mrf.mxu0
        %v4694 = vadd.f32 0.0, %v4693
        %v4695 = vpop.f32.mrf.mxu0
        %v4696 = vadd.f32 0.0, %v4695
        %4697 = vmatmul.bf16.gmra.mxu0 %v4597
        %v4698 = vpop.f32.mrf.mxu0
        %v4699 = vadd.f32 0.0, %v4698
        %v4700 = vpop.f32.mrf.mxu0
        %v4701 = vadd.f32 0.0, %v4700
        %4702 = vdwg.mxu0
        %v4703 = vadd.f32 %v4437, %v4664
        %v4704 = vadd.f32 %v4438, %v4666
        %v4705 = vadd.f32 %v4439, %v4669
        %v4706 = vadd.f32 %v4440, %v4671
        %v4707 = vadd.f32 %v4441, %v4674
        %v4708 = vadd.f32 %v4442, %v4676
        %v4709 = vadd.f32 %v4443, %v4679
        %v4710 = vadd.f32 %v4444, %v4681
        %v4711 = vadd.f32 %v4445, %v4684
        %v4712 = vadd.f32 %v4446, %v4686
        %v4713 = vadd.f32 %v4447, %v4689
        %v4714 = vadd.f32 %v4448, %v4691
        %v4715 = vadd.f32 %v4449, %v4694
        %v4716 = vadd.f32 %v4450, %v4696
        %v4717 = vadd.f32 %v4451, %v4699
        %v4718 = vadd.f32 %v4452, %v4701
        %v4719 = vld [vmem:[%s4186 + $0x10] sm:$0xf]
        %v4720 = vld [vmem:[%s4186 + $0x2c] sm:$0xf]
        %v4721 = vld [vmem:[%s4186 + $0x48] sm:$0xf]
        %v4722 = vld [vmem:[%s4186 + $0x64] sm:$0xf]
        %v4723 = vld [vmem:[%s4186 + $0x80] sm:$0xf]
        %v4724 = vld [vmem:[%s4186 + $0x9c] sm:$0xf]
        %v4725 = vld [vmem:[%s4186 + $0xb8] sm:$0xf]
        %v4726 = vld [vmem:[%s4186 + $0xd4] sm:$0xf]
        %s4727 = scalar_lea.vmem [#allocation5], 1152
        %v4728 = vld [vmem:[%s4727] sm:$0xf]
        %v4729 = vld [vmem:[%s4727 + $0x4] sm:$0xf]
        %v4730 = vld [vmem:[%s4727 + $0x8] sm:$0xf]
        %v4731 = vld [vmem:[%s4727 + $0xc] sm:$0xf]
        %v4732 = vld [vmem:[%s4727 + $0x10] sm:$0xf]
        %v4733 = vld [vmem:[%s4727 + $0x14] sm:$0xf]
        %v4734 = vld [vmem:[%s4727 + $0x18] sm:$0xf]
        %v4735 = vld [vmem:[%s4727 + $0x1c] sm:$0xf]
        %v4736 = vld [vmem:[%s4727 + $0x20] sm:$0xf]
        %v4737 = vld [vmem:[%s4727 + $0x24] sm:$0xf]
        %v4738 = vld [vmem:[%s4727 + $0x28] sm:$0xf]
        %v4739 = vld [vmem:[%s4727 + $0x2c] sm:$0xf]
        %v4740 = vld [vmem:[%s4727 + $0x30] sm:$0xf]
        %v4741 = vld [vmem:[%s4727 + $0x34] sm:$0xf]
        %v4742 = vld [vmem:[%s4727 + $0x38] sm:$0xf]
        %v4743 = vld [vmem:[%s4727 + $0x3c] sm:$0xf]
        %v4752 = vunpack.c.l.b16 %v4454
        %v4753 = vunpack.c.l.b16 %v4719
        %v4754 = vunpack.c.l.b16 %v4457
        %v4755 = vunpack.c.l.b16 %v4720
        %v4756 = vunpack.c.l.b16 %v4460
        %v4757 = vunpack.c.l.b16 %v4721
        %v4758 = vunpack.c.l.b16 %v4463
        %v4759 = vunpack.c.l.b16 %v4722
        %v4760 = vunpack.c.l.b16 %v4466
        %v4761 = vunpack.c.l.b16 %v4723
        %v4762 = vunpack.c.l.b16 %v4469
        %v4763 = vunpack.c.l.b16 %v4724
        %v4764 = vunpack.c.l.b16 %v4472
        %v4765 = vunpack.c.l.b16 %v4725
        %v4766 = vunpack.c.l.b16 %v4475
        %v4767 = vunpack.c.l.b16 %v4726
        %v4768 = vpack.c.b16 %v4753, %v4752
        %v4769 = vpack.c.b16 %v4755, %v4754
        %v4770 = vpack.c.b16 %v4757, %v4756
        %v4771 = vpack.c.b16 %v4759, %v4758
        %v4772 = vpack.c.b16 %v4761, %v4760
        %v4773 = vpack.c.b16 %v4763, %v4762
        %v4774 = vpack.c.b16 %v4765, %v4764
        %v4775 = vpack.c.b16 %v4767, %v4766
        %v4800 = vunpack.c.l.b16 %v4728
        %v4801 = vunpack.c.l.b16 %v4729
        %v4802 = vunpack.c.l.b16 %v4730
        %v4803 = vunpack.c.l.b16 %v4731
        %v4804 = vunpack.c.l.b16 %v4732
        %v4805 = vunpack.c.l.b16 %v4733
        %v4806 = vunpack.c.l.b16 %v4734
        %v4807 = vunpack.c.l.b16 %v4735
        %v4808 = vunpack.c.l.b16 %v4736
        %v4809 = vunpack.c.l.b16 %v4737
        %v4810 = vunpack.c.l.b16 %v4738
        %v4811 = vunpack.c.l.b16 %v4739
        %v4812 = vunpack.c.l.b16 %v4740
        %v4813 = vunpack.c.l.b16 %v4741
        %v4814 = vunpack.c.l.b16 %v4742
        %v4815 = vunpack.c.l.b16 %v4743
        %v4816 = vpack.c.b16 %v4801, %v4800
        %v4817 = vpack.c.b16 %v4803, %v4802
        %v4818 = vpack.c.b16 %v4805, %v4804
        %v4819 = vpack.c.b16 %v4807, %v4806
        %v4820 = vpack.c.b16 %v4809, %v4808
        %v4821 = vpack.c.b16 %v4811, %v4810
        %v4822 = vpack.c.b16 %v4813, %v4812
        %v4823 = vpack.c.b16 %v4815, %v4814
        %4832 = vmatpush.bf16.msra.mxu0 %v4823
        %4833 = vmatpush.bf16.msra.mxu0 %v4822
        %4834 = vmatpush.bf16.msra.mxu0 %v4821
        %4835 = vmatpush.bf16.msra.mxu0 %v4820
        %4836 = vmatpush.bf16.msra.mxu0 %v4819
        %4837 = vmatpush.bf16.msra.mxu0 %v4818
        %4838 = vmatpush.bf16.msra.mxu0 %v4817
        %4839 = vmatpush.bf16.msra.mxu0 %v4816
        %4840 = vmatmul.bf16.gmra.mxu0 %v4768
        %v4841 = vpop.f32.mrf.mxu0
        %v4842 = vadd.f32 0.0, %v4841
        %v4843 = vpop.f32.mrf.mxu0
        %v4844 = vadd.f32 0.0, %v4843
        %4845 = vmatmul.bf16.gmra.mxu0 %v4769
        %v4846 = vpop.f32.mrf.mxu0
        %v4847 = vadd.f32 0.0, %v4846
        %v4848 = vpop.f32.mrf.mxu0
        %v4849 = vadd.f32 0.0, %v4848
        %4850 = vmatmul.bf16.gmra.mxu0 %v4770
        %v4851 = vpop.f32.mrf.mxu0
        %v4852 = vadd.f32 0.0, %v4851
        %v4853 = vpop.f32.mrf.mxu0
        %v4854 = vadd.f32 0.0, %v4853
        %4855 = vmatmul.bf16.gmra.mxu0 %v4771
        %v4856 = vpop.f32.mrf.mxu0
        %v4857 = vadd.f32 0.0, %v4856
        %v4858 = vpop.f32.mrf.mxu0
        %v4859 = vadd.f32 0.0, %v4858
        %4860 = vmatmul.bf16.gmra.mxu0 %v4772
        %v4861 = vpop.f32.mrf.mxu0
        %v4862 = vadd.f32 0.0, %v4861
        %v4863 = vpop.f32.mrf.mxu0
        %v4864 = vadd.f32 0.0, %v4863
        %4865 = vmatmul.bf16.gmra.mxu0 %v4773
        %v4866 = vpop.f32.mrf.mxu0
        %v4867 = vadd.f32 0.0, %v4866
        %v4868 = vpop.f32.mrf.mxu0
        %v4869 = vadd.f32 0.0, %v4868
        %4870 = vmatmul.bf16.gmra.mxu0 %v4774
        %v4871 = vpop.f32.mrf.mxu0
        %v4872 = vadd.f32 0.0, %v4871
        %v4873 = vpop.f32.mrf.mxu0
        %v4874 = vadd.f32 0.0, %v4873
        %4875 = vmatmul.bf16.gmra.mxu0 %v4775
        %v4876 = vpop.f32.mrf.mxu0
        %v4877 = vadd.f32 0.0, %v4876
        %v4878 = vpop.f32.mrf.mxu0
        %v4879 = vadd.f32 0.0, %v4878
        %4880 = vdwg.mxu0
        %v4881 = vadd.f32 %v4703, %v4842
        %v4882 = vadd.f32 %v4704, %v4844
        %v4883 = vadd.f32 %v4705, %v4847
        %v4884 = vadd.f32 %v4706, %v4849
        %v4885 = vadd.f32 %v4707, %v4852
        %v4886 = vadd.f32 %v4708, %v4854
        %v4887 = vadd.f32 %v4709, %v4857
        %v4888 = vadd.f32 %v4710, %v4859
        %v4889 = vadd.f32 %v4711, %v4862
        %v4890 = vadd.f32 %v4712, %v4864
        %v4891 = vadd.f32 %v4713, %v4867
        %v4892 = vadd.f32 %v4714, %v4869
        %v4893 = vadd.f32 %v4715, %v4872
        %v4894 = vadd.f32 %v4716, %v4874
        %v4895 = vadd.f32 %v4717, %v4877
        %v4896 = vadd.f32 %v4718, %v4879
        %s4897 = sadd.s32 %s255, 30
        %s4898 = smul.u32 %s4897, 7
        %s4899 = smul.addr %s4898, 4
        %s4900 = scalar_lea.vmem %s212, %s4899 [#allocation2]
        %v4901 = vld [vmem:[%s4900] sm:$0x8]
        %v4902 = vld [vmem:[%s4900 + $0x4] sm:$0xf]
        %v4903 = vld [vmem:[%s4900 + $0x8] sm:$0x7]
        %v4904 = vld [vmem:[%s4900 + $0x1c] sm:$0x8]
        %v4905 = vld [vmem:[%s4900 + $0x20] sm:$0xf]
        %v4906 = vld [vmem:[%s4900 + $0x24] sm:$0x7]
        %v4907 = vld [vmem:[%s4900 + $0x38] sm:$0x8]
        %v4908 = vld [vmem:[%s4900 + $0x3c] sm:$0xf]
        %v4909 = vld [vmem:[%s4900 + $0x40] sm:$0x7]
        %v4910 = vld [vmem:[%s4900 + $0x54] sm:$0x8]
        %v4911 = vld [vmem:[%s4900 + $0x58] sm:$0xf]
        %v4912 = vld [vmem:[%s4900 + $0x5c] sm:$0x7]
        %v4913 = vld [vmem:[%s4900 + $0x70] sm:$0x8]
        %v4914 = vld [vmem:[%s4900 + $0x74] sm:$0xf]
        %v4915 = vld [vmem:[%s4900 + $0x78] sm:$0x7]
        %v4916 = vld [vmem:[%s4900 + $0x8c] sm:$0x8]
        %v4917 = vld [vmem:[%s4900 + $0x90] sm:$0xf]
        %v4918 = vld [vmem:[%s4900 + $0x94] sm:$0x7]
        %v4919 = vld [vmem:[%s4900 + $0xa8] sm:$0x8]
        %v4920 = vld [vmem:[%s4900 + $0xac] sm:$0xf]
        %v4921 = vld [vmem:[%s4900 + $0xb0] sm:$0x7]
        %v4922 = vld [vmem:[%s4900 + $0xc4] sm:$0x8]
        %v4923 = vld [vmem:[%s4900 + $0xc8] sm:$0xf]
        %v4924 = vld [vmem:[%s4900 + $0xcc] sm:$0x7]
        %v4949 = vrot.slane %v4901, 7
        %v4950 = vrot.slane %v4949, 4
        %v4951 = vrot.slane %v4902, 7
        %v4952 = vsel %vm1012, %v4950, %v4951
        %v4953 = vrot.slane %v4951, 4
        %v4954 = vrot.slane %v4903, 7
        %v4955 = vsel %vm1012, %v4953, %v4954
        %v4956 = vrot.slane %v4904, 7
        %v4957 = vrot.slane %v4956, 4
        %v4958 = vrot.slane %v4905, 7
        %v4959 = vsel %vm1012, %v4957, %v4958
        %v4960 = vrot.slane %v4958, 4
        %v4961 = vrot.slane %v4906, 7
        %v4962 = vsel %vm1012, %v4960, %v4961
        %v4963 = vrot.slane %v4907, 7
        %v4964 = vrot.slane %v4963, 4
        %v4965 = vrot.slane %v4908, 7
        %v4966 = vsel %vm1012, %v4964, %v4965
        %v4967 = vrot.slane %v4965, 4
        %v4968 = vrot.slane %v4909, 7
        %v4969 = vsel %vm1012, %v4967, %v4968
        %v4970 = vrot.slane %v4910, 7
        %v4971 = vrot.slane %v4970, 4
        %v4972 = vrot.slane %v4911, 7
        %v4973 = vsel %vm1012, %v4971, %v4972
        %v4974 = vrot.slane %v4972, 4
        %v4975 = vrot.slane %v4912, 7
        %v4976 = vsel %vm1012, %v4974, %v4975
        %v4977 = vrot.slane %v4913, 7
        %v4978 = vrot.slane %v4977, 4
        %v4979 = vrot.slane %v4914, 7
        %v4980 = vsel %vm1012, %v4978, %v4979
        %v4981 = vrot.slane %v4979, 4
        %v4982 = vrot.slane %v4915, 7
        %v4983 = vsel %vm1012, %v4981, %v4982
        %v4984 = vrot.slane %v4916, 7
        %v4985 = vrot.slane %v4984, 4
        %v4986 = vrot.slane %v4917, 7
        %v4987 = vsel %vm1012, %v4985, %v4986
        %v4988 = vrot.slane %v4986, 4
        %v4989 = vrot.slane %v4918, 7
        %v4990 = vsel %vm1012, %v4988, %v4989
        %v4991 = vrot.slane %v4919, 7
        %v4992 = vrot.slane %v4991, 4
        %v4993 = vrot.slane %v4920, 7
        %v4994 = vsel %vm1012, %v4992, %v4993
        %v4995 = vrot.slane %v4993, 4
        %v4996 = vrot.slane %v4921, 7
        %v4997 = vsel %vm1012, %v4995, %v4996
        %v4998 = vrot.slane %v4922, 7
        %v4999 = vrot.slane %v4998, 4
        %v5000 = vrot.slane %v4923, 7
        %v5001 = vsel %vm1012, %v4999, %v5000
        %v5002 = vrot.slane %v5000, 4
        %v5003 = vrot.slane %v4924, 7
        %v5004 = vsel %vm1012, %v5002, %v5003
        %s5005 = scalar_lea.vmem [#allocation5], 1216
        %v5006 = vld [vmem:[%s5005] sm:$0xf]
        %v5007 = vld [vmem:[%s5005 + $0x4] sm:$0xf]
        %v5008 = vld [vmem:[%s5005 + $0x8] sm:$0xf]
        %v5009 = vld [vmem:[%s5005 + $0xc] sm:$0xf]
        %v5010 = vld [vmem:[%s5005 + $0x10] sm:$0xf]
        %v5011 = vld [vmem:[%s5005 + $0x14] sm:$0xf]
        %v5012 = vld [vmem:[%s5005 + $0x18] sm:$0xf]
        %v5013 = vld [vmem:[%s5005 + $0x1c] sm:$0xf]
        %v5014 = vld [vmem:[%s5005 + $0x20] sm:$0xf]
        %v5015 = vld [vmem:[%s5005 + $0x24] sm:$0xf]
        %v5016 = vld [vmem:[%s5005 + $0x28] sm:$0xf]
        %v5017 = vld [vmem:[%s5005 + $0x2c] sm:$0xf]
        %v5018 = vld [vmem:[%s5005 + $0x30] sm:$0xf]
        %v5019 = vld [vmem:[%s5005 + $0x34] sm:$0xf]
        %v5020 = vld [vmem:[%s5005 + $0x38] sm:$0xf]
        %v5021 = vld [vmem:[%s5005 + $0x3c] sm:$0xf]
        %v5022 = vunpack.c.l.b16 %v4952
        %v5023 = vunpack.c.l.b16 %v4955
        %v5024 = vunpack.c.l.b16 %v4959
        %v5025 = vunpack.c.l.b16 %v4962
        %v5026 = vunpack.c.l.b16 %v4966
        %v5027 = vunpack.c.l.b16 %v4969
        %v5028 = vunpack.c.l.b16 %v4973
        %v5029 = vunpack.c.l.b16 %v4976
        %v5030 = vunpack.c.l.b16 %v4980
        %v5031 = vunpack.c.l.b16 %v4983
        %v5032 = vunpack.c.l.b16 %v4987
        %v5033 = vunpack.c.l.b16 %v4990
        %v5034 = vunpack.c.l.b16 %v4994
        %v5035 = vunpack.c.l.b16 %v4997
        %v5036 = vunpack.c.l.b16 %v5001
        %v5037 = vunpack.c.l.b16 %v5004
        %v5038 = vpack.c.b16 %v5023, %v5022
        %v5039 = vpack.c.b16 %v5025, %v5024
        %v5040 = vpack.c.b16 %v5027, %v5026
        %v5041 = vpack.c.b16 %v5029, %v5028
        %v5042 = vpack.c.b16 %v5031, %v5030
        %v5043 = vpack.c.b16 %v5033, %v5032
        %v5044 = vpack.c.b16 %v5035, %v5034
        %v5045 = vpack.c.b16 %v5037, %v5036
        %v5070 = vunpack.c.l.b16 %v5006
        %v5071 = vunpack.c.l.b16 %v5007
        %v5072 = vunpack.c.l.b16 %v5008
        %v5073 = vunpack.c.l.b16 %v5009
        %v5074 = vunpack.c.l.b16 %v5010
        %v5075 = vunpack.c.l.b16 %v5011
        %v5076 = vunpack.c.l.b16 %v5012
        %v5077 = vunpack.c.l.b16 %v5013
        %v5078 = vunpack.c.l.b16 %v5014
        %v5079 = vunpack.c.l.b16 %v5015
        %v5080 = vunpack.c.l.b16 %v5016
        %v5081 = vunpack.c.l.b16 %v5017
        %v5082 = vunpack.c.l.b16 %v5018
        %v5083 = vunpack.c.l.b16 %v5019
        %v5084 = vunpack.c.l.b16 %v5020
        %v5085 = vunpack.c.l.b16 %v5021
        %v5086 = vpack.c.b16 %v5071, %v5070
        %v5087 = vpack.c.b16 %v5073, %v5072
        %v5088 = vpack.c.b16 %v5075, %v5074
        %v5089 = vpack.c.b16 %v5077, %v5076
        %v5090 = vpack.c.b16 %v5079, %v5078
        %v5091 = vpack.c.b16 %v5081, %v5080
        %v5092 = vpack.c.b16 %v5083, %v5082
        %v5093 = vpack.c.b16 %v5085, %v5084
        %5102 = vmatpush.bf16.msra.mxu0 %v5093
        %5103 = vmatpush.bf16.msra.mxu0 %v5092
        %5104 = vmatpush.bf16.msra.mxu0 %v5091
        %5105 = vmatpush.bf16.msra.mxu0 %v5090
        %5106 = vmatpush.bf16.msra.mxu0 %v5089
        %5107 = vmatpush.bf16.msra.mxu0 %v5088
        %5108 = vmatpush.bf16.msra.mxu0 %v5087
        %5109 = vmatpush.bf16.msra.mxu0 %v5086
        %5110 = vmatmul.bf16.gmra.mxu0 %v5038
        %v5111 = vpop.f32.mrf.mxu0
        %v5112 = vadd.f32 0.0, %v5111
        %v5113 = vpop.f32.mrf.mxu0
        %v5114 = vadd.f32 0.0, %v5113
        %5115 = vmatmul.bf16.gmra.mxu0 %v5039
        %v5116 = vpop.f32.mrf.mxu0
        %v5117 = vadd.f32 0.0, %v5116
        %v5118 = vpop.f32.mrf.mxu0
        %v5119 = vadd.f32 0.0, %v5118
        %5120 = vmatmul.bf16.gmra.mxu0 %v5040
        %v5121 = vpop.f32.mrf.mxu0
        %v5122 = vadd.f32 0.0, %v5121
        %v5123 = vpop.f32.mrf.mxu0
        %v5124 = vadd.f32 0.0, %v5123
        %5125 = vmatmul.bf16.gmra.mxu0 %v5041
        %v5126 = vpop.f32.mrf.mxu0
        %v5127 = vadd.f32 0.0, %v5126
        %v5128 = vpop.f32.mrf.mxu0
        %v5129 = vadd.f32 0.0, %v5128
        %5130 = vmatmul.bf16.gmra.mxu0 %v5042
        %v5131 = vpop.f32.mrf.mxu0
        %v5132 = vadd.f32 0.0, %v5131
        %v5133 = vpop.f32.mrf.mxu0
        %v5134 = vadd.f32 0.0, %v5133
        %5135 = vmatmul.bf16.gmra.mxu0 %v5043
        %v5136 = vpop.f32.mrf.mxu0
        %v5137 = vadd.f32 0.0, %v5136
        %v5138 = vpop.f32.mrf.mxu0
        %v5139 = vadd.f32 0.0, %v5138
        %5140 = vmatmul.bf16.gmra.mxu0 %v5044
        %v5141 = vpop.f32.mrf.mxu0
        %v5142 = vadd.f32 0.0, %v5141
        %v5143 = vpop.f32.mrf.mxu0
        %v5144 = vadd.f32 0.0, %v5143
        %5145 = vmatmul.bf16.gmra.mxu0 %v5045
        %v5146 = vpop.f32.mrf.mxu0
        %v5147 = vadd.f32 0.0, %v5146
        %v5148 = vpop.f32.mrf.mxu0
        %v5149 = vadd.f32 0.0, %v5148
        %5150 = vdwg.mxu0
        %v5151 = vadd.f32 %v4881, %v5112
        %v5152 = vadd.f32 %v4882, %v5114
        %v5153 = vadd.f32 %v4883, %v5117
        %v5154 = vadd.f32 %v4884, %v5119
        %v5155 = vadd.f32 %v4885, %v5122
        %v5156 = vadd.f32 %v4886, %v5124
        %v5157 = vadd.f32 %v4887, %v5127
        %v5158 = vadd.f32 %v4888, %v5129
        %v5159 = vadd.f32 %v4889, %v5132
        %v5160 = vadd.f32 %v4890, %v5134
        %v5161 = vadd.f32 %v4891, %v5137
        %v5162 = vadd.f32 %v4892, %v5139
        %v5163 = vadd.f32 %v4893, %v5142
        %v5164 = vadd.f32 %v4894, %v5144
        %v5165 = vadd.f32 %v4895, %v5147
        %v5166 = vadd.f32 %v4896, %v5149
        %v5167 = vld [vmem:[%s4900 + $0x8] sm:$0xe]
        %v5168 = vld [vmem:[%s4900 + $0xc] sm:$0xf]
        %v5169 = vld [vmem:[%s4900 + $0x10] sm:$0x1]
        %v5170 = vld [vmem:[%s4900 + $0x24] sm:$0xe]
        %v5171 = vld [vmem:[%s4900 + $0x28] sm:$0xf]
        %v5172 = vld [vmem:[%s4900 + $0x2c] sm:$0x1]
        %v5173 = vld [vmem:[%s4900 + $0x40] sm:$0xe]
        %v5174 = vld [vmem:[%s4900 + $0x44] sm:$0xf]
        %v5175 = vld [vmem:[%s4900 + $0x48] sm:$0x1]
        %v5176 = vld [vmem:[%s4900 + $0x5c] sm:$0xe]
        %v5177 = vld [vmem:[%s4900 + $0x60] sm:$0xf]
        %v5178 = vld [vmem:[%s4900 + $0x64] sm:$0x1]
        %v5179 = vld [vmem:[%s4900 + $0x78] sm:$0xe]
        %v5180 = vld [vmem:[%s4900 + $0x7c] sm:$0xf]
        %v5181 = vld [vmem:[%s4900 + $0x80] sm:$0x1]
        %v5182 = vld [vmem:[%s4900 + $0x94] sm:$0xe]
        %v5183 = vld [vmem:[%s4900 + $0x98] sm:$0xf]
        %v5184 = vld [vmem:[%s4900 + $0x9c] sm:$0x1]
        %v5185 = vld [vmem:[%s4900 + $0xb0] sm:$0xe]
        %v5186 = vld [vmem:[%s4900 + $0xb4] sm:$0xf]
        %v5187 = vld [vmem:[%s4900 + $0xb8] sm:$0x1]
        %v5188 = vld [vmem:[%s4900 + $0xcc] sm:$0xe]
        %v5189 = vld [vmem:[%s4900 + $0xd0] sm:$0xf]
        %v5190 = vld [vmem:[%s4900 + $0xd4] sm:$0x1]
        %v5215 = vrot.slane %v5167, 5
        %v5216 = vrot.slane %v5215, 4
        %v5217 = vrot.slane %v5168, 5
        %v5218 = vsel %vm341, %v5216, %v5217
        %v5219 = vrot.slane %v5217, 4
        %v5220 = vrot.slane %v5169, 5
        %v5221 = vsel %vm341, %v5219, %v5220
        %v5222 = vrot.slane %v5170, 5
        %v5223 = vrot.slane %v5222, 4
        %v5224 = vrot.slane %v5171, 5
        %v5225 = vsel %vm341, %v5223, %v5224
        %v5226 = vrot.slane %v5224, 4
        %v5227 = vrot.slane %v5172, 5
        %v5228 = vsel %vm341, %v5226, %v5227
        %v5229 = vrot.slane %v5173, 5
        %v5230 = vrot.slane %v5229, 4
        %v5231 = vrot.slane %v5174, 5
        %v5232 = vsel %vm341, %v5230, %v5231
        %v5233 = vrot.slane %v5231, 4
        %v5234 = vrot.slane %v5175, 5
        %v5235 = vsel %vm341, %v5233, %v5234
        %v5236 = vrot.slane %v5176, 5
        %v5237 = vrot.slane %v5236, 4
        %v5238 = vrot.slane %v5177, 5
        %v5239 = vsel %vm341, %v5237, %v5238
        %v5240 = vrot.slane %v5238, 4
        %v5241 = vrot.slane %v5178, 5
        %v5242 = vsel %vm341, %v5240, %v5241
        %v5243 = vrot.slane %v5179, 5
        %v5244 = vrot.slane %v5243, 4
        %v5245 = vrot.slane %v5180, 5
        %v5246 = vsel %vm341, %v5244, %v5245
        %v5247 = vrot.slane %v5245, 4
        %v5248 = vrot.slane %v5181, 5
        %v5249 = vsel %vm341, %v5247, %v5248
        %v5250 = vrot.slane %v5182, 5
        %v5251 = vrot.slane %v5250, 4
        %v5252 = vrot.slane %v5183, 5
        %v5253 = vsel %vm341, %v5251, %v5252
        %v5254 = vrot.slane %v5252, 4
        %v5255 = vrot.slane %v5184, 5
        %v5256 = vsel %vm341, %v5254, %v5255
        %v5257 = vrot.slane %v5185, 5
        %v5258 = vrot.slane %v5257, 4
        %v5259 = vrot.slane %v5186, 5
        %v5260 = vsel %vm341, %v5258, %v5259
        %v5261 = vrot.slane %v5259, 4
        %v5262 = vrot.slane %v5187, 5
        %v5263 = vsel %vm341, %v5261, %v5262
        %v5264 = vrot.slane %v5188, 5
        %v5265 = vrot.slane %v5264, 4
        %v5266 = vrot.slane %v5189, 5
        %v5267 = vsel %vm341, %v5265, %v5266
        %v5268 = vrot.slane %v5266, 4
        %v5269 = vrot.slane %v5190, 5
        %v5270 = vsel %vm341, %v5268, %v5269
        %s5271 = scalar_lea.vmem [#allocation5], 1280
        %v5272 = vld [vmem:[%s5271] sm:$0xf]
        %v5273 = vld [vmem:[%s5271 + $0x4] sm:$0xf]
        %v5274 = vld [vmem:[%s5271 + $0x8] sm:$0xf]
        %v5275 = vld [vmem:[%s5271 + $0xc] sm:$0xf]
        %v5276 = vld [vmem:[%s5271 + $0x10] sm:$0xf]
        %v5277 = vld [vmem:[%s5271 + $0x14] sm:$0xf]
        %v5278 = vld [vmem:[%s5271 + $0x18] sm:$0xf]
        %v5279 = vld [vmem:[%s5271 + $0x1c] sm:$0xf]
        %v5280 = vld [vmem:[%s5271 + $0x20] sm:$0xf]
        %v5281 = vld [vmem:[%s5271 + $0x24] sm:$0xf]
        %v5282 = vld [vmem:[%s5271 + $0x28] sm:$0xf]
        %v5283 = vld [vmem:[%s5271 + $0x2c] sm:$0xf]
        %v5284 = vld [vmem:[%s5271 + $0x30] sm:$0xf]
        %v5285 = vld [vmem:[%s5271 + $0x34] sm:$0xf]
        %v5286 = vld [vmem:[%s5271 + $0x38] sm:$0xf]
        %v5287 = vld [vmem:[%s5271 + $0x3c] sm:$0xf]
        %v5288 = vunpack.c.l.b16 %v5218
        %v5289 = vunpack.c.l.b16 %v5221
        %v5290 = vunpack.c.l.b16 %v5225
        %v5291 = vunpack.c.l.b16 %v5228
        %v5292 = vunpack.c.l.b16 %v5232
        %v5293 = vunpack.c.l.b16 %v5235
        %v5294 = vunpack.c.l.b16 %v5239
        %v5295 = vunpack.c.l.b16 %v5242
        %v5296 = vunpack.c.l.b16 %v5246
        %v5297 = vunpack.c.l.b16 %v5249
        %v5298 = vunpack.c.l.b16 %v5253
        %v5299 = vunpack.c.l.b16 %v5256
        %v5300 = vunpack.c.l.b16 %v5260
        %v5301 = vunpack.c.l.b16 %v5263
        %v5302 = vunpack.c.l.b16 %v5267
        %v5303 = vunpack.c.l.b16 %v5270
        %v5304 = vpack.c.b16 %v5289, %v5288
        %v5305 = vpack.c.b16 %v5291, %v5290
        %v5306 = vpack.c.b16 %v5293, %v5292
        %v5307 = vpack.c.b16 %v5295, %v5294
        %v5308 = vpack.c.b16 %v5297, %v5296
        %v5309 = vpack.c.b16 %v5299, %v5298
        %v5310 = vpack.c.b16 %v5301, %v5300
        %v5311 = vpack.c.b16 %v5303, %v5302
        %v5336 = vunpack.c.l.b16 %v5272
        %v5337 = vunpack.c.l.b16 %v5273
        %v5338 = vunpack.c.l.b16 %v5274
        %v5339 = vunpack.c.l.b16 %v5275
        %v5340 = vunpack.c.l.b16 %v5276
        %v5341 = vunpack.c.l.b16 %v5277
        %v5342 = vunpack.c.l.b16 %v5278
        %v5343 = vunpack.c.l.b16 %v5279
        %v5344 = vunpack.c.l.b16 %v5280
        %v5345 = vunpack.c.l.b16 %v5281
        %v5346 = vunpack.c.l.b16 %v5282
        %v5347 = vunpack.c.l.b16 %v5283
        %v5348 = vunpack.c.l.b16 %v5284
        %v5349 = vunpack.c.l.b16 %v5285
        %v5350 = vunpack.c.l.b16 %v5286
        %v5351 = vunpack.c.l.b16 %v5287
        %v5352 = vpack.c.b16 %v5337, %v5336
        %v5353 = vpack.c.b16 %v5339, %v5338
        %v5354 = vpack.c.b16 %v5341, %v5340
        %v5355 = vpack.c.b16 %v5343, %v5342
        %v5356 = vpack.c.b16 %v5345, %v5344
        %v5357 = vpack.c.b16 %v5347, %v5346
        %v5358 = vpack.c.b16 %v5349, %v5348
        %v5359 = vpack.c.b16 %v5351, %v5350
        %5368 = vmatpush.bf16.msra.mxu0 %v5359
        %5369 = vmatpush.bf16.msra.mxu0 %v5358
        %5370 = vmatpush.bf16.msra.mxu0 %v5357
        %5371 = vmatpush.bf16.msra.mxu0 %v5356
        %5372 = vmatpush.bf16.msra.mxu0 %v5355
        %5373 = vmatpush.bf16.msra.mxu0 %v5354
        %5374 = vmatpush.bf16.msra.mxu0 %v5353
        %5375 = vmatpush.bf16.msra.mxu0 %v5352
        %5376 = vmatmul.bf16.gmra.mxu0 %v5304
        %v5377 = vpop.f32.mrf.mxu0
        %v5378 = vadd.f32 0.0, %v5377
        %v5379 = vpop.f32.mrf.mxu0
        %v5380 = vadd.f32 0.0, %v5379
        %5381 = vmatmul.bf16.gmra.mxu0 %v5305
        %v5382 = vpop.f32.mrf.mxu0
        %v5383 = vadd.f32 0.0, %v5382
        %v5384 = vpop.f32.mrf.mxu0
        %v5385 = vadd.f32 0.0, %v5384
        %5386 = vmatmul.bf16.gmra.mxu0 %v5306
        %v5387 = vpop.f32.mrf.mxu0
        %v5388 = vadd.f32 0.0, %v5387
        %v5389 = vpop.f32.mrf.mxu0
        %v5390 = vadd.f32 0.0, %v5389
        %5391 = vmatmul.bf16.gmra.mxu0 %v5307
        %v5392 = vpop.f32.mrf.mxu0
        %v5393 = vadd.f32 0.0, %v5392
        %v5394 = vpop.f32.mrf.mxu0
        %v5395 = vadd.f32 0.0, %v5394
        %5396 = vmatmul.bf16.gmra.mxu0 %v5308
        %v5397 = vpop.f32.mrf.mxu0
        %v5398 = vadd.f32 0.0, %v5397
        %v5399 = vpop.f32.mrf.mxu0
        %v5400 = vadd.f32 0.0, %v5399
        %5401 = vmatmul.bf16.gmra.mxu0 %v5309
        %v5402 = vpop.f32.mrf.mxu0
        %v5403 = vadd.f32 0.0, %v5402
        %v5404 = vpop.f32.mrf.mxu0
        %v5405 = vadd.f32 0.0, %v5404
        %5406 = vmatmul.bf16.gmra.mxu0 %v5310
        %v5407 = vpop.f32.mrf.mxu0
        %v5408 = vadd.f32 0.0, %v5407
        %v5409 = vpop.f32.mrf.mxu0
        %v5410 = vadd.f32 0.0, %v5409
        %5411 = vmatmul.bf16.gmra.mxu0 %v5311
        %v5412 = vpop.f32.mrf.mxu0
        %v5413 = vadd.f32 0.0, %v5412
        %v5414 = vpop.f32.mrf.mxu0
        %v5415 = vadd.f32 0.0, %v5414
        %5416 = vdwg.mxu0
        %v5417 = vadd.f32 %v5151, %v5378
        %v5418 = vadd.f32 %v5152, %v5380
        %v5419 = vadd.f32 %v5153, %v5383
        %v5420 = vadd.f32 %v5154, %v5385
        %v5421 = vadd.f32 %v5155, %v5388
        %v5422 = vadd.f32 %v5156, %v5390
        %v5423 = vadd.f32 %v5157, %v5393
        %v5424 = vadd.f32 %v5158, %v5395
        %v5425 = vadd.f32 %v5159, %v5398
        %v5426 = vadd.f32 %v5160, %v5400
        %v5427 = vadd.f32 %v5161, %v5403
        %v5428 = vadd.f32 %v5162, %v5405
        %v5429 = vadd.f32 %v5163, %v5408
        %v5430 = vadd.f32 %v5164, %v5410
        %v5431 = vadd.f32 %v5165, %v5413
        %v5432 = vadd.f32 %v5166, %v5415
        %v5433 = vld [vmem:[%s4900 + $0xc] sm:$0x8]
        %v5434 = vld [vmem:[%s4900 + $0x10] sm:$0xf]
        %v5435 = vld [vmem:[%s4900 + $0x14] sm:$0x7]
        %v5436 = vld [vmem:[%s4900 + $0x28] sm:$0x8]
        %v5437 = vld [vmem:[%s4900 + $0x2c] sm:$0xf]
        %v5438 = vld [vmem:[%s4900 + $0x30] sm:$0x7]
        %v5439 = vld [vmem:[%s4900 + $0x44] sm:$0x8]
        %v5440 = vld [vmem:[%s4900 + $0x48] sm:$0xf]
        %v5441 = vld [vmem:[%s4900 + $0x4c] sm:$0x7]
        %v5442 = vld [vmem:[%s4900 + $0x60] sm:$0x8]
        %v5443 = vld [vmem:[%s4900 + $0x64] sm:$0xf]
        %v5444 = vld [vmem:[%s4900 + $0x68] sm:$0x7]
        %v5445 = vld [vmem:[%s4900 + $0x7c] sm:$0x8]
        %v5446 = vld [vmem:[%s4900 + $0x80] sm:$0xf]
        %v5447 = vld [vmem:[%s4900 + $0x84] sm:$0x7]
        %v5448 = vld [vmem:[%s4900 + $0x98] sm:$0x8]
        %v5449 = vld [vmem:[%s4900 + $0x9c] sm:$0xf]
        %v5450 = vld [vmem:[%s4900 + $0xa0] sm:$0x7]
        %v5451 = vld [vmem:[%s4900 + $0xb4] sm:$0x8]
        %v5452 = vld [vmem:[%s4900 + $0xb8] sm:$0xf]
        %v5453 = vld [vmem:[%s4900 + $0xbc] sm:$0x7]
        %v5454 = vld [vmem:[%s4900 + $0xd0] sm:$0x8]
        %v5455 = vld [vmem:[%s4900 + $0xd4] sm:$0xf]
        %v5456 = vld [vmem:[%s4900 + $0xd8] sm:$0x7]
        %v5481 = vrot.slane %v5433, 7
        %v5482 = vrot.slane %v5481, 4
        %v5483 = vrot.slane %v5434, 7
        %v5484 = vsel %vm1012, %v5482, %v5483
        %v5485 = vrot.slane %v5483, 4
        %v5486 = vrot.slane %v5435, 7
        %v5487 = vsel %vm1012, %v5485, %v5486
        %v5488 = vrot.slane %v5436, 7
        %v5489 = vrot.slane %v5488, 4
        %v5490 = vrot.slane %v5437, 7
        %v5491 = vsel %vm1012, %v5489, %v5490
        %v5492 = vrot.slane %v5490, 4
        %v5493 = vrot.slane %v5438, 7
        %v5494 = vsel %vm1012, %v5492, %v5493
        %v5495 = vrot.slane %v5439, 7
        %v5496 = vrot.slane %v5495, 4
        %v5497 = vrot.slane %v5440, 7
        %v5498 = vsel %vm1012, %v5496, %v5497
        %v5499 = vrot.slane %v5497, 4
        %v5500 = vrot.slane %v5441, 7
        %v5501 = vsel %vm1012, %v5499, %v5500
        %v5502 = vrot.slane %v5442, 7
        %v5503 = vrot.slane %v5502, 4
        %v5504 = vrot.slane %v5443, 7
        %v5505 = vsel %vm1012, %v5503, %v5504
        %v5506 = vrot.slane %v5504, 4
        %v5507 = vrot.slane %v5444, 7
        %v5508 = vsel %vm1012, %v5506, %v5507
        %v5509 = vrot.slane %v5445, 7
        %v5510 = vrot.slane %v5509, 4
        %v5511 = vrot.slane %v5446, 7
        %v5512 = vsel %vm1012, %v5510, %v5511
        %v5513 = vrot.slane %v5511, 4
        %v5514 = vrot.slane %v5447, 7
        %v5515 = vsel %vm1012, %v5513, %v5514
        %v5516 = vrot.slane %v5448, 7
        %v5517 = vrot.slane %v5516, 4
        %v5518 = vrot.slane %v5449, 7
        %v5519 = vsel %vm1012, %v5517, %v5518
        %v5520 = vrot.slane %v5518, 4
        %v5521 = vrot.slane %v5450, 7
        %v5522 = vsel %vm1012, %v5520, %v5521
        %v5523 = vrot.slane %v5451, 7
        %v5524 = vrot.slane %v5523, 4
        %v5525 = vrot.slane %v5452, 7
        %v5526 = vsel %vm1012, %v5524, %v5525
        %v5527 = vrot.slane %v5525, 4
        %v5528 = vrot.slane %v5453, 7
        %v5529 = vsel %vm1012, %v5527, %v5528
        %v5530 = vrot.slane %v5454, 7
        %v5531 = vrot.slane %v5530, 4
        %v5532 = vrot.slane %v5455, 7
        %v5533 = vsel %vm1012, %v5531, %v5532
        %v5534 = vrot.slane %v5532, 4
        %v5535 = vrot.slane %v5456, 7
        %v5536 = vsel %vm1012, %v5534, %v5535
        %s5537 = scalar_lea.vmem [#allocation5], 1344
        %v5538 = vld [vmem:[%s5537] sm:$0xf]
        %v5539 = vld [vmem:[%s5537 + $0x4] sm:$0xf]
        %v5540 = vld [vmem:[%s5537 + $0x8] sm:$0xf]
        %v5541 = vld [vmem:[%s5537 + $0xc] sm:$0xf]
        %v5542 = vld [vmem:[%s5537 + $0x10] sm:$0xf]
        %v5543 = vld [vmem:[%s5537 + $0x14] sm:$0xf]
        %v5544 = vld [vmem:[%s5537 + $0x18] sm:$0xf]
        %v5545 = vld [vmem:[%s5537 + $0x1c] sm:$0xf]
        %v5546 = vld [vmem:[%s5537 + $0x20] sm:$0xf]
        %v5547 = vld [vmem:[%s5537 + $0x24] sm:$0xf]
        %v5548 = vld [vmem:[%s5537 + $0x28] sm:$0xf]
        %v5549 = vld [vmem:[%s5537 + $0x2c] sm:$0xf]
        %v5550 = vld [vmem:[%s5537 + $0x30] sm:$0xf]
        %v5551 = vld [vmem:[%s5537 + $0x34] sm:$0xf]
        %v5552 = vld [vmem:[%s5537 + $0x38] sm:$0xf]
        %v5553 = vld [vmem:[%s5537 + $0x3c] sm:$0xf]
        %v5554 = vunpack.c.l.b16 %v5484
        %v5555 = vunpack.c.l.b16 %v5487
        %v5556 = vunpack.c.l.b16 %v5491
        %v5557 = vunpack.c.l.b16 %v5494
        %v5558 = vunpack.c.l.b16 %v5498
        %v5559 = vunpack.c.l.b16 %v5501
        %v5560 = vunpack.c.l.b16 %v5505
        %v5561 = vunpack.c.l.b16 %v5508
        %v5562 = vunpack.c.l.b16 %v5512
        %v5563 = vunpack.c.l.b16 %v5515
        %v5564 = vunpack.c.l.b16 %v5519
        %v5565 = vunpack.c.l.b16 %v5522
        %v5566 = vunpack.c.l.b16 %v5526
        %v5567 = vunpack.c.l.b16 %v5529
        %v5568 = vunpack.c.l.b16 %v5533
        %v5569 = vunpack.c.l.b16 %v5536
        %v5570 = vpack.c.b16 %v5555, %v5554
        %v5571 = vpack.c.b16 %v5557, %v5556
        %v5572 = vpack.c.b16 %v5559, %v5558
        %v5573 = vpack.c.b16 %v5561, %v5560
        %v5574 = vpack.c.b16 %v5563, %v5562
        %v5575 = vpack.c.b16 %v5565, %v5564
        %v5576 = vpack.c.b16 %v5567, %v5566
        %v5577 = vpack.c.b16 %v5569, %v5568
        %v5602 = vunpack.c.l.b16 %v5538
        %v5603 = vunpack.c.l.b16 %v5539
        %v5604 = vunpack.c.l.b16 %v5540
        %v5605 = vunpack.c.l.b16 %v5541
        %v5606 = vunpack.c.l.b16 %v5542
        %v5607 = vunpack.c.l.b16 %v5543
        %v5608 = vunpack.c.l.b16 %v5544
        %v5609 = vunpack.c.l.b16 %v5545
        %v5610 = vunpack.c.l.b16 %v5546
        %v5611 = vunpack.c.l.b16 %v5547
        %v5612 = vunpack.c.l.b16 %v5548
        %v5613 = vunpack.c.l.b16 %v5549
        %v5614 = vunpack.c.l.b16 %v5550
        %v5615 = vunpack.c.l.b16 %v5551
        %v5616 = vunpack.c.l.b16 %v5552
        %v5617 = vunpack.c.l.b16 %v5553
        %v5618 = vpack.c.b16 %v5603, %v5602
        %v5619 = vpack.c.b16 %v5605, %v5604
        %v5620 = vpack.c.b16 %v5607, %v5606
        %v5621 = vpack.c.b16 %v5609, %v5608
        %v5622 = vpack.c.b16 %v5611, %v5610
        %v5623 = vpack.c.b16 %v5613, %v5612
        %v5624 = vpack.c.b16 %v5615, %v5614
        %v5625 = vpack.c.b16 %v5617, %v5616
        %5634 = vmatpush.bf16.msra.mxu0 %v5625
        %5635 = vmatpush.bf16.msra.mxu0 %v5624
        %5636 = vmatpush.bf16.msra.mxu0 %v5623
        %5637 = vmatpush.bf16.msra.mxu0 %v5622
        %5638 = vmatpush.bf16.msra.mxu0 %v5621
        %5639 = vmatpush.bf16.msra.mxu0 %v5620
        %5640 = vmatpush.bf16.msra.mxu0 %v5619
        %5641 = vmatpush.bf16.msra.mxu0 %v5618
        %5642 = vmatmul.bf16.gmra.mxu0 %v5570
        %v5643 = vpop.f32.mrf.mxu0
        %v5644 = vadd.f32 0.0, %v5643
        %v5645 = vpop.f32.mrf.mxu0
        %v5646 = vadd.f32 0.0, %v5645
        %5647 = vmatmul.bf16.gmra.mxu0 %v5571
        %v5648 = vpop.f32.mrf.mxu0
        %v5649 = vadd.f32 0.0, %v5648
        %v5650 = vpop.f32.mrf.mxu0
        %v5651 = vadd.f32 0.0, %v5650
        %5652 = vmatmul.bf16.gmra.mxu0 %v5572
        %v5653 = vpop.f32.mrf.mxu0
        %v5654 = vadd.f32 0.0, %v5653
        %v5655 = vpop.f32.mrf.mxu0
        %v5656 = vadd.f32 0.0, %v5655
        %5657 = vmatmul.bf16.gmra.mxu0 %v5573
        %v5658 = vpop.f32.mrf.mxu0
        %v5659 = vadd.f32 0.0, %v5658
        %v5660 = vpop.f32.mrf.mxu0
        %v5661 = vadd.f32 0.0, %v5660
        %5662 = vmatmul.bf16.gmra.mxu0 %v5574
        %v5663 = vpop.f32.mrf.mxu0
        %v5664 = vadd.f32 0.0, %v5663
        %v5665 = vpop.f32.mrf.mxu0
        %v5666 = vadd.f32 0.0, %v5665
        %5667 = vmatmul.bf16.gmra.mxu0 %v5575
        %v5668 = vpop.f32.mrf.mxu0
        %v5669 = vadd.f32 0.0, %v5668
        %v5670 = vpop.f32.mrf.mxu0
        %v5671 = vadd.f32 0.0, %v5670
        %5672 = vmatmul.bf16.gmra.mxu0 %v5576
        %v5673 = vpop.f32.mrf.mxu0
        %v5674 = vadd.f32 0.0, %v5673
        %v5675 = vpop.f32.mrf.mxu0
        %v5676 = vadd.f32 0.0, %v5675
        %5677 = vmatmul.bf16.gmra.mxu0 %v5577
        %v5678 = vpop.f32.mrf.mxu0
        %v5679 = vadd.f32 0.0, %v5678
        %v5680 = vpop.f32.mrf.mxu0
        %v5681 = vadd.f32 0.0, %v5680
        %5682 = vdwg.mxu0
        %v5683 = vadd.f32 %v5417, %v5644
        %v5684 = vadd.f32 %v5418, %v5646
        %v5685 = vadd.f32 %v5419, %v5649
        %v5686 = vadd.f32 %v5420, %v5651
        %v5687 = vadd.f32 %v5421, %v5654
        %v5688 = vadd.f32 %v5422, %v5656
        %v5689 = vadd.f32 %v5423, %v5659
        %v5690 = vadd.f32 %v5424, %v5661
        %v5691 = vadd.f32 %v5425, %v5664
        %v5692 = vadd.f32 %v5426, %v5666
        %v5693 = vadd.f32 %v5427, %v5669
        %v5694 = vadd.f32 %v5428, %v5671
        %v5695 = vadd.f32 %v5429, %v5674
        %v5696 = vadd.f32 %v5430, %v5676
        %v5697 = vadd.f32 %v5431, %v5679
        %v5698 = vadd.f32 %v5432, %v5681
        %s5699 = sadd.s32 %s255, 36
        %s5700 = smul.u32 %s5699, 7
        %s5701 = smul.addr %s5700, 4
        %s5702 = scalar_lea.vmem %s212, %s5701 [#allocation2]
        %v5703 = vld [vmem:[%s5702] sm:$0xf]
        %v5704 = vld [vmem:[%s5702 + $0x4] sm:$0xf]
        %v5705 = vld [vmem:[%s5702 + $0x1c] sm:$0xf]
        %v5706 = vld [vmem:[%s5702 + $0x20] sm:$0xf]
        %v5707 = vld [vmem:[%s5702 + $0x38] sm:$0xf]
        %v5708 = vld [vmem:[%s5702 + $0x3c] sm:$0xf]
        %v5709 = vld [vmem:[%s5702 + $0x54] sm:$0xf]
        %v5710 = vld [vmem:[%s5702 + $0x58] sm:$0xf]
        %v5711 = vld [vmem:[%s5702 + $0x70] sm:$0xf]
        %v5712 = vld [vmem:[%s5702 + $0x74] sm:$0xf]
        %v5713 = vld [vmem:[%s5702 + $0x8c] sm:$0xf]
        %v5714 = vld [vmem:[%s5702 + $0x90] sm:$0xf]
        %v5715 = vld [vmem:[%s5702 + $0xa8] sm:$0xf]
        %v5716 = vld [vmem:[%s5702 + $0xac] sm:$0xf]
        %v5717 = vld [vmem:[%s5702 + $0xc4] sm:$0xf]
        %v5718 = vld [vmem:[%s5702 + $0xc8] sm:$0xf]
        %s5719 = scalar_lea.vmem [#allocation5], 1408
        %v5720 = vld [vmem:[%s5719] sm:$0xf]
        %v5721 = vld [vmem:[%s5719 + $0x4] sm:$0xf]
        %v5722 = vld [vmem:[%s5719 + $0x8] sm:$0xf]
        %v5723 = vld [vmem:[%s5719 + $0xc] sm:$0xf]
        %v5724 = vld [vmem:[%s5719 + $0x10] sm:$0xf]
        %v5725 = vld [vmem:[%s5719 + $0x14] sm:$0xf]
        %v5726 = vld [vmem:[%s5719 + $0x18] sm:$0xf]
        %v5727 = vld [vmem:[%s5719 + $0x1c] sm:$0xf]
        %v5728 = vld [vmem:[%s5719 + $0x20] sm:$0xf]
        %v5729 = vld [vmem:[%s5719 + $0x24] sm:$0xf]
        %v5730 = vld [vmem:[%s5719 + $0x28] sm:$0xf]
        %v5731 = vld [vmem:[%s5719 + $0x2c] sm:$0xf]
        %v5732 = vld [vmem:[%s5719 + $0x30] sm:$0xf]
        %v5733 = vld [vmem:[%s5719 + $0x34] sm:$0xf]
        %v5734 = vld [vmem:[%s5719 + $0x38] sm:$0xf]
        %v5735 = vld [vmem:[%s5719 + $0x3c] sm:$0xf]
        %v5752 = vunpack.c.l.b16 %v5703
        %v5753 = vunpack.c.l.b16 %v5704
        %v5754 = vunpack.c.l.b16 %v5705
        %v5755 = vunpack.c.l.b16 %v5706
        %v5756 = vunpack.c.l.b16 %v5707
        %v5757 = vunpack.c.l.b16 %v5708
        %v5758 = vunpack.c.l.b16 %v5709
        %v5759 = vunpack.c.l.b16 %v5710
        %v5760 = vunpack.c.l.b16 %v5711
        %v5761 = vunpack.c.l.b16 %v5712
        %v5762 = vunpack.c.l.b16 %v5713
        %v5763 = vunpack.c.l.b16 %v5714
        %v5764 = vunpack.c.l.b16 %v5715
        %v5765 = vunpack.c.l.b16 %v5716
        %v5766 = vunpack.c.l.b16 %v5717
        %v5767 = vunpack.c.l.b16 %v5718
        %v5768 = vpack.c.b16 %v5753, %v5752
        %v5769 = vpack.c.b16 %v5755, %v5754
        %v5770 = vpack.c.b16 %v5757, %v5756
        %v5771 = vpack.c.b16 %v5759, %v5758
        %v5772 = vpack.c.b16 %v5761, %v5760
        %v5773 = vpack.c.b16 %v5763, %v5762
        %v5774 = vpack.c.b16 %v5765, %v5764
        %v5775 = vpack.c.b16 %v5767, %v5766
        %v5800 = vunpack.c.l.b16 %v5720
        %v5801 = vunpack.c.l.b16 %v5721
        %v5802 = vunpack.c.l.b16 %v5722
        %v5803 = vunpack.c.l.b16 %v5723
        %v5804 = vunpack.c.l.b16 %v5724
        %v5805 = vunpack.c.l.b16 %v5725
        %v5806 = vunpack.c.l.b16 %v5726
        %v5807 = vunpack.c.l.b16 %v5727
        %v5808 = vunpack.c.l.b16 %v5728
        %v5809 = vunpack.c.l.b16 %v5729
        %v5810 = vunpack.c.l.b16 %v5730
        %v5811 = vunpack.c.l.b16 %v5731
        %v5812 = vunpack.c.l.b16 %v5732
        %v5813 = vunpack.c.l.b16 %v5733
        %v5814 = vunpack.c.l.b16 %v5734
        %v5815 = vunpack.c.l.b16 %v5735
        %v5816 = vpack.c.b16 %v5801, %v5800
        %v5817 = vpack.c.b16 %v5803, %v5802
        %v5818 = vpack.c.b16 %v5805, %v5804
        %v5819 = vpack.c.b16 %v5807, %v5806
        %v5820 = vpack.c.b16 %v5809, %v5808
        %v5821 = vpack.c.b16 %v5811, %v5810
        %v5822 = vpack.c.b16 %v5813, %v5812
        %v5823 = vpack.c.b16 %v5815, %v5814
        %5832 = vmatpush.bf16.msra.mxu0 %v5823
        %5833 = vmatpush.bf16.msra.mxu0 %v5822
        %5834 = vmatpush.bf16.msra.mxu0 %v5821
        %5835 = vmatpush.bf16.msra.mxu0 %v5820
        %5836 = vmatpush.bf16.msra.mxu0 %v5819
        %5837 = vmatpush.bf16.msra.mxu0 %v5818
        %5838 = vmatpush.bf16.msra.mxu0 %v5817
        %5839 = vmatpush.bf16.msra.mxu0 %v5816
        %5840 = vmatmul.bf16.gmra.mxu0 %v5768
        %v5841 = vpop.f32.mrf.mxu0
        %v5842 = vadd.f32 0.0, %v5841
        %v5843 = vpop.f32.mrf.mxu0
        %v5844 = vadd.f32 0.0, %v5843
        %5845 = vmatmul.bf16.gmra.mxu0 %v5769
        %v5846 = vpop.f32.mrf.mxu0
        %v5847 = vadd.f32 0.0, %v5846
        %v5848 = vpop.f32.mrf.mxu0
        %v5849 = vadd.f32 0.0, %v5848
        %5850 = vmatmul.bf16.gmra.mxu0 %v5770
        %v5851 = vpop.f32.mrf.mxu0
        %v5852 = vadd.f32 0.0, %v5851
        %v5853 = vpop.f32.mrf.mxu0
        %v5854 = vadd.f32 0.0, %v5853
        %5855 = vmatmul.bf16.gmra.mxu0 %v5771
        %v5856 = vpop.f32.mrf.mxu0
        %v5857 = vadd.f32 0.0, %v5856
        %v5858 = vpop.f32.mrf.mxu0
        %v5859 = vadd.f32 0.0, %v5858
        %5860 = vmatmul.bf16.gmra.mxu0 %v5772
        %v5861 = vpop.f32.mrf.mxu0
        %v5862 = vadd.f32 0.0, %v5861
        %v5863 = vpop.f32.mrf.mxu0
        %v5864 = vadd.f32 0.0, %v5863
        %5865 = vmatmul.bf16.gmra.mxu0 %v5773
        %v5866 = vpop.f32.mrf.mxu0
        %v5867 = vadd.f32 0.0, %v5866
        %v5868 = vpop.f32.mrf.mxu0
        %v5869 = vadd.f32 0.0, %v5868
        %5870 = vmatmul.bf16.gmra.mxu0 %v5774
        %v5871 = vpop.f32.mrf.mxu0
        %v5872 = vadd.f32 0.0, %v5871
        %v5873 = vpop.f32.mrf.mxu0
        %v5874 = vadd.f32 0.0, %v5873
        %5875 = vmatmul.bf16.gmra.mxu0 %v5775
        %v5876 = vpop.f32.mrf.mxu0
        %v5877 = vadd.f32 0.0, %v5876
        %v5878 = vpop.f32.mrf.mxu0
        %v5879 = vadd.f32 0.0, %v5878
        %5880 = vdwg.mxu0
        %v5881 = vadd.f32 %v5683, %v5842
        %v5882 = vadd.f32 %v5684, %v5844
        %v5883 = vadd.f32 %v5685, %v5847
        %v5884 = vadd.f32 %v5686, %v5849
        %v5885 = vadd.f32 %v5687, %v5852
        %v5886 = vadd.f32 %v5688, %v5854
        %v5887 = vadd.f32 %v5689, %v5857
        %v5888 = vadd.f32 %v5690, %v5859
        %v5889 = vadd.f32 %v5691, %v5862
        %v5890 = vadd.f32 %v5692, %v5864
        %v5891 = vadd.f32 %v5693, %v5867
        %v5892 = vadd.f32 %v5694, %v5869
        %v5893 = vadd.f32 %v5695, %v5872
        %v5894 = vadd.f32 %v5696, %v5874
        %v5895 = vadd.f32 %v5697, %v5877
        %v5896 = vadd.f32 %v5698, %v5879
        %v5897 = vld [vmem:[%s5702 + $0x8] sm:$0xe]
        %v5898 = vld [vmem:[%s5702 + $0xc] sm:$0xf]
        %v5899 = vld [vmem:[%s5702 + $0x10] sm:$0x1]
        %v5900 = vld [vmem:[%s5702 + $0x24] sm:$0xe]
        %v5901 = vld [vmem:[%s5702 + $0x28] sm:$0xf]
        %v5902 = vld [vmem:[%s5702 + $0x2c] sm:$0x1]
        %v5903 = vld [vmem:[%s5702 + $0x40] sm:$0xe]
        %v5904 = vld [vmem:[%s5702 + $0x44] sm:$0xf]
        %v5905 = vld [vmem:[%s5702 + $0x48] sm:$0x1]
        %v5906 = vld [vmem:[%s5702 + $0x5c] sm:$0xe]
        %v5907 = vld [vmem:[%s5702 + $0x60] sm:$0xf]
        %v5908 = vld [vmem:[%s5702 + $0x64] sm:$0x1]
        %v5909 = vld [vmem:[%s5702 + $0x78] sm:$0xe]
        %v5910 = vld [vmem:[%s5702 + $0x7c] sm:$0xf]
        %v5911 = vld [vmem:[%s5702 + $0x80] sm:$0x1]
        %v5912 = vld [vmem:[%s5702 + $0x94] sm:$0xe]
        %v5913 = vld [vmem:[%s5702 + $0x98] sm:$0xf]
        %v5914 = vld [vmem:[%s5702 + $0x9c] sm:$0x1]
        %v5915 = vld [vmem:[%s5702 + $0xb0] sm:$0xe]
        %v5916 = vld [vmem:[%s5702 + $0xb4] sm:$0xf]
        %v5917 = vld [vmem:[%s5702 + $0xb8] sm:$0x1]
        %v5918 = vld [vmem:[%s5702 + $0xcc] sm:$0xe]
        %v5919 = vld [vmem:[%s5702 + $0xd0] sm:$0xf]
        %v5920 = vld [vmem:[%s5702 + $0xd4] sm:$0x1]
        %v5945 = vrot.slane %v5897, 5
        %v5946 = vrot.slane %v5945, 4
        %v5947 = vrot.slane %v5898, 5
        %v5948 = vsel %vm341, %v5946, %v5947
        %v5949 = vrot.slane %v5947, 4
        %v5950 = vrot.slane %v5899, 5
        %v5951 = vsel %vm341, %v5949, %v5950
        %v5952 = vrot.slane %v5900, 5
        %v5953 = vrot.slane %v5952, 4
        %v5954 = vrot.slane %v5901, 5
        %v5955 = vsel %vm341, %v5953, %v5954
        %v5956 = vrot.slane %v5954, 4
        %v5957 = vrot.slane %v5902, 5
        %v5958 = vsel %vm341, %v5956, %v5957
        %v5959 = vrot.slane %v5903, 5
        %v5960 = vrot.slane %v5959, 4
        %v5961 = vrot.slane %v5904, 5
        %v5962 = vsel %vm341, %v5960, %v5961
        %v5963 = vrot.slane %v5961, 4
        %v5964 = vrot.slane %v5905, 5
        %v5965 = vsel %vm341, %v5963, %v5964
        %v5966 = vrot.slane %v5906, 5
        %v5967 = vrot.slane %v5966, 4
        %v5968 = vrot.slane %v5907, 5
        %v5969 = vsel %vm341, %v5967, %v5968
        %v5970 = vrot.slane %v5968, 4
        %v5971 = vrot.slane %v5908, 5
        %v5972 = vsel %vm341, %v5970, %v5971
        %v5973 = vrot.slane %v5909, 5
        %v5974 = vrot.slane %v5973, 4
        %v5975 = vrot.slane %v5910, 5
        %v5976 = vsel %vm341, %v5974, %v5975
        %v5977 = vrot.slane %v5975, 4
        %v5978 = vrot.slane %v5911, 5
        %v5979 = vsel %vm341, %v5977, %v5978
        %v5980 = vrot.slane %v5912, 5
        %v5981 = vrot.slane %v5980, 4
        %v5982 = vrot.slane %v5913, 5
        %v5983 = vsel %vm341, %v5981, %v5982
        %v5984 = vrot.slane %v5982, 4
        %v5985 = vrot.slane %v5914, 5
        %v5986 = vsel %vm341, %v5984, %v5985
        %v5987 = vrot.slane %v5915, 5
        %v5988 = vrot.slane %v5987, 4
        %v5989 = vrot.slane %v5916, 5
        %v5990 = vsel %vm341, %v5988, %v5989
        %v5991 = vrot.slane %v5989, 4
        %v5992 = vrot.slane %v5917, 5
        %v5993 = vsel %vm341, %v5991, %v5992
        %v5994 = vrot.slane %v5918, 5
        %v5995 = vrot.slane %v5994, 4
        %v5996 = vrot.slane %v5919, 5
        %v5997 = vsel %vm341, %v5995, %v5996
        %v5998 = vrot.slane %v5996, 4
        %v5999 = vrot.slane %v5920, 5
        %v6000 = vsel %vm341, %v5998, %v5999
        %s6001 = scalar_lea.vmem [#allocation5], 1472
        %v6002 = vld [vmem:[%s6001] sm:$0xf]
        %v6003 = vld [vmem:[%s6001 + $0x4] sm:$0xf]
        %v6004 = vld [vmem:[%s6001 + $0x8] sm:$0xf]
        %v6005 = vld [vmem:[%s6001 + $0xc] sm:$0xf]
        %v6006 = vld [vmem:[%s6001 + $0x10] sm:$0xf]
        %v6007 = vld [vmem:[%s6001 + $0x14] sm:$0xf]
        %v6008 = vld [vmem:[%s6001 + $0x18] sm:$0xf]
        %v6009 = vld [vmem:[%s6001 + $0x1c] sm:$0xf]
        %v6010 = vld [vmem:[%s6001 + $0x20] sm:$0xf]
        %v6011 = vld [vmem:[%s6001 + $0x24] sm:$0xf]
        %v6012 = vld [vmem:[%s6001 + $0x28] sm:$0xf]
        %v6013 = vld [vmem:[%s6001 + $0x2c] sm:$0xf]
        %v6014 = vld [vmem:[%s6001 + $0x30] sm:$0xf]
        %v6015 = vld [vmem:[%s6001 + $0x34] sm:$0xf]
        %v6016 = vld [vmem:[%s6001 + $0x38] sm:$0xf]
        %v6017 = vld [vmem:[%s6001 + $0x3c] sm:$0xf]
        %v6018 = vunpack.c.l.b16 %v5948
        %v6019 = vunpack.c.l.b16 %v5951
        %v6020 = vunpack.c.l.b16 %v5955
        %v6021 = vunpack.c.l.b16 %v5958
        %v6022 = vunpack.c.l.b16 %v5962
        %v6023 = vunpack.c.l.b16 %v5965
        %v6024 = vunpack.c.l.b16 %v5969
        %v6025 = vunpack.c.l.b16 %v5972
        %v6026 = vunpack.c.l.b16 %v5976
        %v6027 = vunpack.c.l.b16 %v5979
        %v6028 = vunpack.c.l.b16 %v5983
        %v6029 = vunpack.c.l.b16 %v5986
        %v6030 = vunpack.c.l.b16 %v5990
        %v6031 = vunpack.c.l.b16 %v5993
        %v6032 = vunpack.c.l.b16 %v5997
        %v6033 = vunpack.c.l.b16 %v6000
        %v6034 = vpack.c.b16 %v6019, %v6018
        %v6035 = vpack.c.b16 %v6021, %v6020
        %v6036 = vpack.c.b16 %v6023, %v6022
        %v6037 = vpack.c.b16 %v6025, %v6024
        %v6038 = vpack.c.b16 %v6027, %v6026
        %v6039 = vpack.c.b16 %v6029, %v6028
        %v6040 = vpack.c.b16 %v6031, %v6030
        %v6041 = vpack.c.b16 %v6033, %v6032
        %v6066 = vunpack.c.l.b16 %v6002
        %v6067 = vunpack.c.l.b16 %v6003
        %v6068 = vunpack.c.l.b16 %v6004
        %v6069 = vunpack.c.l.b16 %v6005
        %v6070 = vunpack.c.l.b16 %v6006
        %v6071 = vunpack.c.l.b16 %v6007
        %v6072 = vunpack.c.l.b16 %v6008
        %v6073 = vunpack.c.l.b16 %v6009
        %v6074 = vunpack.c.l.b16 %v6010
        %v6075 = vunpack.c.l.b16 %v6011
        %v6076 = vunpack.c.l.b16 %v6012
        %v6077 = vunpack.c.l.b16 %v6013
        %v6078 = vunpack.c.l.b16 %v6014
        %v6079 = vunpack.c.l.b16 %v6015
        %v6080 = vunpack.c.l.b16 %v6016
        %v6081 = vunpack.c.l.b16 %v6017
        %v6082 = vpack.c.b16 %v6067, %v6066
        %v6083 = vpack.c.b16 %v6069, %v6068
        %v6084 = vpack.c.b16 %v6071, %v6070
        %v6085 = vpack.c.b16 %v6073, %v6072
        %v6086 = vpack.c.b16 %v6075, %v6074
        %v6087 = vpack.c.b16 %v6077, %v6076
        %v6088 = vpack.c.b16 %v6079, %v6078
        %v6089 = vpack.c.b16 %v6081, %v6080
        %6098 = vmatpush.bf16.msra.mxu0 %v6089
        %6099 = vmatpush.bf16.msra.mxu0 %v6088
        %6100 = vmatpush.bf16.msra.mxu0 %v6087
        %6101 = vmatpush.bf16.msra.mxu0 %v6086
        %6102 = vmatpush.bf16.msra.mxu0 %v6085
        %6103 = vmatpush.bf16.msra.mxu0 %v6084
        %6104 = vmatpush.bf16.msra.mxu0 %v6083
        %6105 = vmatpush.bf16.msra.mxu0 %v6082
        %6106 = vmatmul.bf16.gmra.mxu0 %v6034
        %v6107 = vpop.f32.mrf.mxu0
        %v6108 = vadd.f32 0.0, %v6107
        %v6109 = vpop.f32.mrf.mxu0
        %v6110 = vadd.f32 0.0, %v6109
        %6111 = vmatmul.bf16.gmra.mxu0 %v6035
        %v6112 = vpop.f32.mrf.mxu0
        %v6113 = vadd.f32 0.0, %v6112
        %v6114 = vpop.f32.mrf.mxu0
        %v6115 = vadd.f32 0.0, %v6114
        %6116 = vmatmul.bf16.gmra.mxu0 %v6036
        %v6117 = vpop.f32.mrf.mxu0
        %v6118 = vadd.f32 0.0, %v6117
        %v6119 = vpop.f32.mrf.mxu0
        %v6120 = vadd.f32 0.0, %v6119
        %6121 = vmatmul.bf16.gmra.mxu0 %v6037
        %v6122 = vpop.f32.mrf.mxu0
        %v6123 = vadd.f32 0.0, %v6122
        %v6124 = vpop.f32.mrf.mxu0
        %v6125 = vadd.f32 0.0, %v6124
        %6126 = vmatmul.bf16.gmra.mxu0 %v6038
        %v6127 = vpop.f32.mrf.mxu0
        %v6128 = vadd.f32 0.0, %v6127
        %v6129 = vpop.f32.mrf.mxu0
        %v6130 = vadd.f32 0.0, %v6129
        %6131 = vmatmul.bf16.gmra.mxu0 %v6039
        %v6132 = vpop.f32.mrf.mxu0
        %v6133 = vadd.f32 0.0, %v6132
        %v6134 = vpop.f32.mrf.mxu0
        %v6135 = vadd.f32 0.0, %v6134
        %6136 = vmatmul.bf16.gmra.mxu0 %v6040
        %v6137 = vpop.f32.mrf.mxu0
        %v6138 = vadd.f32 0.0, %v6137
        %v6139 = vpop.f32.mrf.mxu0
        %v6140 = vadd.f32 0.0, %v6139
        %6141 = vmatmul.bf16.gmra.mxu0 %v6041
        %v6142 = vpop.f32.mrf.mxu0
        %v6143 = vadd.f32 0.0, %v6142
        %v6144 = vpop.f32.mrf.mxu0
        %v6145 = vadd.f32 0.0, %v6144
        %6146 = vdwg.mxu0
        %v6147 = vadd.f32 %v5881, %v6108
        %v6148 = vadd.f32 %v5882, %v6110
        %v6149 = vadd.f32 %v5883, %v6113
        %v6150 = vadd.f32 %v5884, %v6115
        %v6151 = vadd.f32 %v5885, %v6118
        %v6152 = vadd.f32 %v5886, %v6120
        %v6153 = vadd.f32 %v5887, %v6123
        %v6154 = vadd.f32 %v5888, %v6125
        %v6155 = vadd.f32 %v5889, %v6128
        %v6156 = vadd.f32 %v5890, %v6130
        %v6157 = vadd.f32 %v5891, %v6133
        %v6158 = vadd.f32 %v5892, %v6135
        %v6159 = vadd.f32 %v5893, %v6138
        %v6160 = vadd.f32 %v5894, %v6140
        %v6161 = vadd.f32 %v5895, %v6143
        %v6162 = vadd.f32 %v5896, %v6145
        %v6163 = vld [vmem:[%s5702 + $0x10] sm:$0xc]
        %v6164 = vld [vmem:[%s5702 + $0x14] sm:$0xf]
        %v6165 = vld [vmem:[%s5702 + $0x18] sm:$0x3]
        %v6166 = vld [vmem:[%s5702 + $0x2c] sm:$0xc]
        %v6167 = vld [vmem:[%s5702 + $0x30] sm:$0xf]
        %v6168 = vld [vmem:[%s5702 + $0x34] sm:$0x3]
        %v6169 = vld [vmem:[%s5702 + $0x48] sm:$0xc]
        %v6170 = vld [vmem:[%s5702 + $0x4c] sm:$0xf]
        %v6171 = vld [vmem:[%s5702 + $0x50] sm:$0x3]
        %v6172 = vld [vmem:[%s5702 + $0x64] sm:$0xc]
        %v6173 = vld [vmem:[%s5702 + $0x68] sm:$0xf]
        %v6174 = vld [vmem:[%s5702 + $0x6c] sm:$0x3]
        %v6175 = vld [vmem:[%s5702 + $0x80] sm:$0xc]
        %v6176 = vld [vmem:[%s5702 + $0x84] sm:$0xf]
        %v6177 = vld [vmem:[%s5702 + $0x88] sm:$0x3]
        %v6178 = vld [vmem:[%s5702 + $0x9c] sm:$0xc]
        %v6179 = vld [vmem:[%s5702 + $0xa0] sm:$0xf]
        %v6180 = vld [vmem:[%s5702 + $0xa4] sm:$0x3]
        %v6181 = vld [vmem:[%s5702 + $0xb8] sm:$0xc]
        %v6182 = vld [vmem:[%s5702 + $0xbc] sm:$0xf]
        %v6183 = vld [vmem:[%s5702 + $0xc0] sm:$0x3]
        %v6184 = vld [vmem:[%s5702 + $0xd4] sm:$0xc]
        %v6185 = vld [vmem:[%s5702 + $0xd8] sm:$0xf]
        %v6186 = vld [vmem:[%s5702 + $0xdc] sm:$0x3]
        %v6211 = vrot.slane %v6163, 6
        %v6212 = vrot.slane %v6211, 4
        %v6213 = vrot.slane %v6164, 6
        %v6214 = vsel %vm739, %v6212, %v6213
        %v6215 = vrot.slane %v6213, 4
        %v6216 = vrot.slane %v6165, 6
        %v6217 = vsel %vm739, %v6215, %v6216
        %v6218 = vrot.slane %v6166, 6
        %v6219 = vrot.slane %v6218, 4
        %v6220 = vrot.slane %v6167, 6
        %v6221 = vsel %vm739, %v6219, %v6220
        %v6222 = vrot.slane %v6220, 4
        %v6223 = vrot.slane %v6168, 6
        %v6224 = vsel %vm739, %v6222, %v6223
        %v6225 = vrot.slane %v6169, 6
        %v6226 = vrot.slane %v6225, 4
        %v6227 = vrot.slane %v6170, 6
        %v6228 = vsel %vm739, %v6226, %v6227
        %v6229 = vrot.slane %v6227, 4
        %v6230 = vrot.slane %v6171, 6
        %v6231 = vsel %vm739, %v6229, %v6230
        %v6232 = vrot.slane %v6172, 6
        %v6233 = vrot.slane %v6232, 4
        %v6234 = vrot.slane %v6173, 6
        %v6235 = vsel %vm739, %v6233, %v6234
        %v6236 = vrot.slane %v6234, 4
        %v6237 = vrot.slane %v6174, 6
        %v6238 = vsel %vm739, %v6236, %v6237
        %v6239 = vrot.slane %v6175, 6
        %v6240 = vrot.slane %v6239, 4
        %v6241 = vrot.slane %v6176, 6
        %v6242 = vsel %vm739, %v6240, %v6241
        %v6243 = vrot.slane %v6241, 4
        %v6244 = vrot.slane %v6177, 6
        %v6245 = vsel %vm739, %v6243, %v6244
        %v6246 = vrot.slane %v6178, 6
        %v6247 = vrot.slane %v6246, 4
        %v6248 = vrot.slane %v6179, 6
        %v6249 = vsel %vm739, %v6247, %v6248
        %v6250 = vrot.slane %v6248, 4
        %v6251 = vrot.slane %v6180, 6
        %v6252 = vsel %vm739, %v6250, %v6251
        %v6253 = vrot.slane %v6181, 6
        %v6254 = vrot.slane %v6253, 4
        %v6255 = vrot.slane %v6182, 6
        %v6256 = vsel %vm739, %v6254, %v6255
        %v6257 = vrot.slane %v6255, 4
        %v6258 = vrot.slane %v6183, 6
        %v6259 = vsel %vm739, %v6257, %v6258
        %v6260 = vrot.slane %v6184, 6
        %v6261 = vrot.slane %v6260, 4
        %v6262 = vrot.slane %v6185, 6
        %v6263 = vsel %vm739, %v6261, %v6262
        %v6264 = vrot.slane %v6262, 4
        %v6265 = vrot.slane %v6186, 6
        %v6266 = vsel %vm739, %v6264, %v6265
        %s6267 = scalar_lea.vmem [#allocation5], 1536
        %v6268 = vld [vmem:[%s6267] sm:$0xf]
        %v6269 = vld [vmem:[%s6267 + $0x4] sm:$0xf]
        %v6270 = vld [vmem:[%s6267 + $0x8] sm:$0xf]
        %v6271 = vld [vmem:[%s6267 + $0xc] sm:$0xf]
        %v6272 = vld [vmem:[%s6267 + $0x10] sm:$0xf]
        %v6273 = vld [vmem:[%s6267 + $0x14] sm:$0xf]
        %v6274 = vld [vmem:[%s6267 + $0x18] sm:$0xf]
        %v6275 = vld [vmem:[%s6267 + $0x1c] sm:$0xf]
        %v6276 = vld [vmem:[%s6267 + $0x20] sm:$0xf]
        %v6277 = vld [vmem:[%s6267 + $0x24] sm:$0xf]
        %v6278 = vld [vmem:[%s6267 + $0x28] sm:$0xf]
        %v6279 = vld [vmem:[%s6267 + $0x2c] sm:$0xf]
        %v6280 = vld [vmem:[%s6267 + $0x30] sm:$0xf]
        %v6281 = vld [vmem:[%s6267 + $0x34] sm:$0xf]
        %v6282 = vld [vmem:[%s6267 + $0x38] sm:$0xf]
        %v6283 = vld [vmem:[%s6267 + $0x3c] sm:$0xf]
        %v6284 = vunpack.c.l.b16 %v6214
        %v6285 = vunpack.c.l.b16 %v6217
        %v6286 = vunpack.c.l.b16 %v6221
        %v6287 = vunpack.c.l.b16 %v6224
        %v6288 = vunpack.c.l.b16 %v6228
        %v6289 = vunpack.c.l.b16 %v6231
        %v6290 = vunpack.c.l.b16 %v6235
        %v6291 = vunpack.c.l.b16 %v6238
        %v6292 = vunpack.c.l.b16 %v6242
        %v6293 = vunpack.c.l.b16 %v6245
        %v6294 = vunpack.c.l.b16 %v6249
        %v6295 = vunpack.c.l.b16 %v6252
        %v6296 = vunpack.c.l.b16 %v6256
        %v6297 = vunpack.c.l.b16 %v6259
        %v6298 = vunpack.c.l.b16 %v6263
        %v6299 = vunpack.c.l.b16 %v6266
        %v6300 = vpack.c.b16 %v6285, %v6284
        %v6301 = vpack.c.b16 %v6287, %v6286
        %v6302 = vpack.c.b16 %v6289, %v6288
        %v6303 = vpack.c.b16 %v6291, %v6290
        %v6304 = vpack.c.b16 %v6293, %v6292
        %v6305 = vpack.c.b16 %v6295, %v6294
        %v6306 = vpack.c.b16 %v6297, %v6296
        %v6307 = vpack.c.b16 %v6299, %v6298
        %v6332 = vunpack.c.l.b16 %v6268
        %v6333 = vunpack.c.l.b16 %v6269
        %v6334 = vunpack.c.l.b16 %v6270
        %v6335 = vunpack.c.l.b16 %v6271
        %v6336 = vunpack.c.l.b16 %v6272
        %v6337 = vunpack.c.l.b16 %v6273
        %v6338 = vunpack.c.l.b16 %v6274
        %v6339 = vunpack.c.l.b16 %v6275
        %v6340 = vunpack.c.l.b16 %v6276
        %v6341 = vunpack.c.l.b16 %v6277
        %v6342 = vunpack.c.l.b16 %v6278
        %v6343 = vunpack.c.l.b16 %v6279
        %v6344 = vunpack.c.l.b16 %v6280
        %v6345 = vunpack.c.l.b16 %v6281
        %v6346 = vunpack.c.l.b16 %v6282
        %v6347 = vunpack.c.l.b16 %v6283
        %v6348 = vpack.c.b16 %v6333, %v6332
        %v6349 = vpack.c.b16 %v6335, %v6334
        %v6350 = vpack.c.b16 %v6337, %v6336
        %v6351 = vpack.c.b16 %v6339, %v6338
        %v6352 = vpack.c.b16 %v6341, %v6340
        %v6353 = vpack.c.b16 %v6343, %v6342
        %v6354 = vpack.c.b16 %v6345, %v6344
        %v6355 = vpack.c.b16 %v6347, %v6346
        %6364 = vmatpush.bf16.msra.mxu0 %v6355
        %6365 = vmatpush.bf16.msra.mxu0 %v6354
        %6366 = vmatpush.bf16.msra.mxu0 %v6353
        %6367 = vmatpush.bf16.msra.mxu0 %v6352
        %6368 = vmatpush.bf16.msra.mxu0 %v6351
        %6369 = vmatpush.bf16.msra.mxu0 %v6350
        %6370 = vmatpush.bf16.msra.mxu0 %v6349
        %6371 = vmatpush.bf16.msra.mxu0 %v6348
        %6372 = vmatmul.bf16.gmra.mxu0 %v6300
        %v6373 = vpop.f32.mrf.mxu0
        %v6374 = vadd.f32 0.0, %v6373
        %v6375 = vpop.f32.mrf.mxu0
        %v6376 = vadd.f32 0.0, %v6375
        %6377 = vmatmul.bf16.gmra.mxu0 %v6301
        %v6378 = vpop.f32.mrf.mxu0
        %v6379 = vadd.f32 0.0, %v6378
        %v6380 = vpop.f32.mrf.mxu0
        %v6381 = vadd.f32 0.0, %v6380
        %6382 = vmatmul.bf16.gmra.mxu0 %v6302
        %v6383 = vpop.f32.mrf.mxu0
        %v6384 = vadd.f32 0.0, %v6383
        %v6385 = vpop.f32.mrf.mxu0
        %v6386 = vadd.f32 0.0, %v6385
        %6387 = vmatmul.bf16.gmra.mxu0 %v6303
        %v6388 = vpop.f32.mrf.mxu0
        %v6389 = vadd.f32 0.0, %v6388
        %v6390 = vpop.f32.mrf.mxu0
        %v6391 = vadd.f32 0.0, %v6390
        %6392 = vmatmul.bf16.gmra.mxu0 %v6304
        %v6393 = vpop.f32.mrf.mxu0
        %v6394 = vadd.f32 0.0, %v6393
        %v6395 = vpop.f32.mrf.mxu0
        %v6396 = vadd.f32 0.0, %v6395
        %6397 = vmatmul.bf16.gmra.mxu0 %v6305
        %v6398 = vpop.f32.mrf.mxu0
        %v6399 = vadd.f32 0.0, %v6398
        %v6400 = vpop.f32.mrf.mxu0
        %v6401 = vadd.f32 0.0, %v6400
        %6402 = vmatmul.bf16.gmra.mxu0 %v6306
        %v6403 = vpop.f32.mrf.mxu0
        %v6404 = vadd.f32 0.0, %v6403
        %v6405 = vpop.f32.mrf.mxu0
        %v6406 = vadd.f32 0.0, %v6405
        %6407 = vmatmul.bf16.gmra.mxu0 %v6307
        %v6408 = vpop.f32.mrf.mxu0
        %v6409 = vadd.f32 0.0, %v6408
        %v6410 = vpop.f32.mrf.mxu0
        %v6411 = vadd.f32 0.0, %v6410
        %6412 = vdwg.mxu0
        %v6413 = vadd.f32 %v6147, %v6374
        %v6414 = vadd.f32 %v6148, %v6376
        %v6415 = vadd.f32 %v6149, %v6379
        %v6416 = vadd.f32 %v6150, %v6381
        %v6417 = vadd.f32 %v6151, %v6384
        %v6418 = vadd.f32 %v6152, %v6386
        %v6419 = vadd.f32 %v6153, %v6389
        %v6420 = vadd.f32 %v6154, %v6391
        %v6421 = vadd.f32 %v6155, %v6394
        %v6422 = vadd.f32 %v6156, %v6396
        %v6423 = vadd.f32 %v6157, %v6399
        %v6424 = vadd.f32 %v6158, %v6401
        %v6425 = vadd.f32 %v6159, %v6404
        %v6426 = vadd.f32 %v6160, %v6406
        %v6427 = vadd.f32 %v6161, %v6409
        %v6428 = vadd.f32 %v6162, %v6411
        %v6429 = vld [vmem:[%s226] sm:$0x1]
        %v6431 = vperm.slane %v6429, 0
        %v6433 = vadd.f32 %v6413, %v6431
        %v6434 = vadd.f32 %v6414, %v6431
        %v6435 = vadd.f32 %v6415, %v6431
        %v6436 = vadd.f32 %v6416, %v6431
        %v6437 = vadd.f32 %v6417, %v6431
        %v6438 = vadd.f32 %v6418, %v6431
        %v6439 = vadd.f32 %v6419, %v6431
        %v6440 = vadd.f32 %v6420, %v6431
        %v6441 = vadd.f32 %v6421, %v6431
        %v6442 = vadd.f32 %v6422, %v6431
        %v6443 = vadd.f32 %v6423, %v6431
        %v6444 = vadd.f32 %v6424, %v6431
        %v6445 = vadd.f32 %v6425, %v6431
        %v6446 = vadd.f32 %v6426, %v6431
        %v6447 = vadd.f32 %v6427, %v6431
        %v6448 = vadd.f32 %v6428, %v6431
        %6449 = vst [vmem:[%s253] sm:$0xff] %v6433
        %6450 = vst [vmem:[%s253 + $0x8] sm:$0xff] %v6434
        %6451 = vst [vmem:[%s253 + $0x10] sm:$0xff] %v6435
        %6452 = vst [vmem:[%s253 + $0x18] sm:$0xff] %v6436
        %6453 = vst [vmem:[%s253 + $0x20] sm:$0xff] %v6437
        %6454 = vst [vmem:[%s253 + $0x28] sm:$0xff] %v6438
        %6455 = vst [vmem:[%s253 + $0x30] sm:$0xff] %v6439
        %6456 = vst [vmem:[%s253 + $0x38] sm:$0xff] %v6440
        %6457 = vst [vmem:[%s253 + $0x40] sm:$0xff] %v6441
        %6458 = vst [vmem:[%s253 + $0x48] sm:$0xff] %v6442
        %6459 = vst [vmem:[%s253 + $0x50] sm:$0xff] %v6443
        %6460 = vst [vmem:[%s253 + $0x58] sm:$0xff] %v6444
        %6461 = vst [vmem:[%s253 + $0x60] sm:$0xff] %v6445
        %6462 = vst [vmem:[%s253 + $0x68] sm:$0xff] %v6446
        %6463 = vst [vmem:[%s253 + $0x70] sm:$0xff] %v6447
        %6464 = vst [vmem:[%s253 + $0x78] sm:$0xff] %v6448
        %s6465 = sand.u32 %s116, 1
        %s6466 = scalar_lea.sflag [#allocation4], %s6465
        %s6467 = sand.u32 %s116, 1
        %s6468 = smul.addr %s6467, 128
        %s6469 = scalar_lea.vmem [#allocation8], %s6468
        // Predicated region
        $region45: #{tpu_custom_call.1} parent=31 // pred_check
          %p6470 = pneg %p126
        $region46: #{tpu_custom_call.1} parent=31 // pred_check_branch
          %6472 = sbr.rel (%p6470) target = $region48
        $region47: #{tpu_custom_call.1} parent=31 // pred_region
          %s6473 = smul.u32 8, %s26
          %6475 = vsyncadd %s6466, 0
          %s6476 = smul.addr %s6473, 2
          %s6477 = smul.addr %s25, 32
          %s6478 = sadd.s32 %s6476, %s6477
          %s6479 = smul.addr %s6478, 8
          %s6480 = scalar_lea.hbm %s3, %s6479
          %s6481 = sshll.u32 %s6469, 4
          %s6482 = int_to_ptr.vmem [resolvable:$true] %s6481
          %s6483 = sshll.u32 %s6480, 4
          %s6484 = int_to_ptr.hbm [resolvable:$true] %s6483
          %6489 = dma.vmem_to_hbm [thread:$0]  %s6482, 2048, %s6484, %s6466, 128, 128, 8
        $region48: #{tpu_custom_call.1} parent=31 // pred_fallthru
          _
      $region32: #{tpu_custom_call.1} parent=5 // pred_fallthru
        _
      %p6490 = scmp.le.s32.totalorder 2, %s16
      // Predicated region
      $region49: #{tpu_custom_call.1} parent=5 // pred_check
        %p6491 = pneg %p6490
      $region50: #{tpu_custom_call.1} parent=5 // pred_check_branch
        %6493 = sbr.rel (%p6491) target = $region52
      $region51: #{tpu_custom_call.1} parent=5 // pred_region
        %s6494 = ssub.s32 %s16, 2
        // Predicated region
        $region53: #{tpu_custom_call.1} parent=51 // pred_check
          %p6495 = pneg %p132
        $region54: #{tpu_custom_call.1} parent=51 // pred_check_branch
          %6497 = sbr.rel (%p6495) target = $region56
        $region55: #{tpu_custom_call.1} parent=51 // pred_region
          %s6498 = sand.u32 %s117, 1
          %s6499 = scalar_lea.sflag [#allocation4], %s6498
          %s6500 = sand.u32 %s117, 1
          %s6501 = smul.addr %s6500, 128
          %s6502 = scalar_lea.vmem [#allocation8], %s6501
          %6504 = dma.done %s6499, 2048
        $region56: #{tpu_custom_call.1} parent=51 // pred_fallthru
          _
      $region52: #{tpu_custom_call.1} parent=5 // pred_fallthru
        _
    $region6: #{tpu_custom_call.1} parent=1 // loop_footer
      %s20 = sadd.s32 1, %s16
    $region7: #{tpu_custom_call.1} parent=1 // loop_footer_branch
      %15 = sbr.rel target = $region3
    $region8: #{tpu_custom_call.1} parent=1 // loop_exit
      _
    %6505 = vsyncpa [#allocation3], 1
    %s6506 = scalar_lea.sflag [#allocation3], 1
    %6507 = vsyncpa %s6506, 1
    %6508 = vsyncpa [#allocation6], 1
    %6509 = vsyncpa [#allocation4], 1
    %s6510 = scalar_lea.sflag [#allocation4], 1
    %6511 = vsyncpa %s6510, 1

</llo_original>
